<compile_context>
chip_gen: v7x
topology: tpu7x:2x2x1
jax: 0.10.0
libtpu: 0.0.40
codegen_flags: <defaults>
</compile_context>

<pallas_src>
import functools
import math

import jax
import jax.numpy as jnp
from jax.experimental import pallas as pl
from jax.experimental.pallas import tpu as pltpu


# ---------------------------------------------------------------------------
# Layer plan: (in, out, activation)  — encoder then decoder.
# ---------------------------------------------------------------------------
_LAYERS = [
    (28 * 28, 512, "softplus"),
    (512, 256, "softplus"),
    (256, 128, "softplus"),
    (128, 32, "softplus"),
    (32, 128, "softplus"),
    (128, 256, "softplus"),
    (256, 512, "softplus"),
    (512, 28 * 28, "sigmoid"),
]


def _round_up(x, m):
    return (x + m - 1) // m * m


def _softplus(x):
    # Branch-free, numerically stable softplus.  Matches torch.nn.Softplus
    # (beta=1, threshold=20) to <1e-9 (the thresholded linear branch for x>20
    # differs from this form by exp(-x) < 2e-9).
    return jnp.maximum(x, 0.0) + jnp.log1p(jnp.exp(-jnp.abs(x)))


# ---------------------------------------------------------------------------
# Fused kernel: runs all 8 layers on one batch tile.
#   refs = (x_ref, w0, b0, w1, b1, ..., w7, b7, o_ref)
# Activations live in vregs/VMEM temporaries; no HBM round-trips between
# layers and a single pallas_call launch.
# ---------------------------------------------------------------------------
def fused_ae_kernel(x_ref, *refs):
    o_ref = refs[-1]
    layer_refs = refs[:-1]
    n_layers = len(layer_refs) // 2

    h = x_ref[...].astype(jnp.float32)  # (tb, 784)
    for li in range(n_layers):
        w = layer_refs[2 * li][...]        # (din, dout) bf16, VMEM-resident
        b = layer_refs[2 * li + 1][...]    # (1, dout)   f32
        # MXU matmul with bf16 operands, f32 accumulation.
        y = jnp.dot(h.astype(w.dtype), w, preferred_element_type=jnp.float32)
        y = y + b                          # (tb, dout) + (1, dout) broadcast
        if li < n_layers - 1:
            h = _softplus(y)
        else:
            h = jax.nn.sigmoid(y)          # single EUP logistic
    o_ref[...] = h.astype(o_ref.dtype)     # (tb, 784), masked vst on last lanes


# ---------------------------------------------------------------------------
# Parameter construction (deterministic, synthetic — mirrors module shapes).
# Weights: PyTorch Linear default uniform(-1/sqrt(fan_in), 1/sqrt(fan_in)).
# Biases:  zeroed (the module's init loop takes the `bias is not None` branch).
# The 32-wide bottleneck dims are zero-padded to 128 so every intermediate is
# lane-dense; padded w4 rows are exactly zero, which makes the padding exact.
# ---------------------------------------------------------------------------
def _pad2(a, rows, cols):
    r, c = a.shape
    if (r, c) == (rows, cols):
        return a
    return jnp.zeros((rows, cols), a.dtype).at[:r, :c].set(a)


def init_params(key, weight_dtype=jnp.bfloat16):
    params = []
    for din, dout, _act in _LAYERS:
        key, wkey = jax.random.split(key)
        bound = 1.0 / math.sqrt(din)
        w = jax.random.uniform(
            wkey, (din, dout), dtype=jnp.float32, minval=-bound, maxval=bound
        )
        b = jnp.zeros((1, dout), dtype=jnp.float32)
        din_p = _round_up(din, 128) if din == 32 else din
        dout_p = _round_up(dout, 128) if dout == 32 else dout
        w = _pad2(w, din_p, dout_p).astype(weight_dtype)
        b = _pad2(b, 1, dout_p)  # bias stays f32
        params.append((w, b))
    return params


# ---------------------------------------------------------------------------
# Pure-JAX reference (same bf16-quantized weights) for a correctness check.
# ---------------------------------------------------------------------------
def ae_mnist_reference(x, params):
    h = x.astype(jnp.float32)
    n = len(params)
    for li, (w, b) in enumerate(params):
        y = jnp.dot(h.astype(w.dtype).astype(jnp.float32),
                    w.astype(jnp.float32)) + b
        h = _softplus(y) if li < n - 1 else jax.nn.sigmoid(y)
    return h


# ---------------------------------------------------------------------------
# Forward pass: one fused pallas_call, gridded over batch tiles.
#   max_block_batch: upper bound on the batch tile (256 is a good default on
#     all generations; raise to 512 on v6e if desired).
#   min_grid_steps:  set to 2 on v7x so both TensorCores get work when the
#     batch would otherwise fit in a single tile.
# ---------------------------------------------------------------------------
def ae_mnist_forward(x, params, *, max_block_batch=256, min_grid_steps=1):
    B, Din = x.shape
    assert Din == 28 * 28, Din

    # Balanced batch tiles: minimizes padding (at most 7 wasted rows per tile)
    # instead of padding B up to a fixed 256.
    n_tiles = max(pl.cdiv(B, max_block_batch), min_grid_steps)
    tb = _round_up(pl.cdiv(B, n_tiles), 8)
    n_tiles = pl.cdiv(B, tb)
    Bp = n_tiles * tb

    xp = x if Bp == B else jnp.zeros((Bp, Din), x.dtype).at[:B].set(x)

    flat_params = []
    # Input/output blocks are full-width (tb, 784): no wrapper-side feature
    # pad / slice HBM passes.
    in_specs = [pl.BlockSpec((tb, Din), lambda i: (i, 0))]
    for (w, b) in params:
        # Full-array blocks; constant index_map => fetched once, kept in VMEM.
        in_specs.append(pl.BlockSpec(w.shape, lambda i: (0, 0)))
        in_specs.append(pl.BlockSpec(b.shape, lambda i: (0, 0)))
        flat_params += [w, b]

    out = pl.pallas_call(
        fused_ae_kernel,
        out_shape=jax.ShapeDtypeStruct((Bp, Din), jnp.float32),
        grid=(n_tiles,),
        in_specs=in_specs,
        out_specs=pl.BlockSpec((tb, Din), lambda i: (i, 0)),
        compiler_params=pltpu.CompilerParams(
            dimension_semantics=("parallel",),   # megacore-shardable batch axis
            vmem_limit_bytes=48 * 1024 * 1024,   # > v5e's 16 MiB default, < v7x's 64 MiB physical
        ),
    )(xp, *flat_params)

    return out if Bp == B else out[:B]


if __name__ == "__main__":
    key = jax.random.PRNGKey(0)
    pkey, xkey = jax.random.split(key)

    params = init_params(pkey)

    # Small batch of flattened "MNIST" images: (B, 784), values in [0, 1).
    B = 8
    x = jax.random.uniform(xkey, (B, 28 * 28), dtype=jnp.float32)

    fwd = jax.jit(functools.partial(ae_mnist_forward))
    out = fwd(x, params)
    out = jax.block_until_ready(out)

    assert out.shape == (B, 28 * 28), out.shape
    assert bool(jnp.all(out >= 0.0)) and bool(jnp.all(out <= 1.0))  # sigmoid range

    ref = ae_mnist_reference(x, params)
    max_err = float(jnp.max(jnp.abs(out - ref)))
    assert max_err < 1e-2, max_err

    print("KERNEL_OK")
</pallas_src>

<mosaic_0001>
module attributes {stable_mosaic.version = 11 : i64} {
  func.func @fused_ae_kernel(%arg0: i32, %arg1: memref<8x784xf32, #tpu.memory_space<vmem>>, %arg2: memref<784x512xbf16, #tpu.memory_space<vmem>>, %arg3: memref<1x512xf32, #tpu.memory_space<vmem>>, %arg4: memref<512x256xbf16, #tpu.memory_space<vmem>>, %arg5: memref<1x256xf32, #tpu.memory_space<vmem>>, %arg6: memref<256x128xbf16, #tpu.memory_space<vmem>>, %arg7: memref<1x128xf32, #tpu.memory_space<vmem>>, %arg8: memref<128x128xbf16, #tpu.memory_space<vmem>>, %arg9: memref<1x128xf32, #tpu.memory_space<vmem>>, %arg10: memref<128x128xbf16, #tpu.memory_space<vmem>>, %arg11: memref<1x128xf32, #tpu.memory_space<vmem>>, %arg12: memref<128x256xbf16, #tpu.memory_space<vmem>>, %arg13: memref<1x256xf32, #tpu.memory_space<vmem>>, %arg14: memref<256x512xbf16, #tpu.memory_space<vmem>>, %arg15: memref<1x512xf32, #tpu.memory_space<vmem>>, %arg16: memref<512x784xbf16, #tpu.memory_space<vmem>>, %arg17: memref<1x784xf32, #tpu.memory_space<vmem>>, %arg18: memref<8x784xf32, #tpu.memory_space<vmem>>) attributes {dimension_semantics = [#tpu.dimension_semantics<parallel>], iteration_bounds = array<i64: 1>, scalar_prefetch = 0 : i64, scratch_operands = 0 : i64, tpu.core_type = #tpu.core_type<tc>, window_params = [{transform_indices = @transform_0, window_bounds = array<i64: 8, 784>}, {pipeline_mode = #tpu.pipeline_mode<synchronous>, transform_indices = @transform_1, window_bounds = array<i64: 784, 512>}, {pipeline_mode = #tpu.pipeline_mode<synchronous>, transform_indices = @transform_2, window_bounds = array<i64: 1, 512>}, {pipeline_mode = #tpu.pipeline_mode<synchronous>, transform_indices = @transform_3, window_bounds = array<i64: 512, 256>}, {pipeline_mode = #tpu.pipeline_mode<synchronous>, transform_indices = @transform_4, window_bounds = array<i64: 1, 256>}, {pipeline_mode = #tpu.pipeline_mode<synchronous>, transform_indices = @transform_5, window_bounds = array<i64: 256, 128>}, {pipeline_mode = #tpu.pipeline_mode<synchronous>, transform_indices = @transform_6, window_bounds = array<i64: 1, 128>}, {pipeline_mode = #tpu.pipeline_mode<synchronous>, transform_indices = @transform_7, window_bounds = array<i64: 128, 128>}, {pipeline_mode = #tpu.pipeline_mode<synchronous>, transform_indices = @transform_8, window_bounds = array<i64: 1, 128>}, {pipeline_mode = #tpu.pipeline_mode<synchronous>, transform_indices = @transform_9, window_bounds = array<i64: 128, 128>}, {pipeline_mode = #tpu.pipeline_mode<synchronous>, transform_indices = @transform_10, window_bounds = array<i64: 1, 128>}, {pipeline_mode = #tpu.pipeline_mode<synchronous>, transform_indices = @transform_11, window_bounds = array<i64: 128, 256>}, {pipeline_mode = #tpu.pipeline_mode<synchronous>, transform_indices = @transform_12, window_bounds = array<i64: 1, 256>}, {pipeline_mode = #tpu.pipeline_mode<synchronous>, transform_indices = @transform_13, window_bounds = array<i64: 256, 512>}, {pipeline_mode = #tpu.pipeline_mode<synchronous>, transform_indices = @transform_14, window_bounds = array<i64: 1, 512>}, {pipeline_mode = #tpu.pipeline_mode<synchronous>, transform_indices = @transform_15, window_bounds = array<i64: 512, 784>}, {pipeline_mode = #tpu.pipeline_mode<synchronous>, transform_indices = @transform_16, window_bounds = array<i64: 1, 784>}, {transform_indices = @transform_17, window_bounds = array<i64: 8, 784>}]} {
    %c0 = arith.constant 0 : index
    %c0_0 = arith.constant 0 : index
    %0 = vector.load %arg1[%c0, %c0_0] : memref<8x784xf32, #tpu.memory_space<vmem>>, vector<8x784xf32>
    %c0_1 = arith.constant 0 : index
    %c0_2 = arith.constant 0 : index
    %1 = vector.load %arg2[%c0_1, %c0_2] : memref<784x512xbf16, #tpu.memory_space<vmem>>, vector<784x512xbf16>
    %c0_3 = arith.constant 0 : index
    %c0_4 = arith.constant 0 : index
    %2 = vector.load %arg3[%c0_3, %c0_4] : memref<1x512xf32, #tpu.memory_space<vmem>>, vector<1x512xf32>
    %3 = arith.truncf %0 : vector<8x784xf32> to vector<8x784xbf16>
    %cst = arith.constant dense<0.000000e+00> : vector<8x512xf32>
    %4 = tpu.matmul %3, %1, %cst {dimension_numbers = #tpu.dot_dimension_numbers<[1], [0], [0], [1], [0, 0, 1, 1], [], []>} : vector<8x784xbf16>, vector<784x512xbf16>, vector<8x512xf32> -> vector<8x512xf32>
    %5 = vector.broadcast %2 : vector<1x512xf32> to vector<8x512xf32>
    %6 = arith.addf %4, %5 : vector<8x512xf32>
    %cst_5 = arith.constant 0.000000e+00 : f32
    %7 = vector.broadcast %cst_5 : f32 to vector<8x512xf32>
    %8 = arith.maximumf %6, %7 : vector<8x512xf32>
    %9 = math.absf %6 : vector<8x512xf32>
    %cst_6 = arith.constant 0.000000e+00 : f32
    %10 = vector.broadcast %cst_6 : f32 to vector<8x512xf32>
    %11 = arith.subf %10, %9 : vector<8x512xf32>
    %12 = math.exp %11 : vector<8x512xf32>
    %13 = math.log1p %12 : vector<8x512xf32>
    %14 = arith.addf %8, %13 : vector<8x512xf32>
    %c0_7 = arith.constant 0 : index
    %c0_8 = arith.constant 0 : index
    %15 = vector.load %arg4[%c0_7, %c0_8] : memref<512x256xbf16, #tpu.memory_space<vmem>>, vector<512x256xbf16>
    %c0_9 = arith.constant 0 : index
    %c0_10 = arith.constant 0 : index
    %16 = vector.load %arg5[%c0_9, %c0_10] : memref<1x256xf32, #tpu.memory_space<vmem>>, vector<1x256xf32>
    %17 = arith.truncf %14 : vector<8x512xf32> to vector<8x512xbf16>
    %cst_11 = arith.constant dense<0.000000e+00> : vector<8x256xf32>
    %18 = tpu.matmul %17, %15, %cst_11 {dimension_numbers = #tpu.dot_dimension_numbers<[1], [0], [0], [1], [0, 0, 1, 1], [], []>} : vector<8x512xbf16>, vector<512x256xbf16>, vector<8x256xf32> -> vector<8x256xf32>
    %19 = vector.broadcast %16 : vector<1x256xf32> to vector<8x256xf32>
    %20 = arith.addf %18, %19 : vector<8x256xf32>
    %cst_12 = arith.constant 0.000000e+00 : f32
    %21 = vector.broadcast %cst_12 : f32 to vector<8x256xf32>
    %22 = arith.maximumf %20, %21 : vector<8x256xf32>
    %23 = math.absf %20 : vector<8x256xf32>
    %cst_13 = arith.constant 0.000000e+00 : f32
    %24 = vector.broadcast %cst_13 : f32 to vector<8x256xf32>
    %25 = arith.subf %24, %23 : vector<8x256xf32>
    %26 = math.exp %25 : vector<8x256xf32>
    %27 = math.log1p %26 : vector<8x256xf32>
    %28 = arith.addf %22, %27 : vector<8x256xf32>
    %c0_14 = arith.constant 0 : index
    %c0_15 = arith.constant 0 : index
    %29 = vector.load %arg6[%c0_14, %c0_15] : memref<256x128xbf16, #tpu.memory_space<vmem>>, vector<256x128xbf16>
    %c0_16 = arith.constant 0 : index
    %c0_17 = arith.constant 0 : index
    %30 = vector.load %arg7[%c0_16, %c0_17] : memref<1x128xf32, #tpu.memory_space<vmem>>, vector<1x128xf32>
    %31 = arith.truncf %28 : vector<8x256xf32> to vector<8x256xbf16>
    %cst_18 = arith.constant dense<0.000000e+00> : vector<8x128xf32>
    %32 = tpu.matmul %31, %29, %cst_18 {dimension_numbers = #tpu.dot_dimension_numbers<[1], [0], [0], [1], [0, 0, 1, 1], [], []>} : vector<8x256xbf16>, vector<256x128xbf16>, vector<8x128xf32> -> vector<8x128xf32>
    %33 = vector.broadcast %30 : vector<1x128xf32> to vector<8x128xf32>
    %34 = arith.addf %32, %33 : vector<8x128xf32>
    %cst_19 = arith.constant 0.000000e+00 : f32
    %35 = vector.broadcast %cst_19 : f32 to vector<8x128xf32>
    %36 = arith.maximumf %34, %35 : vector<8x128xf32>
    %37 = math.absf %34 : vector<8x128xf32>
    %cst_20 = arith.constant 0.000000e+00 : f32
    %38 = vector.broadcast %cst_20 : f32 to vector<8x128xf32>
    %39 = arith.subf %38, %37 : vector<8x128xf32>
    %40 = math.exp %39 : vector<8x128xf32>
    %41 = math.log1p %40 : vector<8x128xf32>
    %42 = arith.addf %36, %41 : vector<8x128xf32>
    %c0_21 = arith.constant 0 : index
    %c0_22 = arith.constant 0 : index
    %43 = vector.load %arg8[%c0_21, %c0_22] : memref<128x128xbf16, #tpu.memory_space<vmem>>, vector<128x128xbf16>
    %c0_23 = arith.constant 0 : index
    %c0_24 = arith.constant 0 : index
    %44 = vector.load %arg9[%c0_23, %c0_24] : memref<1x128xf32, #tpu.memory_space<vmem>>, vector<1x128xf32>
    %45 = arith.truncf %42 : vector<8x128xf32> to vector<8x128xbf16>
    %cst_25 = arith.constant dense<0.000000e+00> : vector<8x128xf32>
    %46 = tpu.matmul %45, %43, %cst_25 {dimension_numbers = #tpu.dot_dimension_numbers<[1], [0], [0], [1], [0, 0, 1, 1], [], []>} : vector<8x128xbf16>, vector<128x128xbf16>, vector<8x128xf32> -> vector<8x128xf32>
    %47 = vector.broadcast %44 : vector<1x128xf32> to vector<8x128xf32>
    %48 = arith.addf %46, %47 : vector<8x128xf32>
    %cst_26 = arith.constant 0.000000e+00 : f32
    %49 = vector.broadcast %cst_26 : f32 to vector<8x128xf32>
    %50 = arith.maximumf %48, %49 : vector<8x128xf32>
    %51 = math.absf %48 : vector<8x128xf32>
    %cst_27 = arith.constant 0.000000e+00 : f32
    %52 = vector.broadcast %cst_27 : f32 to vector<8x128xf32>
    %53 = arith.subf %52, %51 : vector<8x128xf32>
    %54 = math.exp %53 : vector<8x128xf32>
    %55 = math.log1p %54 : vector<8x128xf32>
    %56 = arith.addf %50, %55 : vector<8x128xf32>
    %c0_28 = arith.constant 0 : index
    %c0_29 = arith.constant 0 : index
    %57 = vector.load %arg10[%c0_28, %c0_29] : memref<128x128xbf16, #tpu.memory_space<vmem>>, vector<128x128xbf16>
    %c0_30 = arith.constant 0 : index
    %c0_31 = arith.constant 0 : index
    %58 = vector.load %arg11[%c0_30, %c0_31] : memref<1x128xf32, #tpu.memory_space<vmem>>, vector<1x128xf32>
    %59 = arith.truncf %56 : vector<8x128xf32> to vector<8x128xbf16>
    %cst_32 = arith.constant dense<0.000000e+00> : vector<8x128xf32>
    %60 = tpu.matmul %59, %57, %cst_32 {dimension_numbers = #tpu.dot_dimension_numbers<[1], [0], [0], [1], [0, 0, 1, 1], [], []>} : vector<8x128xbf16>, vector<128x128xbf16>, vector<8x128xf32> -> vector<8x128xf32>
    %61 = vector.broadcast %58 : vector<1x128xf32> to vector<8x128xf32>
    %62 = arith.addf %60, %61 : vector<8x128xf32>
    %cst_33 = arith.constant 0.000000e+00 : f32
    %63 = vector.broadcast %cst_33 : f32 to vector<8x128xf32>
    %64 = arith.maximumf %62, %63 : vector<8x128xf32>
    %65 = math.absf %62 : vector<8x128xf32>
    %cst_34 = arith.constant 0.000000e+00 : f32
    %66 = vector.broadcast %cst_34 : f32 to vector<8x128xf32>
    %67 = arith.subf %66, %65 : vector<8x128xf32>
    %68 = math.exp %67 : vector<8x128xf32>
    %69 = math.log1p %68 : vector<8x128xf32>
    %70 = arith.addf %64, %69 : vector<8x128xf32>
    %c0_35 = arith.constant 0 : index
    %c0_36 = arith.constant 0 : index
    %71 = vector.load %arg12[%c0_35, %c0_36] : memref<128x256xbf16, #tpu.memory_space<vmem>>, vector<128x256xbf16>
    %c0_37 = arith.constant 0 : index
    %c0_38 = arith.constant 0 : index
    %72 = vector.load %arg13[%c0_37, %c0_38] : memref<1x256xf32, #tpu.memory_space<vmem>>, vector<1x256xf32>
    %73 = arith.truncf %70 : vector<8x128xf32> to vector<8x128xbf16>
    %cst_39 = arith.constant dense<0.000000e+00> : vector<8x256xf32>
    %74 = tpu.matmul %73, %71, %cst_39 {dimension_numbers = #tpu.dot_dimension_numbers<[1], [0], [0], [1], [0, 0, 1, 1], [], []>} : vector<8x128xbf16>, vector<128x256xbf16>, vector<8x256xf32> -> vector<8x256xf32>
    %75 = vector.broadcast %72 : vector<1x256xf32> to vector<8x256xf32>
    %76 = arith.addf %74, %75 : vector<8x256xf32>
    %cst_40 = arith.constant 0.000000e+00 : f32
    %77 = vector.broadcast %cst_40 : f32 to vector<8x256xf32>
    %78 = arith.maximumf %76, %77 : vector<8x256xf32>
    %79 = math.absf %76 : vector<8x256xf32>
    %cst_41 = arith.constant 0.000000e+00 : f32
    %80 = vector.broadcast %cst_41 : f32 to vector<8x256xf32>
    %81 = arith.subf %80, %79 : vector<8x256xf32>
    %82 = math.exp %81 : vector<8x256xf32>
    %83 = math.log1p %82 : vector<8x256xf32>
    %84 = arith.addf %78, %83 : vector<8x256xf32>
    %c0_42 = arith.constant 0 : index
    %c0_43 = arith.constant 0 : index
    %85 = vector.load %arg14[%c0_42, %c0_43] : memref<256x512xbf16, #tpu.memory_space<vmem>>, vector<256x512xbf16>
    %c0_44 = arith.constant 0 : index
    %c0_45 = arith.constant 0 : index
    %86 = vector.load %arg15[%c0_44, %c0_45] : memref<1x512xf32, #tpu.memory_space<vmem>>, vector<1x512xf32>
    %87 = arith.truncf %84 : vector<8x256xf32> to vector<8x256xbf16>
    %cst_46 = arith.constant dense<0.000000e+00> : vector<8x512xf32>
    %88 = tpu.matmul %87, %85, %cst_46 {dimension_numbers = #tpu.dot_dimension_numbers<[1], [0], [0], [1], [0, 0, 1, 1], [], []>} : vector<8x256xbf16>, vector<256x512xbf16>, vector<8x512xf32> -> vector<8x512xf32>
    %89 = vector.broadcast %86 : vector<1x512xf32> to vector<8x512xf32>
    %90 = arith.addf %88, %89 : vector<8x512xf32>
    %cst_47 = arith.constant 0.000000e+00 : f32
    %91 = vector.broadcast %cst_47 : f32 to vector<8x512xf32>
    %92 = arith.maximumf %90, %91 : vector<8x512xf32>
    %93 = math.absf %90 : vector<8x512xf32>
    %cst_48 = arith.constant 0.000000e+00 : f32
    %94 = vector.broadcast %cst_48 : f32 to vector<8x512xf32>
    %95 = arith.subf %94, %93 : vector<8x512xf32>
    %96 = math.exp %95 : vector<8x512xf32>
    %97 = math.log1p %96 : vector<8x512xf32>
    %98 = arith.addf %92, %97 : vector<8x512xf32>
    %c0_49 = arith.constant 0 : index
    %c0_50 = arith.constant 0 : index
    %99 = vector.load %arg16[%c0_49, %c0_50] : memref<512x784xbf16, #tpu.memory_space<vmem>>, vector<512x784xbf16>
    %c0_51 = arith.constant 0 : index
    %c0_52 = arith.constant 0 : index
    %100 = vector.load %arg17[%c0_51, %c0_52] : memref<1x784xf32, #tpu.memory_space<vmem>>, vector<1x784xf32>
    %101 = arith.truncf %98 : vector<8x512xf32> to vector<8x512xbf16>
    %cst_53 = arith.constant dense<0.000000e+00> : vector<8x784xf32>
    %102 = tpu.matmul %101, %99, %cst_53 {dimension_numbers = #tpu.dot_dimension_numbers<[1], [0], [0], [1], [0, 0, 1, 1], [], []>} : vector<8x512xbf16>, vector<512x784xbf16>, vector<8x784xf32> -> vector<8x784xf32>
    %103 = vector.broadcast %100 : vector<1x784xf32> to vector<8x784xf32>
    %104 = arith.addf %102, %103 : vector<8x784xf32>
    %105 = arith.negf %104 : vector<8x784xf32>
    %106 = math.exp %105 : vector<8x784xf32>
    %cst_54 = arith.constant 1.000000e+00 : f32
    %107 = vector.broadcast %cst_54 : f32 to vector<8x784xf32>
    %108 = arith.addf %107, %106 : vector<8x784xf32>
    %109 = arith.divf %107, %108 : vector<8x784xf32>
    %c0_55 = arith.constant 0 : index
    %c0_56 = arith.constant 0 : index
    %110 = vector.load %arg18[%c0_55, %c0_56] : memref<8x784xf32, #tpu.memory_space<vmem>>, vector<8x784xf32>
    tpu.vector_store %arg18[%c0_55, %c0_56], %109 {strides = array<i32>} : memref<8x784xf32, #tpu.memory_space<vmem>>, vector<8x784xf32>,
    return
  }
  func.func @transform_0(%arg0: i32) -> (i32, i32) {
    %c0_i32 = arith.constant 0 : i32
    %c0_i32_0 = arith.constant 0 : i32
    return %arg0, %c0_i32 : i32, i32
  }
  func.func @transform_1(%arg0: i32) -> (i32, i32) {
    %c0_i32 = arith.constant 0 : i32
    %c0_i32_0 = arith.constant 0 : i32
    %c0_i32_1 = arith.constant 0 : i32
    return %c0_i32, %c0_i32_0 : i32, i32
  }
  func.func @transform_2(%arg0: i32) -> (i32, i32) {
    %c0_i32 = arith.constant 0 : i32
    %c0_i32_0 = arith.constant 0 : i32
    %c0_i32_1 = arith.constant 0 : i32
    return %c0_i32, %c0_i32_0 : i32, i32
  }
  func.func @transform_3(%arg0: i32) -> (i32, i32) {
    %c0_i32 = arith.constant 0 : i32
    %c0_i32_0 = arith.constant 0 : i32
    %c0_i32_1 = arith.constant 0 : i32
    return %c0_i32, %c0_i32_0 : i32, i32
  }
  func.func @transform_4(%arg0: i32) -> (i32, i32) {
    %c0_i32 = arith.constant 0 : i32
    %c0_i32_0 = arith.constant 0 : i32
    %c0_i32_1 = arith.constant 0 : i32
    return %c0_i32, %c0_i32_0 : i32, i32
  }
  func.func @transform_5(%arg0: i32) -> (i32, i32) {
    %c0_i32 = arith.constant 0 : i32
    %c0_i32_0 = arith.constant 0 : i32
    %c0_i32_1 = arith.constant 0 : i32
    return %c0_i32, %c0_i32_0 : i32, i32
  }
  func.func @transform_6(%arg0: i32) -> (i32, i32) {
    %c0_i32 = arith.constant 0 : i32
    %c0_i32_0 = arith.constant 0 : i32
    %c0_i32_1 = arith.constant 0 : i32
    return %c0_i32, %c0_i32_0 : i32, i32
  }
  func.func @transform_7(%arg0: i32) -> (i32, i32) {
    %c0_i32 = arith.constant 0 : i32
    %c0_i32_0 = arith.constant 0 : i32
    %c0_i32_1 = arith.constant 0 : i32
    return %c0_i32, %c0_i32_0 : i32, i32
  }
  func.func @transform_8(%arg0: i32) -> (i32, i32) {
    %c0_i32 = arith.constant 0 : i32
    %c0_i32_0 = arith.constant 0 : i32
    %c0_i32_1 = arith.constant 0 : i32
    return %c0_i32, %c0_i32_0 : i32, i32
  }
  func.func @transform_9(%arg0: i32) -> (i32, i32) {
    %c0_i32 = arith.constant 0 : i32
    %c0_i32_0 = arith.constant 0 : i32
    %c0_i32_1 = arith.constant 0 : i32
    return %c0_i32, %c0_i32_0 : i32, i32
  }
  func.func @transform_10(%arg0: i32) -> (i32, i32) {
    %c0_i32 = arith.constant 0 : i32
    %c0_i32_0 = arith.constant 0 : i32
    %c0_i32_1 = arith.constant 0 : i32
    return %c0_i32, %c0_i32_0 : i32, i32
  }
  func.func @transform_11(%arg0: i32) -> (i32, i32) {
    %c0_i32 = arith.constant 0 : i32
    %c0_i32_0 = arith.constant 0 : i32
    %c0_i32_1 = arith.constant 0 : i32
    return %c0_i32, %c0_i32_0 : i32, i32
  }
  func.func @transform_12(%arg0: i32) -> (i32, i32) {
    %c0_i32 = arith.constant 0 : i32
    %c0_i32_0 = arith.constant 0 : i32
    %c0_i32_1 = arith.constant 0 : i32
    return %c0_i32, %c0_i32_0 : i32, i32
  }
  func.func @transform_13(%arg0: i32) -> (i32, i32) {
    %c0_i32 = arith.constant 0 : i32
    %c0_i32_0 = arith.constant 0 : i32
    %c0_i32_1 = arith.constant 0 : i32
    return %c0_i32, %c0_i32_0 : i32, i32
  }
  func.func @transform_14(%arg0: i32) -> (i32, i32) {
    %c0_i32 = arith.constant 0 : i32
    %c0_i32_0 = arith.constant 0 : i32
    %c0_i32_1 = arith.constant 0 : i32
    return %c0_i32, %c0_i32_0 : i32, i32
  }
  func.func @transform_15(%arg0: i32) -> (i32, i32) {
    %c0_i32 = arith.constant 0 : i32
    %c0_i32_0 = arith.constant 0 : i32
    %c0_i32_1 = arith.constant 0 : i32
    return %c0_i32, %c0_i32_0 : i32, i32
  }
  func.func @transform_16(%arg0: i32) -> (i32, i32) {
    %c0_i32 = arith.constant 0 : i32
    %c0_i32_0 = arith.constant 0 : i32
    %c0_i32_1 = arith.constant 0 : i32
    return %c0_i32, %c0_i32_0 : i32, i32
  }
  func.func @transform_17(%arg0: i32) -> (i32, i32) {
    %c0_i32 = arith.constant 0 : i32
    %c0_i32_0 = arith.constant 0 : i32
    return %arg0, %c0_i32 : i32, i32
  }
}

</mosaic_0001>

<llo_original>
// kernel: ae_mnist_forward.1
$region0: #{ae_mnist_forward.1}
  #allocation0 [shape = 'u32[]', space=smem, size = 0x4, offset = 0x4, fixed_abs, tag = 'smem constant byte address 0x4 - core index']
  #allocation1 [shape = 'u32[144,128]{1,0:T(1,128)}', space=vmem, size = 0x12000, scoped, tag = 'internal scratch']
  %s0 = inlined_call_operand.vmem [shape: f32[8,784], index: 0, kind: input, shape index: {}]
  %s1 = inlined_call_operand.vmem [shape: bf16[784,512], index: 1, kind: input, shape index: {}]
  %s2 = inlined_call_operand.vmem [shape: f32[1,512], index: 2, kind: input, shape index: {}]
  %s3 = inlined_call_operand.vmem [shape: bf16[512,256], index: 3, kind: input, shape index: {}]
  %s4 = inlined_call_operand.vmem [shape: f32[1,256], index: 4, kind: input, shape index: {}]
  %s5 = inlined_call_operand.vmem [shape: bf16[256,128], index: 5, kind: input, shape index: {}]
  %s6 = inlined_call_operand.vmem [shape: f32[1,128], index: 6, kind: input, shape index: {}]
  %s7 = inlined_call_operand.vmem [shape: bf16[128,128], index: 7, kind: input, shape index: {}]
  %s8 = inlined_call_operand.vmem [shape: f32[1,128], index: 8, kind: input, shape index: {}]
  %s9 = inlined_call_operand.vmem [shape: bf16[128,128], index: 9, kind: input, shape index: {}]
  %s10 = inlined_call_operand.vmem [shape: f32[1,128], index: 10, kind: input, shape index: {}]
  %s11 = inlined_call_operand.vmem [shape: bf16[128,256], index: 11, kind: input, shape index: {}]
  %s12 = inlined_call_operand.vmem [shape: f32[1,256], index: 12, kind: input, shape index: {}]
  %s13 = inlined_call_operand.vmem [shape: bf16[256,512], index: 13, kind: input, shape index: {}]
  %s14 = inlined_call_operand.vmem [shape: f32[1,512], index: 14, kind: input, shape index: {}]
  %s15 = inlined_call_operand.vmem [shape: bf16[512,784], index: 15, kind: input, shape index: {}]
  %s16 = inlined_call_operand.vmem [shape: f32[1,784], index: 16, kind: input, shape index: {}]
  %s17 = inlined_call_operand.hbm [shape: f32[8,784], index: 17, kind: output, shape index: {}]
  %s18 = sld [smem:[#allocation0]]
  $region78: #{ae_mnist_forward.1} parent=0
    _
  %s20 = ssub.s32 1, %s18
  %s21 = scalar_select 0, %s20, %s18
  $region1: #{ae_mnist_forward.1} parent=0
    #allocation2 [shape = 'u8[28672]{0}', space=vmem, size = 0x7000, scoped, tag = 'output window, operand 0, single buffered']
    #allocation3 [shape = 's32[1]{0}', space=sflag, size = 0x4, scoped, tag = 'scoped memory for ae_mnist_forward.1']
    %22 = vsyncpa [#allocation3], 0
    // Predicated region
    $region2: #{ae_mnist_forward.1} parent=1 // pred_check
      _
    $region3: #{ae_mnist_forward.1} parent=1 // pred_check_branch
      %24 = sbr.rel (0) target = $region5
    $region4: #{ae_mnist_forward.1} parent=1 // pred_region
      _
    $region5: #{ae_mnist_forward.1} parent=1 // pred_fallthru
      _
    // Predicated region
    $region6: #{ae_mnist_forward.1} parent=1 // pred_check
      _
    $region7: #{ae_mnist_forward.1} parent=1 // pred_check_branch
      %26 = sbr.rel (0) target = $region9
    $region8: #{ae_mnist_forward.1} parent=1 // pred_region
      _
    $region9: #{ae_mnist_forward.1} parent=1 // pred_fallthru
      _
    // Predicated region
    $region10: #{ae_mnist_forward.1} parent=1 // pred_check
      _
    $region11: #{ae_mnist_forward.1} parent=1 // pred_check_branch
      %28 = sbr.rel (0) target = $region13
    $region12: #{ae_mnist_forward.1} parent=1 // pred_region
      _
    $region13: #{ae_mnist_forward.1} parent=1 // pred_fallthru
      _
    // Predicated region
    $region14: #{ae_mnist_forward.1} parent=1 // pred_check
      _
    $region15: #{ae_mnist_forward.1} parent=1 // pred_check_branch
      %30 = sbr.rel (0) target = $region17
    $region16: #{ae_mnist_forward.1} parent=1 // pred_region
      _
    $region17: #{ae_mnist_forward.1} parent=1 // pred_fallthru
      _
    // Predicated region
    $region18: #{ae_mnist_forward.1} parent=1 // pred_check
      _
    $region19: #{ae_mnist_forward.1} parent=1 // pred_check_branch
      %32 = sbr.rel (0) target = $region21
    $region20: #{ae_mnist_forward.1} parent=1 // pred_region
      _
    $region21: #{ae_mnist_forward.1} parent=1 // pred_fallthru
      _
    // Predicated region
    $region22: #{ae_mnist_forward.1} parent=1 // pred_check
      _
    $region23: #{ae_mnist_forward.1} parent=1 // pred_check_branch
      %34 = sbr.rel (0) target = $region25
    $region24: #{ae_mnist_forward.1} parent=1 // pred_region
      _
    $region25: #{ae_mnist_forward.1} parent=1 // pred_fallthru
      _
    // Predicated region
    $region26: #{ae_mnist_forward.1} parent=1 // pred_check
      _
    $region27: #{ae_mnist_forward.1} parent=1 // pred_check_branch
      %36 = sbr.rel (0) target = $region29
    $region28: #{ae_mnist_forward.1} parent=1 // pred_region
      _
    $region29: #{ae_mnist_forward.1} parent=1 // pred_fallthru
      _
    // Predicated region
    $region30: #{ae_mnist_forward.1} parent=1 // pred_check
      _
    $region31: #{ae_mnist_forward.1} parent=1 // pred_check_branch
      %38 = sbr.rel (0) target = $region33
    $region32: #{ae_mnist_forward.1} parent=1 // pred_region
      _
    $region33: #{ae_mnist_forward.1} parent=1 // pred_fallthru
      _
    // Predicated region
    $region34: #{ae_mnist_forward.1} parent=1 // pred_check
      _
    $region35: #{ae_mnist_forward.1} parent=1 // pred_check_branch
      %40 = sbr.rel (0) target = $region37
    $region36: #{ae_mnist_forward.1} parent=1 // pred_region
      _
    $region37: #{ae_mnist_forward.1} parent=1 // pred_fallthru
      _
    // Predicated region
    $region38: #{ae_mnist_forward.1} parent=1 // pred_check
      _
    $region39: #{ae_mnist_forward.1} parent=1 // pred_check_branch
      %42 = sbr.rel (0) target = $region41
    $region40: #{ae_mnist_forward.1} parent=1 // pred_region
      _
    $region41: #{ae_mnist_forward.1} parent=1 // pred_fallthru
      _
    // Predicated region
    $region42: #{ae_mnist_forward.1} parent=1 // pred_check
      _
    $region43: #{ae_mnist_forward.1} parent=1 // pred_check_branch
      %44 = sbr.rel (0) target = $region45
    $region44: #{ae_mnist_forward.1} parent=1 // pred_region
      _
    $region45: #{ae_mnist_forward.1} parent=1 // pred_fallthru
      _
    // Predicated region
    $region46: #{ae_mnist_forward.1} parent=1 // pred_check
      _
    $region47: #{ae_mnist_forward.1} parent=1 // pred_check_branch
      %46 = sbr.rel (0) target = $region49
    $region48: #{ae_mnist_forward.1} parent=1 // pred_region
      _
    $region49: #{ae_mnist_forward.1} parent=1 // pred_fallthru
      _
    // Predicated region
    $region50: #{ae_mnist_forward.1} parent=1 // pred_check
      _
    $region51: #{ae_mnist_forward.1} parent=1 // pred_check_branch
      %48 = sbr.rel (0) target = $region53
    $region52: #{ae_mnist_forward.1} parent=1 // pred_region
      _
    $region53: #{ae_mnist_forward.1} parent=1 // pred_fallthru
      _
    // Predicated region
    $region54: #{ae_mnist_forward.1} parent=1 // pred_check
      _
    $region55: #{ae_mnist_forward.1} parent=1 // pred_check_branch
      %50 = sbr.rel (0) target = $region57
    $region56: #{ae_mnist_forward.1} parent=1 // pred_region
      _
    $region57: #{ae_mnist_forward.1} parent=1 // pred_fallthru
      _
    // Predicated region
    $region58: #{ae_mnist_forward.1} parent=1 // pred_check
      _
    $region59: #{ae_mnist_forward.1} parent=1 // pred_check_branch
      %52 = sbr.rel (0) target = $region61
    $region60: #{ae_mnist_forward.1} parent=1 // pred_region
      _
    $region61: #{ae_mnist_forward.1} parent=1 // pred_fallthru
      _
    // Predicated region
    $region62: #{ae_mnist_forward.1} parent=1 // pred_check
      _
    $region63: #{ae_mnist_forward.1} parent=1 // pred_check_branch
      %54 = sbr.rel (0) target = $region65
    $region64: #{ae_mnist_forward.1} parent=1 // pred_region
      _
    $region65: #{ae_mnist_forward.1} parent=1 // pred_fallthru
      _
    // Predicated region
    $region66: #{ae_mnist_forward.1} parent=1 // pred_check
      _
    $region67: #{ae_mnist_forward.1} parent=1 // pred_check_branch
      %56 = sbr.rel (0) target = $region69
    $region68: #{ae_mnist_forward.1} parent=1 // pred_region
      _
    $region69: #{ae_mnist_forward.1} parent=1 // pred_fallthru
      _
    %v58 = vld [vmem:[%s0] sm:$0xff]
    %v59 = vld [vmem:[%s0 + $0x8] sm:$0xff]
    %v60 = vld [vmem:[%s0 + $0x10] sm:$0xff]
    %v61 = vld [vmem:[%s0 + $0x18] sm:$0xff]
    %v62 = vld [vmem:[%s0 + $0x20] sm:$0xff]
    %v63 = vld [vmem:[%s0 + $0x28] sm:$0xff]
    %v64 = vld [vmem:[%s0 + $0x30] sm:$0xff]
    %v65 = vld [vmem:[%s1] sm:$0xff]
    %v66 = vld [vmem:[%s1 + $0x8] sm:$0xff]
    %v67 = vld [vmem:[%s1 + $0x10] sm:$0xff]
    %v68 = vld [vmem:[%s1 + $0x18] sm:$0xff]
    %v69 = vld [vmem:[%s1 + $0x20] sm:$0xff]
    %v70 = vld [vmem:[%s1 + $0x28] sm:$0xff]
    %v71 = vld [vmem:[%s1 + $0x30] sm:$0xff]
    %v72 = vld [vmem:[%s1 + $0x38] sm:$0xff]
    %v73 = vld [vmem:[%s1 + $0x40] sm:$0xff]
    %v74 = vld [vmem:[%s1 + $0x48] sm:$0xff]
    %v75 = vld [vmem:[%s1 + $0x50] sm:$0xff]
    %v76 = vld [vmem:[%s1 + $0x58] sm:$0xff]
    %v77 = vld [vmem:[%s1 + $0x60] sm:$0xff]
    %v78 = vld [vmem:[%s1 + $0x68] sm:$0xff]
    %v79 = vld [vmem:[%s1 + $0x70] sm:$0xff]
    %v80 = vld [vmem:[%s1 + $0x78] sm:$0xff]
    %v81 = vld [vmem:[%s1 + $0x80] sm:$0xff]
    %v82 = vld [vmem:[%s1 + $0x88] sm:$0xff]
    %v83 = vld [vmem:[%s1 + $0x90] sm:$0xff]
    %v84 = vld [vmem:[%s1 + $0x98] sm:$0xff]
    %v85 = vld [vmem:[%s1 + $0xa0] sm:$0xff]
    %v86 = vld [vmem:[%s1 + $0xa8] sm:$0xff]
    %v87 = vld [vmem:[%s1 + $0xb0] sm:$0xff]
    %v88 = vld [vmem:[%s1 + $0xb8] sm:$0xff]
    %v89 = vld [vmem:[%s1 + $0xc0] sm:$0xff]
    %v90 = vld [vmem:[%s1 + $0xc8] sm:$0xff]
    %v91 = vld [vmem:[%s1 + $0xd0] sm:$0xff]
    %v92 = vld [vmem:[%s1 + $0xd8] sm:$0xff]
    %v93 = vld [vmem:[%s1 + $0xe0] sm:$0xff]
    %v94 = vld [vmem:[%s1 + $0xe8] sm:$0xff]
    %v95 = vld [vmem:[%s1 + $0xf0] sm:$0xff]
    %v96 = vld [vmem:[%s1 + $0xf8] sm:$0xff]
    %v97 = vld [vmem:[%s1 + $0x100] sm:$0xff]
    %v98 = vld [vmem:[%s1 + $0x108] sm:$0xff]
    %v99 = vld [vmem:[%s1 + $0x110] sm:$0xff]
    %v100 = vld [vmem:[%s1 + $0x118] sm:$0xff]
    %v101 = vld [vmem:[%s1 + $0x120] sm:$0xff]
    %v102 = vld [vmem:[%s1 + $0x128] sm:$0xff]
    %v103 = vld [vmem:[%s1 + $0x130] sm:$0xff]
    %v104 = vld [vmem:[%s1 + $0x138] sm:$0xff]
    %v105 = vld [vmem:[%s1 + $0x140] sm:$0xff]
    %v106 = vld [vmem:[%s1 + $0x148] sm:$0xff]
    %v107 = vld [vmem:[%s1 + $0x150] sm:$0xff]
    %v108 = vld [vmem:[%s1 + $0x158] sm:$0xff]
    %v109 = vld [vmem:[%s1 + $0x160] sm:$0xff]
    %v110 = vld [vmem:[%s1 + $0x168] sm:$0xff]
    %v111 = vld [vmem:[%s1 + $0x170] sm:$0xff]
    %v112 = vld [vmem:[%s1 + $0x178] sm:$0xff]
    %v113 = vld [vmem:[%s1 + $0x180] sm:$0xff]
    %v114 = vld [vmem:[%s1 + $0x188] sm:$0xff]
    %v115 = vld [vmem:[%s1 + $0x190] sm:$0xff]
    %v116 = vld [vmem:[%s1 + $0x198] sm:$0xff]
    %v117 = vld [vmem:[%s1 + $0x1a0] sm:$0xff]
    %v118 = vld [vmem:[%s1 + $0x1a8] sm:$0xff]
    %v119 = vld [vmem:[%s1 + $0x1b0] sm:$0xff]
    %v120 = vld [vmem:[%s1 + $0x1b8] sm:$0xff]
    %v121 = vld [vmem:[%s1 + $0x1c0] sm:$0xff]
    %v122 = vld [vmem:[%s1 + $0x1c8] sm:$0xff]
    %v123 = vld [vmem:[%s1 + $0x1d0] sm:$0xff]
    %v124 = vld [vmem:[%s1 + $0x1d8] sm:$0xff]
    %v125 = vld [vmem:[%s1 + $0x1e0] sm:$0xff]
    %v126 = vld [vmem:[%s1 + $0x1e8] sm:$0xff]
    %v127 = vld [vmem:[%s1 + $0x1f0] sm:$0xff]
    %v128 = vld [vmem:[%s1 + $0x1f8] sm:$0xff]
    %v129 = vld [vmem:[%s1 + $0x200] sm:$0xff]
    %v130 = vld [vmem:[%s1 + $0x208] sm:$0xff]
    %v131 = vld [vmem:[%s1 + $0x210] sm:$0xff]
    %v132 = vld [vmem:[%s1 + $0x218] sm:$0xff]
    %v133 = vld [vmem:[%s1 + $0x220] sm:$0xff]
    %v134 = vld [vmem:[%s1 + $0x228] sm:$0xff]
    %v135 = vld [vmem:[%s1 + $0x230] sm:$0xff]
    %v136 = vld [vmem:[%s1 + $0x238] sm:$0xff]
    %v137 = vld [vmem:[%s1 + $0x240] sm:$0xff]
    %v138 = vld [vmem:[%s1 + $0x248] sm:$0xff]
    %v139 = vld [vmem:[%s1 + $0x250] sm:$0xff]
    %v140 = vld [vmem:[%s1 + $0x258] sm:$0xff]
    %v141 = vld [vmem:[%s1 + $0x260] sm:$0xff]
    %v142 = vld [vmem:[%s1 + $0x268] sm:$0xff]
    %v143 = vld [vmem:[%s1 + $0x270] sm:$0xff]
    %v144 = vld [vmem:[%s1 + $0x278] sm:$0xff]
    %v145 = vld [vmem:[%s1 + $0x280] sm:$0xff]
    %v146 = vld [vmem:[%s1 + $0x288] sm:$0xff]
    %v147 = vld [vmem:[%s1 + $0x290] sm:$0xff]
    %v148 = vld [vmem:[%s1 + $0x298] sm:$0xff]
    %v149 = vld [vmem:[%s1 + $0x2a0] sm:$0xff]
    %v150 = vld [vmem:[%s1 + $0x2a8] sm:$0xff]
    %v151 = vld [vmem:[%s1 + $0x2b0] sm:$0xff]
    %v152 = vld [vmem:[%s1 + $0x2b8] sm:$0xff]
    %v153 = vld [vmem:[%s1 + $0x2c0] sm:$0xff]
    %v154 = vld [vmem:[%s1 + $0x2c8] sm:$0xff]
    %v155 = vld [vmem:[%s1 + $0x2d0] sm:$0xff]
    %v156 = vld [vmem:[%s1 + $0x2d8] sm:$0xff]
    %v157 = vld [vmem:[%s1 + $0x2e0] sm:$0xff]
    %v158 = vld [vmem:[%s1 + $0x2e8] sm:$0xff]
    %v159 = vld [vmem:[%s1 + $0x2f0] sm:$0xff]
    %v160 = vld [vmem:[%s1 + $0x2f8] sm:$0xff]
    %v161 = vld [vmem:[%s1 + $0x300] sm:$0xff]
    %v162 = vld [vmem:[%s1 + $0x308] sm:$0xff]
    %v163 = vld [vmem:[%s1 + $0x310] sm:$0xff]
    %v164 = vld [vmem:[%s1 + $0x318] sm:$0xff]
    %v165 = vld [vmem:[%s1 + $0x320] sm:$0xff]
    %v166 = vld [vmem:[%s1 + $0x328] sm:$0xff]
    %v167 = vld [vmem:[%s1 + $0x330] sm:$0xff]
    %v168 = vld [vmem:[%s1 + $0x338] sm:$0xff]
    %v169 = vld [vmem:[%s1 + $0x340] sm:$0xff]
    %v170 = vld [vmem:[%s1 + $0x348] sm:$0xff]
    %v171 = vld [vmem:[%s1 + $0x350] sm:$0xff]
    %v172 = vld [vmem:[%s1 + $0x358] sm:$0xff]
    %v173 = vld [vmem:[%s1 + $0x360] sm:$0xff]
    %v174 = vld [vmem:[%s1 + $0x368] sm:$0xff]
    %v175 = vld [vmem:[%s1 + $0x370] sm:$0xff]
    %v176 = vld [vmem:[%s1 + $0x378] sm:$0xff]
    %v177 = vld [vmem:[%s1 + $0x380] sm:$0xff]
    %v178 = vld [vmem:[%s1 + $0x388] sm:$0xff]
    %v179 = vld [vmem:[%s1 + $0x390] sm:$0xff]
    %v180 = vld [vmem:[%s1 + $0x398] sm:$0xff]
    %v181 = vld [vmem:[%s1 + $0x3a0] sm:$0xff]
    %v182 = vld [vmem:[%s1 + $0x3a8] sm:$0xff]
    %v183 = vld [vmem:[%s1 + $0x3b0] sm:$0xff]
    %v184 = vld [vmem:[%s1 + $0x3b8] sm:$0xff]
    %v185 = vld [vmem:[%s1 + $0x3c0] sm:$0xff]
    %v186 = vld [vmem:[%s1 + $0x3c8] sm:$0xff]
    %v187 = vld [vmem:[%s1 + $0x3d0] sm:$0xff]
    %v188 = vld [vmem:[%s1 + $0x3d8] sm:$0xff]
    %v189 = vld [vmem:[%s1 + $0x3e0] sm:$0xff]
    %v190 = vld [vmem:[%s1 + $0x3e8] sm:$0xff]
    %v191 = vld [vmem:[%s1 + $0x3f0] sm:$0xff]
    %v192 = vld [vmem:[%s1 + $0x3f8] sm:$0xff]
    %v193 = vld [vmem:[%s1 + $0x400] sm:$0xff]
    %v194 = vld [vmem:[%s1 + $0x408] sm:$0xff]
    %v195 = vld [vmem:[%s1 + $0x410] sm:$0xff]
    %v196 = vld [vmem:[%s1 + $0x418] sm:$0xff]
    %v197 = vld [vmem:[%s1 + $0x420] sm:$0xff]
    %v198 = vld [vmem:[%s1 + $0x428] sm:$0xff]
    %v199 = vld [vmem:[%s1 + $0x430] sm:$0xff]
    %v200 = vld [vmem:[%s1 + $0x438] sm:$0xff]
    %v201 = vld [vmem:[%s1 + $0x440] sm:$0xff]
    %v202 = vld [vmem:[%s1 + $0x448] sm:$0xff]
    %v203 = vld [vmem:[%s1 + $0x450] sm:$0xff]
    %v204 = vld [vmem:[%s1 + $0x458] sm:$0xff]
    %v205 = vld [vmem:[%s1 + $0x460] sm:$0xff]
    %v206 = vld [vmem:[%s1 + $0x468] sm:$0xff]
    %v207 = vld [vmem:[%s1 + $0x470] sm:$0xff]
    %v208 = vld [vmem:[%s1 + $0x478] sm:$0xff]
    %v209 = vld [vmem:[%s1 + $0x480] sm:$0xff]
    %v210 = vld [vmem:[%s1 + $0x488] sm:$0xff]
    %v211 = vld [vmem:[%s1 + $0x490] sm:$0xff]
    %v212 = vld [vmem:[%s1 + $0x498] sm:$0xff]
    %v213 = vld [vmem:[%s1 + $0x4a0] sm:$0xff]
    %v214 = vld [vmem:[%s1 + $0x4a8] sm:$0xff]
    %v215 = vld [vmem:[%s1 + $0x4b0] sm:$0xff]
    %v216 = vld [vmem:[%s1 + $0x4b8] sm:$0xff]
    %v217 = vld [vmem:[%s1 + $0x4c0] sm:$0xff]
    %v218 = vld [vmem:[%s1 + $0x4c8] sm:$0xff]
    %v219 = vld [vmem:[%s1 + $0x4d0] sm:$0xff]
    %v220 = vld [vmem:[%s1 + $0x4d8] sm:$0xff]
    %v221 = vld [vmem:[%s1 + $0x4e0] sm:$0xff]
    %v222 = vld [vmem:[%s1 + $0x4e8] sm:$0xff]
    %v223 = vld [vmem:[%s1 + $0x4f0] sm:$0xff]
    %v224 = vld [vmem:[%s1 + $0x4f8] sm:$0xff]
    %v225 = vld [vmem:[%s1 + $0x500] sm:$0xff]
    %v226 = vld [vmem:[%s1 + $0x508] sm:$0xff]
    %v227 = vld [vmem:[%s1 + $0x510] sm:$0xff]
    %v228 = vld [vmem:[%s1 + $0x518] sm:$0xff]
    %v229 = vld [vmem:[%s1 + $0x520] sm:$0xff]
    %v230 = vld [vmem:[%s1 + $0x528] sm:$0xff]
    %v231 = vld [vmem:[%s1 + $0x530] sm:$0xff]
    %v232 = vld [vmem:[%s1 + $0x538] sm:$0xff]
    %v233 = vld [vmem:[%s1 + $0x540] sm:$0xff]
    %v234 = vld [vmem:[%s1 + $0x548] sm:$0xff]
    %v235 = vld [vmem:[%s1 + $0x550] sm:$0xff]
    %v236 = vld [vmem:[%s1 + $0x558] sm:$0xff]
    %v237 = vld [vmem:[%s1 + $0x560] sm:$0xff]
    %v238 = vld [vmem:[%s1 + $0x568] sm:$0xff]
    %v239 = vld [vmem:[%s1 + $0x570] sm:$0xff]
    %v240 = vld [vmem:[%s1 + $0x578] sm:$0xff]
    %v241 = vld [vmem:[%s1 + $0x580] sm:$0xff]
    %v242 = vld [vmem:[%s1 + $0x588] sm:$0xff]
    %v243 = vld [vmem:[%s1 + $0x590] sm:$0xff]
    %v244 = vld [vmem:[%s1 + $0x598] sm:$0xff]
    %v245 = vld [vmem:[%s1 + $0x5a0] sm:$0xff]
    %v246 = vld [vmem:[%s1 + $0x5a8] sm:$0xff]
    %v247 = vld [vmem:[%s1 + $0x5b0] sm:$0xff]
    %v248 = vld [vmem:[%s1 + $0x5b8] sm:$0xff]
    %v249 = vld [vmem:[%s1 + $0x5c0] sm:$0xff]
    %v250 = vld [vmem:[%s1 + $0x5c8] sm:$0xff]
    %v251 = vld [vmem:[%s1 + $0x5d0] sm:$0xff]
    %v252 = vld [vmem:[%s1 + $0x5d8] sm:$0xff]
    %v253 = vld [vmem:[%s1 + $0x5e0] sm:$0xff]
    %v254 = vld [vmem:[%s1 + $0x5e8] sm:$0xff]
    %v255 = vld [vmem:[%s1 + $0x5f0] sm:$0xff]
    %v256 = vld [vmem:[%s1 + $0x5f8] sm:$0xff]
    %v257 = vld [vmem:[%s1 + $0x600] sm:$0xff]
    %v258 = vld [vmem:[%s1 + $0x608] sm:$0xff]
    %v259 = vld [vmem:[%s1 + $0x610] sm:$0xff]
    %v260 = vld [vmem:[%s1 + $0x618] sm:$0xff]
    %v261 = vld [vmem:[%s2] sm:$0xf]
    %v262 = vpack.c.bf16 %v58, %v58
    %v263 = vpack.c.bf16 %v59, %v59
    %v264 = vpack.c.bf16 %v60, %v60
    %v265 = vpack.c.bf16 %v61, %v61
    %v266 = vpack.c.bf16 %v62, %v62
    %v267 = vpack.c.bf16 %v63, %v63
    %v268 = vpack.c.bf16 %v64, %v64
    %v270 = vlaneseq
    %v271 = vshrl.u32 %v270, 7
    %v272 = vsub.s32 0, %v271
    %v273 = vrot.slane %v261, %v272
    %v274 = vlaneseq
    %v275 = vshrl.u32 %v274, 7
    %v276 = vsub.s32 1, %v275
    %v277 = vrot.slane %v261, %v276
    %v278 = vlaneseq
    %v279 = vshrl.u32 %v278, 7
    %v280 = vsub.s32 2, %v279
    %v281 = vrot.slane %v261, %v280
    %v282 = vlaneseq
    %v283 = vshrl.u32 %v282, 7
    %v284 = vsub.s32 3, %v283
    %v285 = vrot.slane %v261, %v284
    %v486 = vunpack.c.l.b16 %v65
    %v487 = vunpack.c.h.b16 %v65
    %v488 = vunpack.c.l.b16 %v66
    %v489 = vunpack.c.h.b16 %v66
    %v490 = vunpack.c.l.b16 %v67
    %v491 = vunpack.c.h.b16 %v67
    %v492 = vunpack.c.l.b16 %v68
    %v493 = vunpack.c.h.b16 %v68
    %v494 = vunpack.c.l.b16 %v69
    %v495 = vunpack.c.h.b16 %v69
    %v496 = vunpack.c.l.b16 %v70
    %v497 = vunpack.c.h.b16 %v70
    %v498 = vunpack.c.l.b16 %v71
    %v499 = vunpack.c.h.b16 %v71
    %v500 = vunpack.c.l.b16 %v72
    %v501 = vunpack.c.h.b16 %v72
    %v502 = vunpack.c.l.b16 %v73
    %v503 = vunpack.c.h.b16 %v73
    %v504 = vunpack.c.l.b16 %v74
    %v505 = vunpack.c.h.b16 %v74
    %v506 = vunpack.c.l.b16 %v75
    %v507 = vunpack.c.h.b16 %v75
    %v508 = vunpack.c.l.b16 %v76
    %v509 = vunpack.c.h.b16 %v76
    %v510 = vunpack.c.l.b16 %v77
    %v511 = vunpack.c.h.b16 %v77
    %v512 = vunpack.c.l.b16 %v78
    %v513 = vunpack.c.h.b16 %v78
    %v514 = vunpack.c.l.b16 %v79
    %v515 = vunpack.c.h.b16 %v79
    %v516 = vunpack.c.l.b16 %v80
    %v517 = vunpack.c.h.b16 %v80
    %v518 = vunpack.c.l.b16 %v81
    %v519 = vunpack.c.h.b16 %v81
    %v520 = vunpack.c.l.b16 %v82
    %v521 = vunpack.c.h.b16 %v82
    %v522 = vunpack.c.l.b16 %v83
    %v523 = vunpack.c.h.b16 %v83
    %v524 = vunpack.c.l.b16 %v84
    %v525 = vunpack.c.h.b16 %v84
    %v526 = vunpack.c.l.b16 %v85
    %v527 = vunpack.c.h.b16 %v85
    %v528 = vunpack.c.l.b16 %v86
    %v529 = vunpack.c.h.b16 %v86
    %v530 = vunpack.c.l.b16 %v87
    %v531 = vunpack.c.h.b16 %v87
    %v532 = vunpack.c.l.b16 %v88
    %v533 = vunpack.c.h.b16 %v88
    %v534 = vunpack.c.l.b16 %v89
    %v535 = vunpack.c.h.b16 %v89
    %v536 = vunpack.c.l.b16 %v90
    %v537 = vunpack.c.h.b16 %v90
    %v538 = vunpack.c.l.b16 %v91
    %v539 = vunpack.c.h.b16 %v91
    %v540 = vunpack.c.l.b16 %v92
    %v541 = vunpack.c.h.b16 %v92
    %v542 = vunpack.c.l.b16 %v93
    %v543 = vunpack.c.h.b16 %v93
    %v544 = vunpack.c.l.b16 %v94
    %v545 = vunpack.c.h.b16 %v94
    %v546 = vunpack.c.l.b16 %v95
    %v547 = vunpack.c.h.b16 %v95
    %v548 = vunpack.c.l.b16 %v96
    %v549 = vunpack.c.h.b16 %v96
    %v550 = vunpack.c.l.b16 %v97
    %v551 = vunpack.c.h.b16 %v97
    %v552 = vunpack.c.l.b16 %v98
    %v553 = vunpack.c.h.b16 %v98
    %v554 = vunpack.c.l.b16 %v99
    %v555 = vunpack.c.h.b16 %v99
    %v556 = vunpack.c.l.b16 %v100
    %v557 = vunpack.c.h.b16 %v100
    %v558 = vunpack.c.l.b16 %v101
    %v559 = vunpack.c.h.b16 %v101
    %v560 = vunpack.c.l.b16 %v102
    %v561 = vunpack.c.h.b16 %v102
    %v562 = vunpack.c.l.b16 %v103
    %v563 = vunpack.c.h.b16 %v103
    %v564 = vunpack.c.l.b16 %v104
    %v565 = vunpack.c.h.b16 %v104
    %v566 = vunpack.c.l.b16 %v105
    %v567 = vunpack.c.h.b16 %v105
    %v568 = vunpack.c.l.b16 %v106
    %v569 = vunpack.c.h.b16 %v106
    %v570 = vunpack.c.l.b16 %v107
    %v571 = vunpack.c.h.b16 %v107
    %v572 = vunpack.c.l.b16 %v108
    %v573 = vunpack.c.h.b16 %v108
    %v574 = vunpack.c.l.b16 %v109
    %v575 = vunpack.c.h.b16 %v109
    %v576 = vunpack.c.l.b16 %v110
    %v577 = vunpack.c.h.b16 %v110
    %v578 = vunpack.c.l.b16 %v111
    %v579 = vunpack.c.h.b16 %v111
    %v580 = vunpack.c.l.b16 %v112
    %v581 = vunpack.c.h.b16 %v112
    %v582 = vunpack.c.l.b16 %v113
    %v583 = vunpack.c.h.b16 %v113
    %v584 = vunpack.c.l.b16 %v114
    %v585 = vunpack.c.h.b16 %v114
    %v586 = vunpack.c.l.b16 %v115
    %v587 = vunpack.c.h.b16 %v115
    %v588 = vunpack.c.l.b16 %v116
    %v589 = vunpack.c.h.b16 %v116
    %v590 = vunpack.c.l.b16 %v117
    %v591 = vunpack.c.h.b16 %v117
    %v592 = vunpack.c.l.b16 %v118
    %v593 = vunpack.c.h.b16 %v118
    %v594 = vunpack.c.l.b16 %v119
    %v595 = vunpack.c.h.b16 %v119
    %v596 = vunpack.c.l.b16 %v120
    %v597 = vunpack.c.h.b16 %v120
    %v598 = vunpack.c.l.b16 %v121
    %v599 = vunpack.c.h.b16 %v121
    %v600 = vunpack.c.l.b16 %v122
    %v601 = vunpack.c.h.b16 %v122
    %v602 = vunpack.c.l.b16 %v123
    %v603 = vunpack.c.h.b16 %v123
    %v604 = vunpack.c.l.b16 %v124
    %v605 = vunpack.c.h.b16 %v124
    %v606 = vunpack.c.l.b16 %v125
    %v607 = vunpack.c.h.b16 %v125
    %v608 = vunpack.c.l.b16 %v126
    %v609 = vunpack.c.h.b16 %v126
    %v610 = vunpack.c.l.b16 %v127
    %v611 = vunpack.c.h.b16 %v127
    %v612 = vunpack.c.l.b16 %v128
    %v613 = vunpack.c.h.b16 %v128
    %v614 = vunpack.c.l.b16 %v129
    %v615 = vunpack.c.h.b16 %v129
    %v616 = vunpack.c.l.b16 %v130
    %v617 = vunpack.c.h.b16 %v130
    %v618 = vunpack.c.l.b16 %v131
    %v619 = vunpack.c.h.b16 %v131
    %v620 = vunpack.c.l.b16 %v132
    %v621 = vunpack.c.h.b16 %v132
    %v622 = vunpack.c.l.b16 %v133
    %v623 = vunpack.c.h.b16 %v133
    %v624 = vunpack.c.l.b16 %v134
    %v625 = vunpack.c.h.b16 %v134
    %v626 = vunpack.c.l.b16 %v135
    %v627 = vunpack.c.h.b16 %v135
    %v628 = vunpack.c.l.b16 %v136
    %v629 = vunpack.c.h.b16 %v136
    %v630 = vunpack.c.l.b16 %v137
    %v631 = vunpack.c.h.b16 %v137
    %v632 = vunpack.c.l.b16 %v138
    %v633 = vunpack.c.h.b16 %v138
    %v634 = vunpack.c.l.b16 %v139
    %v635 = vunpack.c.h.b16 %v139
    %v636 = vunpack.c.l.b16 %v140
    %v637 = vunpack.c.h.b16 %v140
    %v638 = vunpack.c.l.b16 %v141
    %v639 = vunpack.c.h.b16 %v141
    %v640 = vunpack.c.l.b16 %v142
    %v641 = vunpack.c.h.b16 %v142
    %v642 = vunpack.c.l.b16 %v143
    %v643 = vunpack.c.h.b16 %v143
    %v644 = vunpack.c.l.b16 %v144
    %v645 = vunpack.c.h.b16 %v144
    %v646 = vunpack.c.l.b16 %v145
    %v647 = vunpack.c.h.b16 %v145
    %v648 = vunpack.c.l.b16 %v146
    %v649 = vunpack.c.h.b16 %v146
    %v650 = vunpack.c.l.b16 %v147
    %v651 = vunpack.c.h.b16 %v147
    %v652 = vunpack.c.l.b16 %v148
    %v653 = vunpack.c.h.b16 %v148
    %v654 = vunpack.c.l.b16 %v149
    %v655 = vunpack.c.h.b16 %v149
    %v656 = vunpack.c.l.b16 %v150
    %v657 = vunpack.c.h.b16 %v150
    %v658 = vunpack.c.l.b16 %v151
    %v659 = vunpack.c.h.b16 %v151
    %v660 = vunpack.c.l.b16 %v152
    %v661 = vunpack.c.h.b16 %v152
    %v662 = vunpack.c.l.b16 %v153
    %v663 = vunpack.c.h.b16 %v153
    %v664 = vunpack.c.l.b16 %v154
    %v665 = vunpack.c.h.b16 %v154
    %v666 = vunpack.c.l.b16 %v155
    %v667 = vunpack.c.h.b16 %v155
    %v668 = vunpack.c.l.b16 %v156
    %v669 = vunpack.c.h.b16 %v156
    %v670 = vunpack.c.l.b16 %v157
    %v671 = vunpack.c.h.b16 %v157
    %v672 = vunpack.c.l.b16 %v158
    %v673 = vunpack.c.h.b16 %v158
    %v674 = vunpack.c.l.b16 %v159
    %v675 = vunpack.c.h.b16 %v159
    %v676 = vunpack.c.l.b16 %v160
    %v677 = vunpack.c.h.b16 %v160
    %v678 = vunpack.c.l.b16 %v161
    %v679 = vunpack.c.h.b16 %v161
    %v680 = vunpack.c.l.b16 %v162
    %v681 = vunpack.c.h.b16 %v162
    %v682 = vunpack.c.l.b16 %v163
    %v683 = vunpack.c.h.b16 %v163
    %v684 = vunpack.c.l.b16 %v164
    %v685 = vunpack.c.h.b16 %v164
    %v686 = vunpack.c.l.b16 %v165
    %v687 = vunpack.c.h.b16 %v165
    %v688 = vunpack.c.l.b16 %v166
    %v689 = vunpack.c.h.b16 %v166
    %v690 = vunpack.c.l.b16 %v167
    %v691 = vunpack.c.h.b16 %v167
    %v692 = vunpack.c.l.b16 %v168
    %v693 = vunpack.c.h.b16 %v168
    %v694 = vunpack.c.l.b16 %v169
    %v695 = vunpack.c.h.b16 %v169
    %v696 = vunpack.c.l.b16 %v170
    %v697 = vunpack.c.h.b16 %v170
    %v698 = vunpack.c.l.b16 %v171
    %v699 = vunpack.c.h.b16 %v171
    %v700 = vunpack.c.l.b16 %v172
    %v701 = vunpack.c.h.b16 %v172
    %v702 = vunpack.c.l.b16 %v173
    %v703 = vunpack.c.h.b16 %v173
    %v704 = vunpack.c.l.b16 %v174
    %v705 = vunpack.c.h.b16 %v174
    %v706 = vunpack.c.l.b16 %v175
    %v707 = vunpack.c.h.b16 %v175
    %v708 = vunpack.c.l.b16 %v176
    %v709 = vunpack.c.h.b16 %v176
    %v710 = vunpack.c.l.b16 %v177
    %v711 = vunpack.c.h.b16 %v177
    %v712 = vunpack.c.l.b16 %v178
    %v713 = vunpack.c.h.b16 %v178
    %v714 = vunpack.c.l.b16 %v179
    %v715 = vunpack.c.h.b16 %v179
    %v716 = vunpack.c.l.b16 %v180
    %v717 = vunpack.c.h.b16 %v180
    %v718 = vunpack.c.l.b16 %v181
    %v719 = vunpack.c.h.b16 %v181
    %v720 = vunpack.c.l.b16 %v182
    %v721 = vunpack.c.h.b16 %v182
    %v722 = vunpack.c.l.b16 %v183
    %v723 = vunpack.c.h.b16 %v183
    %v724 = vunpack.c.l.b16 %v184
    %v725 = vunpack.c.h.b16 %v184
    %v726 = vunpack.c.l.b16 %v185
    %v727 = vunpack.c.h.b16 %v185
    %v728 = vunpack.c.l.b16 %v186
    %v729 = vunpack.c.h.b16 %v186
    %v730 = vunpack.c.l.b16 %v187
    %v731 = vunpack.c.h.b16 %v187
    %v732 = vunpack.c.l.b16 %v188
    %v733 = vunpack.c.h.b16 %v188
    %v734 = vunpack.c.l.b16 %v189
    %v735 = vunpack.c.h.b16 %v189
    %v736 = vunpack.c.l.b16 %v190
    %v737 = vunpack.c.h.b16 %v190
    %v738 = vunpack.c.l.b16 %v191
    %v739 = vunpack.c.h.b16 %v191
    %v740 = vunpack.c.l.b16 %v192
    %v741 = vunpack.c.h.b16 %v192
    %v742 = vunpack.c.l.b16 %v193
    %v743 = vunpack.c.h.b16 %v193
    %v744 = vunpack.c.l.b16 %v194
    %v745 = vunpack.c.h.b16 %v194
    %v746 = vunpack.c.l.b16 %v195
    %v747 = vunpack.c.h.b16 %v195
    %v748 = vunpack.c.l.b16 %v196
    %v749 = vunpack.c.h.b16 %v196
    %v750 = vunpack.c.l.b16 %v197
    %v751 = vunpack.c.h.b16 %v197
    %v752 = vunpack.c.l.b16 %v198
    %v753 = vunpack.c.h.b16 %v198
    %v754 = vunpack.c.l.b16 %v199
    %v755 = vunpack.c.h.b16 %v199
    %v756 = vunpack.c.l.b16 %v200
    %v757 = vunpack.c.h.b16 %v200
    %v758 = vunpack.c.l.b16 %v201
    %v759 = vunpack.c.h.b16 %v201
    %v760 = vunpack.c.l.b16 %v202
    %v761 = vunpack.c.h.b16 %v202
    %v762 = vunpack.c.l.b16 %v203
    %v763 = vunpack.c.h.b16 %v203
    %v764 = vunpack.c.l.b16 %v204
    %v765 = vunpack.c.h.b16 %v204
    %v766 = vunpack.c.l.b16 %v205
    %v767 = vunpack.c.h.b16 %v205
    %v768 = vunpack.c.l.b16 %v206
    %v769 = vunpack.c.h.b16 %v206
    %v770 = vunpack.c.l.b16 %v207
    %v771 = vunpack.c.h.b16 %v207
    %v772 = vunpack.c.l.b16 %v208
    %v773 = vunpack.c.h.b16 %v208
    %v774 = vunpack.c.l.b16 %v209
    %v775 = vunpack.c.h.b16 %v209
    %v776 = vunpack.c.l.b16 %v210
    %v777 = vunpack.c.h.b16 %v210
    %v778 = vunpack.c.l.b16 %v211
    %v779 = vunpack.c.h.b16 %v211
    %v780 = vunpack.c.l.b16 %v212
    %v781 = vunpack.c.h.b16 %v212
    %v782 = vunpack.c.l.b16 %v213
    %v783 = vunpack.c.h.b16 %v213
    %v784 = vunpack.c.l.b16 %v214
    %v785 = vunpack.c.h.b16 %v214
    %v786 = vunpack.c.l.b16 %v215
    %v787 = vunpack.c.h.b16 %v215
    %v788 = vunpack.c.l.b16 %v216
    %v789 = vunpack.c.h.b16 %v216
    %v790 = vunpack.c.l.b16 %v217
    %v791 = vunpack.c.h.b16 %v217
    %v792 = vunpack.c.l.b16 %v218
    %v793 = vunpack.c.h.b16 %v218
    %v794 = vunpack.c.l.b16 %v219
    %v795 = vunpack.c.h.b16 %v219
    %v796 = vunpack.c.l.b16 %v220
    %v797 = vunpack.c.h.b16 %v220
    %v798 = vunpack.c.l.b16 %v221
    %v799 = vunpack.c.h.b16 %v221
    %v800 = vunpack.c.l.b16 %v222
    %v801 = vunpack.c.h.b16 %v222
    %v802 = vunpack.c.l.b16 %v223
    %v803 = vunpack.c.h.b16 %v223
    %v804 = vunpack.c.l.b16 %v224
    %v805 = vunpack.c.h.b16 %v224
    %v806 = vunpack.c.l.b16 %v225
    %v807 = vunpack.c.h.b16 %v225
    %v808 = vunpack.c.l.b16 %v226
    %v809 = vunpack.c.h.b16 %v226
    %v810 = vunpack.c.l.b16 %v227
    %v811 = vunpack.c.h.b16 %v227
    %v812 = vunpack.c.l.b16 %v228
    %v813 = vunpack.c.h.b16 %v228
    %v814 = vunpack.c.l.b16 %v229
    %v815 = vunpack.c.h.b16 %v229
    %v816 = vunpack.c.l.b16 %v230
    %v817 = vunpack.c.h.b16 %v230
    %v818 = vunpack.c.l.b16 %v231
    %v819 = vunpack.c.h.b16 %v231
    %v820 = vunpack.c.l.b16 %v232
    %v821 = vunpack.c.h.b16 %v232
    %v822 = vunpack.c.l.b16 %v233
    %v823 = vunpack.c.h.b16 %v233
    %v824 = vunpack.c.l.b16 %v234
    %v825 = vunpack.c.h.b16 %v234
    %v826 = vunpack.c.l.b16 %v235
    %v827 = vunpack.c.h.b16 %v235
    %v828 = vunpack.c.l.b16 %v236
    %v829 = vunpack.c.h.b16 %v236
    %v830 = vunpack.c.l.b16 %v237
    %v831 = vunpack.c.h.b16 %v237
    %v832 = vunpack.c.l.b16 %v238
    %v833 = vunpack.c.h.b16 %v238
    %v834 = vunpack.c.l.b16 %v239
    %v835 = vunpack.c.h.b16 %v239
    %v836 = vunpack.c.l.b16 %v240
    %v837 = vunpack.c.h.b16 %v240
    %v838 = vunpack.c.l.b16 %v241
    %v839 = vunpack.c.h.b16 %v241
    %v840 = vunpack.c.l.b16 %v242
    %v841 = vunpack.c.h.b16 %v242
    %v842 = vunpack.c.l.b16 %v243
    %v843 = vunpack.c.h.b16 %v243
    %v844 = vunpack.c.l.b16 %v244
    %v845 = vunpack.c.h.b16 %v244
    %v846 = vunpack.c.l.b16 %v245
    %v847 = vunpack.c.h.b16 %v245
    %v848 = vunpack.c.l.b16 %v246
    %v849 = vunpack.c.h.b16 %v246
    %v850 = vunpack.c.l.b16 %v247
    %v851 = vunpack.c.h.b16 %v247
    %v852 = vunpack.c.l.b16 %v248
    %v853 = vunpack.c.h.b16 %v248
    %v854 = vunpack.c.l.b16 %v249
    %v855 = vunpack.c.h.b16 %v249
    %v856 = vunpack.c.l.b16 %v250
    %v857 = vunpack.c.h.b16 %v250
    %v858 = vunpack.c.l.b16 %v251
    %v859 = vunpack.c.h.b16 %v251
    %v860 = vunpack.c.l.b16 %v252
    %v861 = vunpack.c.h.b16 %v252
    %v862 = vunpack.c.l.b16 %v253
    %v863 = vunpack.c.h.b16 %v253
    %v864 = vunpack.c.l.b16 %v254
    %v865 = vunpack.c.h.b16 %v254
    %v866 = vunpack.c.l.b16 %v255
    %v867 = vunpack.c.h.b16 %v255
    %v868 = vunpack.c.l.b16 %v256
    %v869 = vunpack.c.h.b16 %v256
    %v870 = vunpack.c.l.b16 %v257
    %v871 = vunpack.c.h.b16 %v257
    %v872 = vunpack.c.l.b16 %v258
    %v873 = vunpack.c.h.b16 %v258
    %v874 = vunpack.c.l.b16 %v259
    %v875 = vunpack.c.h.b16 %v259
    %v876 = vunpack.c.l.b16 %v260
    %v877 = vunpack.c.h.b16 %v260
    %v878 = vpack.c.b16 %v490, %v486
    %v879 = vpack.c.b16 %v491, %v487
    %v880 = vpack.c.b16 %v492, %v488
    %v881 = vpack.c.b16 %v493, %v489
    %v882 = vpack.c.b16 %v498, %v494
    %v883 = vpack.c.b16 %v499, %v495
    %v884 = vpack.c.b16 %v500, %v496
    %v885 = vpack.c.b16 %v501, %v497
    %v886 = vpack.c.b16 %v506, %v502
    %v887 = vpack.c.b16 %v507, %v503
    %v888 = vpack.c.b16 %v508, %v504
    %v889 = vpack.c.b16 %v509, %v505
    %v890 = vpack.c.b16 %v514, %v510
    %v891 = vpack.c.b16 %v515, %v511
    %v892 = vpack.c.b16 %v516, %v512
    %v893 = vpack.c.b16 %v517, %v513
    %v894 = vpack.c.b16 %v522, %v518
    %v895 = vpack.c.b16 %v523, %v519
    %v896 = vpack.c.b16 %v524, %v520
    %v897 = vpack.c.b16 %v525, %v521
    %v898 = vpack.c.b16 %v530, %v526
    %v899 = vpack.c.b16 %v531, %v527
    %v900 = vpack.c.b16 %v532, %v528
    %v901 = vpack.c.b16 %v533, %v529
    %v902 = vpack.c.b16 %v538, %v534
    %v903 = vpack.c.b16 %v539, %v535
    %v904 = vpack.c.b16 %v540, %v536
    %v905 = vpack.c.b16 %v541, %v537
    %v906 = vpack.c.b16 %v546, %v542
    %v907 = vpack.c.b16 %v547, %v543
    %v908 = vpack.c.b16 %v548, %v544
    %v909 = vpack.c.b16 %v549, %v545
    %v910 = vpack.c.b16 %v554, %v550
    %v911 = vpack.c.b16 %v555, %v551
    %v912 = vpack.c.b16 %v556, %v552
    %v913 = vpack.c.b16 %v557, %v553
    %v914 = vpack.c.b16 %v562, %v558
    %v915 = vpack.c.b16 %v563, %v559
    %v916 = vpack.c.b16 %v564, %v560
    %v917 = vpack.c.b16 %v565, %v561
    %v918 = vpack.c.b16 %v570, %v566
    %v919 = vpack.c.b16 %v571, %v567
    %v920 = vpack.c.b16 %v572, %v568
    %v921 = vpack.c.b16 %v573, %v569
    %v922 = vpack.c.b16 %v578, %v574
    %v923 = vpack.c.b16 %v579, %v575
    %v924 = vpack.c.b16 %v580, %v576
    %v925 = vpack.c.b16 %v581, %v577
    %v926 = vpack.c.b16 %v586, %v582
    %v927 = vpack.c.b16 %v587, %v583
    %v928 = vpack.c.b16 %v588, %v584
    %v929 = vpack.c.b16 %v589, %v585
    %v930 = vpack.c.b16 %v594, %v590
    %v931 = vpack.c.b16 %v595, %v591
    %v932 = vpack.c.b16 %v596, %v592
    %v933 = vpack.c.b16 %v597, %v593
    %v934 = vpack.c.b16 %v602, %v598
    %v935 = vpack.c.b16 %v603, %v599
    %v936 = vpack.c.b16 %v604, %v600
    %v937 = vpack.c.b16 %v605, %v601
    %v938 = vpack.c.b16 %v610, %v606
    %v939 = vpack.c.b16 %v611, %v607
    %v940 = vpack.c.b16 %v612, %v608
    %v941 = vpack.c.b16 %v613, %v609
    %v942 = vpack.c.b16 %v618, %v614
    %v943 = vpack.c.b16 %v619, %v615
    %v944 = vpack.c.b16 %v620, %v616
    %v945 = vpack.c.b16 %v621, %v617
    %v946 = vpack.c.b16 %v626, %v622
    %v947 = vpack.c.b16 %v627, %v623
    %v948 = vpack.c.b16 %v628, %v624
    %v949 = vpack.c.b16 %v629, %v625
    %v950 = vpack.c.b16 %v634, %v630
    %v951 = vpack.c.b16 %v635, %v631
    %v952 = vpack.c.b16 %v636, %v632
    %v953 = vpack.c.b16 %v637, %v633
    %v954 = vpack.c.b16 %v642, %v638
    %v955 = vpack.c.b16 %v643, %v639
    %v956 = vpack.c.b16 %v644, %v640
    %v957 = vpack.c.b16 %v645, %v641
    %v958 = vpack.c.b16 %v650, %v646
    %v959 = vpack.c.b16 %v651, %v647
    %v960 = vpack.c.b16 %v652, %v648
    %v961 = vpack.c.b16 %v653, %v649
    %v962 = vpack.c.b16 %v658, %v654
    %v963 = vpack.c.b16 %v659, %v655
    %v964 = vpack.c.b16 %v660, %v656
    %v965 = vpack.c.b16 %v661, %v657
    %v966 = vpack.c.b16 %v666, %v662
    %v967 = vpack.c.b16 %v667, %v663
    %v968 = vpack.c.b16 %v668, %v664
    %v969 = vpack.c.b16 %v669, %v665
    %v970 = vpack.c.b16 %v674, %v670
    %v971 = vpack.c.b16 %v675, %v671
    %v972 = vpack.c.b16 %v676, %v672
    %v973 = vpack.c.b16 %v677, %v673
    %v974 = vpack.c.b16 %v682, %v678
    %v975 = vpack.c.b16 %v683, %v679
    %v976 = vpack.c.b16 %v684, %v680
    %v977 = vpack.c.b16 %v685, %v681
    %v978 = vpack.c.b16 %v690, %v686
    %v979 = vpack.c.b16 %v691, %v687
    %v980 = vpack.c.b16 %v692, %v688
    %v981 = vpack.c.b16 %v693, %v689
    %v982 = vpack.c.b16 %v698, %v694
    %v983 = vpack.c.b16 %v699, %v695
    %v984 = vpack.c.b16 %v700, %v696
    %v985 = vpack.c.b16 %v701, %v697
    %v986 = vpack.c.b16 %v706, %v702
    %v987 = vpack.c.b16 %v707, %v703
    %v988 = vpack.c.b16 %v708, %v704
    %v989 = vpack.c.b16 %v709, %v705
    %v990 = vpack.c.b16 %v714, %v710
    %v991 = vpack.c.b16 %v715, %v711
    %v992 = vpack.c.b16 %v716, %v712
    %v993 = vpack.c.b16 %v717, %v713
    %v994 = vpack.c.b16 %v722, %v718
    %v995 = vpack.c.b16 %v723, %v719
    %v996 = vpack.c.b16 %v724, %v720
    %v997 = vpack.c.b16 %v725, %v721
    %v998 = vpack.c.b16 %v730, %v726
    %v999 = vpack.c.b16 %v731, %v727
    %v1000 = vpack.c.b16 %v732, %v728
    %v1001 = vpack.c.b16 %v733, %v729
    %v1002 = vpack.c.b16 %v738, %v734
    %v1003 = vpack.c.b16 %v739, %v735
    %v1004 = vpack.c.b16 %v740, %v736
    %v1005 = vpack.c.b16 %v741, %v737
    %v1006 = vpack.c.b16 %v746, %v742
    %v1007 = vpack.c.b16 %v747, %v743
    %v1008 = vpack.c.b16 %v748, %v744
    %v1009 = vpack.c.b16 %v749, %v745
    %v1010 = vpack.c.b16 %v754, %v750
    %v1011 = vpack.c.b16 %v755, %v751
    %v1012 = vpack.c.b16 %v756, %v752
    %v1013 = vpack.c.b16 %v757, %v753
    %v1014 = vpack.c.b16 %v762, %v758
    %v1015 = vpack.c.b16 %v763, %v759
    %v1016 = vpack.c.b16 %v764, %v760
    %v1017 = vpack.c.b16 %v765, %v761
    %v1018 = vpack.c.b16 %v770, %v766
    %v1019 = vpack.c.b16 %v771, %v767
    %v1020 = vpack.c.b16 %v772, %v768
    %v1021 = vpack.c.b16 %v773, %v769
    %v1022 = vpack.c.b16 %v778, %v774
    %v1023 = vpack.c.b16 %v779, %v775
    %v1024 = vpack.c.b16 %v780, %v776
    %v1025 = vpack.c.b16 %v781, %v777
    %v1026 = vpack.c.b16 %v786, %v782
    %v1027 = vpack.c.b16 %v787, %v783
    %v1028 = vpack.c.b16 %v788, %v784
    %v1029 = vpack.c.b16 %v789, %v785
    %v1030 = vpack.c.b16 %v794, %v790
    %v1031 = vpack.c.b16 %v795, %v791
    %v1032 = vpack.c.b16 %v796, %v792
    %v1033 = vpack.c.b16 %v797, %v793
    %v1034 = vpack.c.b16 %v802, %v798
    %v1035 = vpack.c.b16 %v803, %v799
    %v1036 = vpack.c.b16 %v804, %v800
    %v1037 = vpack.c.b16 %v805, %v801
    %v1038 = vpack.c.b16 %v810, %v806
    %v1039 = vpack.c.b16 %v811, %v807
    %v1040 = vpack.c.b16 %v812, %v808
    %v1041 = vpack.c.b16 %v813, %v809
    %v1042 = vpack.c.b16 %v818, %v814
    %v1043 = vpack.c.b16 %v819, %v815
    %v1044 = vpack.c.b16 %v820, %v816
    %v1045 = vpack.c.b16 %v821, %v817
    %v1046 = vpack.c.b16 %v826, %v822
    %v1047 = vpack.c.b16 %v827, %v823
    %v1048 = vpack.c.b16 %v828, %v824
    %v1049 = vpack.c.b16 %v829, %v825
    %v1050 = vpack.c.b16 %v834, %v830
    %v1051 = vpack.c.b16 %v835, %v831
    %v1052 = vpack.c.b16 %v836, %v832
    %v1053 = vpack.c.b16 %v837, %v833
    %v1054 = vpack.c.b16 %v842, %v838
    %v1055 = vpack.c.b16 %v843, %v839
    %v1056 = vpack.c.b16 %v844, %v840
    %v1057 = vpack.c.b16 %v845, %v841
    %v1058 = vpack.c.b16 %v850, %v846
    %v1059 = vpack.c.b16 %v851, %v847
    %v1060 = vpack.c.b16 %v852, %v848
    %v1061 = vpack.c.b16 %v853, %v849
    %v1062 = vpack.c.b16 %v858, %v854
    %v1063 = vpack.c.b16 %v859, %v855
    %v1064 = vpack.c.b16 %v860, %v856
    %v1065 = vpack.c.b16 %v861, %v857
    %v1066 = vpack.c.b16 %v866, %v862
    %v1067 = vpack.c.b16 %v867, %v863
    %v1068 = vpack.c.b16 %v868, %v864
    %v1069 = vpack.c.b16 %v869, %v865
    %v1070 = vpack.c.b16 %v874, %v870
    %v1071 = vpack.c.b16 %v875, %v871
    %v1072 = vpack.c.b16 %v876, %v872
    %v1073 = vpack.c.b16 %v877, %v873
    %vm1270 = vcmask 130048
    %v1272 = vsel %vm1270, %v268, 0
    %1274 = vmatprep.subr.bf16.mxu0 %v879
    %1275 = vmatpush1.bf16.msra.mxu0 %v878
    %1276 = vmatprep.subr.bf16.mxu0 %v883
    %1277 = vmatpush1.bf16.msra.mxu0 %v882
    %1278 = vmatprep.subr.bf16.mxu0 %v887
    %1279 = vmatpush1.bf16.msra.mxu0 %v886
    %1280 = vmatprep.subr.bf16.mxu0 %v891
    %1281 = vmatpush1.bf16.msra.mxu0 %v890
    %1282 = vmatprep.subr.bf16.mxu0 %v895
    %1283 = vmatpush1.bf16.msra.mxu0 %v894
    %1284 = vmatprep.subr.bf16.mxu0 %v899
    %1285 = vmatpush1.bf16.msra.mxu0 %v898
    %1286 = vmatprep.subr.bf16.mxu0 %v903
    %1287 = vmatpush1.bf16.msra.mxu0 %v902
    %1288 = vmatprep.subr.bf16.mxu0 %v907
    %1289 = vmatpush1.bf16.msra.mxu0 %v906
    %1290 = vmatprep.subr.bf16.mxu0 %v911
    %1291 = vmatpush1.bf16.msra.mxu0 %v910
    %1292 = vmatprep.subr.bf16.mxu0 %v915
    %1293 = vmatpush1.bf16.msra.mxu0 %v914
    %1294 = vmatprep.subr.bf16.mxu0 %v919
    %1295 = vmatpush1.bf16.msra.mxu0 %v918
    %1296 = vmatprep.subr.bf16.mxu0 %v923
    %1297 = vmatpush1.bf16.msra.mxu0 %v922
    %1298 = vmatprep.subr.bf16.mxu0 %v927
    %1299 = vmatpush1.bf16.msra.mxu0 %v926
    %1300 = vmatprep.subr.bf16.mxu0 %v931
    %1301 = vmatpush1.bf16.msra.mxu0 %v930
    %1302 = vmatprep.subr.bf16.mxu0 %v935
    %1303 = vmatpush1.bf16.msra.mxu0 %v934
    %1304 = vmatprep.subr.bf16.mxu0 %v939
    %1305 = vmatpush1.bf16.msra.mxu0 %v938
    %1306 = vmatprep.mubr.bf16.mxu0 %v263
    %1307 = vmatmul.mubr.bf16.gmra.mrb[0].mxu0 %v262
    %v1308 = vpop.f32.mrb[0].mxu0
    %v1309 = vadd.f32 %v273, %v1308
    %v1310 = vpop.f32.mrb[0].mxu0
    %v1311 = vadd.f32 %v277, %v1310
    %v1312 = vpop.f32.mrb[0].mxu0
    %v1313 = vpop.f32.mrb[0].mxu0
    %1314 = vdwg.mxu0
    %1315 = vmatprep.subr.bf16.mxu0 %v943
    %1316 = vmatpush1.bf16.msra.mxu0 %v942
    %1317 = vmatprep.subr.bf16.mxu0 %v947
    %1318 = vmatpush1.bf16.msra.mxu0 %v946
    %1319 = vmatprep.subr.bf16.mxu0 %v951
    %1320 = vmatpush1.bf16.msra.mxu0 %v950
    %1321 = vmatprep.subr.bf16.mxu0 %v955
    %1322 = vmatpush1.bf16.msra.mxu0 %v954
    %1323 = vmatprep.subr.bf16.mxu0 %v959
    %1324 = vmatpush1.bf16.msra.mxu0 %v958
    %1325 = vmatprep.subr.bf16.mxu0 %v963
    %1326 = vmatpush1.bf16.msra.mxu0 %v962
    %1327 = vmatprep.subr.bf16.mxu0 %v967
    %1328 = vmatpush1.bf16.msra.mxu0 %v966
    %1329 = vmatprep.subr.bf16.mxu0 %v971
    %1330 = vmatpush1.bf16.msra.mxu0 %v970
    %1331 = vmatprep.subr.bf16.mxu0 %v975
    %1332 = vmatpush1.bf16.msra.mxu0 %v974
    %1333 = vmatprep.subr.bf16.mxu0 %v979
    %1334 = vmatpush1.bf16.msra.mxu0 %v978
    %1335 = vmatprep.subr.bf16.mxu0 %v983
    %1336 = vmatpush1.bf16.msra.mxu0 %v982
    %1337 = vmatprep.subr.bf16.mxu0 %v987
    %1338 = vmatpush1.bf16.msra.mxu0 %v986
    %1339 = vmatprep.subr.bf16.mxu0 %v991
    %1340 = vmatpush1.bf16.msra.mxu0 %v990
    %1341 = vmatprep.subr.bf16.mxu0 %v995
    %1342 = vmatpush1.bf16.msra.mxu0 %v994
    %1343 = vmatprep.subr.bf16.mxu0 %v999
    %1344 = vmatpush1.bf16.msra.mxu0 %v998
    %1345 = vmatprep.subr.bf16.mxu0 %v1003
    %1346 = vmatpush1.bf16.msra.mxu0 %v1002
    %1347 = vmatprep.mubr.bf16.mxu0 %v265
    %1348 = vmatmul.mubr.bf16.gmra.mrb[0].mxu0 %v264
    %v1349 = vpop.f32.mrb[0].mxu0
    %v1350 = vadd.f32 %v1309, %v1349
    %v1351 = vpop.f32.mrb[0].mxu0
    %v1352 = vadd.f32 %v1311, %v1351
    %v1353 = vpop.f32.mrb[0].mxu0
    %v1354 = vpop.f32.mrb[0].mxu0
    %1355 = vdwg.mxu0
    %1356 = vmatprep.subr.bf16.mxu0 %v1007
    %1357 = vmatpush1.bf16.msra.mxu0 %v1006
    %1358 = vmatprep.subr.bf16.mxu0 %v1011
    %1359 = vmatpush1.bf16.msra.mxu0 %v1010
    %1360 = vmatprep.subr.bf16.mxu0 %v1015
    %1361 = vmatpush1.bf16.msra.mxu0 %v1014
    %1362 = vmatprep.subr.bf16.mxu0 %v1019
    %1363 = vmatpush1.bf16.msra.mxu0 %v1018
    %1364 = vmatprep.subr.bf16.mxu0 %v1023
    %1365 = vmatpush1.bf16.msra.mxu0 %v1022
    %1366 = vmatprep.subr.bf16.mxu0 %v1027
    %1367 = vmatpush1.bf16.msra.mxu0 %v1026
    %1368 = vmatprep.subr.bf16.mxu0 %v1031
    %1369 = vmatpush1.bf16.msra.mxu0 %v1030
    %1370 = vmatprep.subr.bf16.mxu0 %v1035
    %1371 = vmatpush1.bf16.msra.mxu0 %v1034
    %1372 = vmatprep.subr.bf16.mxu0 %v1039
    %1373 = vmatpush1.bf16.msra.mxu0 %v1038
    %1374 = vmatprep.subr.bf16.mxu0 %v1043
    %1375 = vmatpush1.bf16.msra.mxu0 %v1042
    %1376 = vmatprep.subr.bf16.mxu0 %v1047
    %1377 = vmatpush1.bf16.msra.mxu0 %v1046
    %1378 = vmatprep.subr.bf16.mxu0 %v1051
    %1379 = vmatpush1.bf16.msra.mxu0 %v1050
    %1380 = vmatprep.subr.bf16.mxu0 %v1055
    %1381 = vmatpush1.bf16.msra.mxu0 %v1054
    %1382 = vmatprep.subr.bf16.mxu0 %v1059
    %1383 = vmatpush1.bf16.msra.mxu0 %v1058
    %1384 = vmatprep.subr.bf16.mxu0 %v1063
    %1385 = vmatpush1.bf16.msra.mxu0 %v1062
    %1386 = vmatprep.subr.bf16.mxu0 %v1067
    %1387 = vmatpush1.bf16.msra.mxu0 %v1066
    %1388 = vmatprep.mubr.bf16.mxu0 %v267
    %1389 = vmatmul.mubr.bf16.gmra.mrb[0].mxu0 %v266
    %v1390 = vpop.f32.mrb[0].mxu0
    %v1391 = vadd.f32 %v1350, %v1390
    %v1392 = vpop.f32.mrb[0].mxu0
    %v1393 = vadd.f32 %v1352, %v1392
    %v1394 = vpop.f32.mrb[0].mxu0
    %v1395 = vpop.f32.mrb[0].mxu0
    %1396 = vdwg.mxu0
    %1397 = vmatprep.subr.bf16.mxu0 %v1071
    %1398 = vmatpush1.bf16.msra.mxu0 %v1070
    %1399 = vmatprep.subr.bf16.mxu0 0
    %1400 = vmatpush1.bf16.msra.mxu0 0
    %1401 = vmatprep.subr.bf16.mxu0 0
    %1402 = vmatpush1.bf16.msra.mxu0 0
    %1403 = vmatprep.subr.bf16.mxu0 0
    %1404 = vmatpush1.bf16.msra.mxu0 0
    %1405 = vmatprep.subr.bf16.mxu0 0
    %1406 = vmatpush1.bf16.msra.mxu0 0
    %1407 = vmatprep.subr.bf16.mxu0 0
    %1408 = vmatpush1.bf16.msra.mxu0 0
    %1409 = vmatprep.subr.bf16.mxu0 0
    %1410 = vmatpush1.bf16.msra.mxu0 0
    %1411 = vmatprep.subr.bf16.mxu0 0
    %1412 = vmatpush1.bf16.msra.mxu0 0
    %1413 = vmatprep.subr.bf16.mxu0 0
    %1414 = vmatpush1.bf16.msra.mxu0 0
    %1415 = vmatprep.subr.bf16.mxu0 0
    %1416 = vmatpush1.bf16.msra.mxu0 0
    %1417 = vmatprep.subr.bf16.mxu0 0
    %1418 = vmatpush1.bf16.msra.mxu0 0
    %1419 = vmatprep.subr.bf16.mxu0 0
    %1420 = vmatpush1.bf16.msra.mxu0 0
    %1421 = vmatprep.subr.bf16.mxu0 0
    %1422 = vmatpush1.bf16.msra.mxu0 0
    %1423 = vmatprep.subr.bf16.mxu0 0
    %1424 = vmatpush1.bf16.msra.mxu0 0
    %1425 = vmatprep.subr.bf16.mxu0 0
    %1426 = vmatpush1.bf16.msra.mxu0 0
    %1427 = vmatprep.subr.bf16.mxu0 0
    %1428 = vmatpush1.bf16.msra.mxu0 0
    %1429 = vmatprep.mubr.bf16.mxu0 0
    %1430 = vmatmul.mubr.bf16.gmra.mrb[0].mxu0 %v1272
    %v1431 = vpop.f32.mrb[0].mxu0
    %v1432 = vadd.f32 %v1391, %v1431
    %v1433 = vpop.f32.mrb[0].mxu0
    %v1434 = vadd.f32 %v1393, %v1433
    %v1435 = vpop.f32.mrb[0].mxu0
    %v1436 = vpop.f32.mrb[0].mxu0
    %1437 = vdwg.mxu0
    %1438 = vmatprep.subr.bf16.mxu0 %v881
    %1439 = vmatpush1.bf16.msra.mxu0 %v880
    %1440 = vmatprep.subr.bf16.mxu0 %v885
    %1441 = vmatpush1.bf16.msra.mxu0 %v884
    %1442 = vmatprep.subr.bf16.mxu0 %v889
    %1443 = vmatpush1.bf16.msra.mxu0 %v888
    %1444 = vmatprep.subr.bf16.mxu0 %v893
    %1445 = vmatpush1.bf16.msra.mxu0 %v892
    %1446 = vmatprep.subr.bf16.mxu0 %v897
    %1447 = vmatpush1.bf16.msra.mxu0 %v896
    %1448 = vmatprep.subr.bf16.mxu0 %v901
    %1449 = vmatpush1.bf16.msra.mxu0 %v900
    %1450 = vmatprep.subr.bf16.mxu0 %v905
    %1451 = vmatpush1.bf16.msra.mxu0 %v904
    %1452 = vmatprep.subr.bf16.mxu0 %v909
    %1453 = vmatpush1.bf16.msra.mxu0 %v908
    %1454 = vmatprep.subr.bf16.mxu0 %v913
    %1455 = vmatpush1.bf16.msra.mxu0 %v912
    %1456 = vmatprep.subr.bf16.mxu0 %v917
    %1457 = vmatpush1.bf16.msra.mxu0 %v916
    %1458 = vmatprep.subr.bf16.mxu0 %v921
    %1459 = vmatpush1.bf16.msra.mxu0 %v920
    %1460 = vmatprep.subr.bf16.mxu0 %v925
    %1461 = vmatpush1.bf16.msra.mxu0 %v924
    %1462 = vmatprep.subr.bf16.mxu0 %v929
    %1463 = vmatpush1.bf16.msra.mxu0 %v928
    %1464 = vmatprep.subr.bf16.mxu0 %v933
    %1465 = vmatpush1.bf16.msra.mxu0 %v932
    %1466 = vmatprep.subr.bf16.mxu0 %v937
    %1467 = vmatpush1.bf16.msra.mxu0 %v936
    %1468 = vmatprep.subr.bf16.mxu0 %v941
    %1469 = vmatpush1.bf16.msra.mxu0 %v940
    %1470 = vmatprep.mubr.bf16.mxu0 %v263
    %1471 = vmatmul.mubr.bf16.gmra.mrb[0].mxu0 %v262
    %v1472 = vpop.f32.mrb[0].mxu0
    %v1473 = vadd.f32 %v281, %v1472
    %v1474 = vpop.f32.mrb[0].mxu0
    %v1475 = vadd.f32 %v285, %v1474
    %v1476 = vpop.f32.mrb[0].mxu0
    %v1477 = vpop.f32.mrb[0].mxu0
    %1478 = vdwg.mxu0
    %1479 = vmatprep.subr.bf16.mxu0 %v945
    %1480 = vmatpush1.bf16.msra.mxu0 %v944
    %1481 = vmatprep.subr.bf16.mxu0 %v949
    %1482 = vmatpush1.bf16.msra.mxu0 %v948
    %1483 = vmatprep.subr.bf16.mxu0 %v953
    %1484 = vmatpush1.bf16.msra.mxu0 %v952
    %1485 = vmatprep.subr.bf16.mxu0 %v957
    %1486 = vmatpush1.bf16.msra.mxu0 %v956
    %1487 = vmatprep.subr.bf16.mxu0 %v961
    %1488 = vmatpush1.bf16.msra.mxu0 %v960
    %1489 = vmatprep.subr.bf16.mxu0 %v965
    %1490 = vmatpush1.bf16.msra.mxu0 %v964
    %1491 = vmatprep.subr.bf16.mxu0 %v969
    %1492 = vmatpush1.bf16.msra.mxu0 %v968
    %1493 = vmatprep.subr.bf16.mxu0 %v973
    %1494 = vmatpush1.bf16.msra.mxu0 %v972
    %1495 = vmatprep.subr.bf16.mxu0 %v977
    %1496 = vmatpush1.bf16.msra.mxu0 %v976
    %1497 = vmatprep.subr.bf16.mxu0 %v981
    %1498 = vmatpush1.bf16.msra.mxu0 %v980
    %1499 = vmatprep.subr.bf16.mxu0 %v985
    %1500 = vmatpush1.bf16.msra.mxu0 %v984
    %1501 = vmatprep.subr.bf16.mxu0 %v989
    %1502 = vmatpush1.bf16.msra.mxu0 %v988
    %1503 = vmatprep.subr.bf16.mxu0 %v993
    %1504 = vmatpush1.bf16.msra.mxu0 %v992
    %1505 = vmatprep.subr.bf16.mxu0 %v997
    %1506 = vmatpush1.bf16.msra.mxu0 %v996
    %1507 = vmatprep.subr.bf16.mxu0 %v1001
    %1508 = vmatpush1.bf16.msra.mxu0 %v1000
    %1509 = vmatprep.subr.bf16.mxu0 %v1005
    %1510 = vmatpush1.bf16.msra.mxu0 %v1004
    %1511 = vmatprep.mubr.bf16.mxu0 %v265
    %1512 = vmatmul.mubr.bf16.gmra.mrb[0].mxu0 %v264
    %v1513 = vpop.f32.mrb[0].mxu0
    %v1514 = vadd.f32 %v1473, %v1513
    %v1515 = vpop.f32.mrb[0].mxu0
    %v1516 = vadd.f32 %v1475, %v1515
    %v1517 = vpop.f32.mrb[0].mxu0
    %v1518 = vpop.f32.mrb[0].mxu0
    %1519 = vdwg.mxu0
    %1520 = vmatprep.subr.bf16.mxu0 %v1009
    %1521 = vmatpush1.bf16.msra.mxu0 %v1008
    %1522 = vmatprep.subr.bf16.mxu0 %v1013
    %1523 = vmatpush1.bf16.msra.mxu0 %v1012
    %1524 = vmatprep.subr.bf16.mxu0 %v1017
    %1525 = vmatpush1.bf16.msra.mxu0 %v1016
    %1526 = vmatprep.subr.bf16.mxu0 %v1021
    %1527 = vmatpush1.bf16.msra.mxu0 %v1020
    %1528 = vmatprep.subr.bf16.mxu0 %v1025
    %1529 = vmatpush1.bf16.msra.mxu0 %v1024
    %1530 = vmatprep.subr.bf16.mxu0 %v1029
    %1531 = vmatpush1.bf16.msra.mxu0 %v1028
    %1532 = vmatprep.subr.bf16.mxu0 %v1033
    %1533 = vmatpush1.bf16.msra.mxu0 %v1032
    %1534 = vmatprep.subr.bf16.mxu0 %v1037
    %1535 = vmatpush1.bf16.msra.mxu0 %v1036
    %1536 = vmatprep.subr.bf16.mxu0 %v1041
    %1537 = vmatpush1.bf16.msra.mxu0 %v1040
    %1538 = vmatprep.subr.bf16.mxu0 %v1045
    %1539 = vmatpush1.bf16.msra.mxu0 %v1044
    %1540 = vmatprep.subr.bf16.mxu0 %v1049
    %1541 = vmatpush1.bf16.msra.mxu0 %v1048
    %1542 = vmatprep.subr.bf16.mxu0 %v1053
    %1543 = vmatpush1.bf16.msra.mxu0 %v1052
    %1544 = vmatprep.subr.bf16.mxu0 %v1057
    %1545 = vmatpush1.bf16.msra.mxu0 %v1056
    %1546 = vmatprep.subr.bf16.mxu0 %v1061
    %1547 = vmatpush1.bf16.msra.mxu0 %v1060
    %1548 = vmatprep.subr.bf16.mxu0 %v1065
    %1549 = vmatpush1.bf16.msra.mxu0 %v1064
    %1550 = vmatprep.subr.bf16.mxu0 %v1069
    %1551 = vmatpush1.bf16.msra.mxu0 %v1068
    %1552 = vmatprep.mubr.bf16.mxu0 %v267
    %1553 = vmatmul.mubr.bf16.gmra.mrb[0].mxu0 %v266
    %v1554 = vpop.f32.mrb[0].mxu0
    %v1555 = vadd.f32 %v1514, %v1554
    %v1556 = vpop.f32.mrb[0].mxu0
    %v1557 = vadd.f32 %v1516, %v1556
    %v1558 = vpop.f32.mrb[0].mxu0
    %v1559 = vpop.f32.mrb[0].mxu0
    %1560 = vdwg.mxu0
    %1561 = vmatprep.subr.bf16.mxu0 %v1073
    %1562 = vmatpush1.bf16.msra.mxu0 %v1072
    %1563 = vmatprep.subr.bf16.mxu0 0
    %1564 = vmatpush1.bf16.msra.mxu0 0
    %1565 = vmatprep.subr.bf16.mxu0 0
    %1566 = vmatpush1.bf16.msra.mxu0 0
    %1567 = vmatprep.subr.bf16.mxu0 0
    %1568 = vmatpush1.bf16.msra.mxu0 0
    %1569 = vmatprep.subr.bf16.mxu0 0
    %1570 = vmatpush1.bf16.msra.mxu0 0
    %1571 = vmatprep.subr.bf16.mxu0 0
    %1572 = vmatpush1.bf16.msra.mxu0 0
    %1573 = vmatprep.subr.bf16.mxu0 0
    %1574 = vmatpush1.bf16.msra.mxu0 0
    %1575 = vmatprep.subr.bf16.mxu0 0
    %1576 = vmatpush1.bf16.msra.mxu0 0
    %1577 = vmatprep.subr.bf16.mxu0 0
    %1578 = vmatpush1.bf16.msra.mxu0 0
    %1579 = vmatprep.subr.bf16.mxu0 0
    %1580 = vmatpush1.bf16.msra.mxu0 0
    %1581 = vmatprep.subr.bf16.mxu0 0
    %1582 = vmatpush1.bf16.msra.mxu0 0
    %1583 = vmatprep.subr.bf16.mxu0 0
    %1584 = vmatpush1.bf16.msra.mxu0 0
    %1585 = vmatprep.subr.bf16.mxu0 0
    %1586 = vmatpush1.bf16.msra.mxu0 0
    %1587 = vmatprep.subr.bf16.mxu0 0
    %1588 = vmatpush1.bf16.msra.mxu0 0
    %1589 = vmatprep.subr.bf16.mxu0 0
    %1590 = vmatpush1.bf16.msra.mxu0 0
    %1591 = vmatprep.subr.bf16.mxu0 0
    %1592 = vmatpush1.bf16.msra.mxu0 0
    %1593 = vmatprep.mubr.bf16.mxu0 0
    %1594 = vmatmul.mubr.bf16.gmra.mrb[0].mxu0 %v1272
    %v1595 = vpop.f32.mrb[0].mxu0
    %v1596 = vadd.f32 %v1555, %v1595
    %v1597 = vpop.f32.mrb[0].mxu0
    %v1598 = vadd.f32 %v1557, %v1597
    %v1599 = vpop.f32.mrb[0].mxu0
    %v1600 = vpop.f32.mrb[0].mxu0
    %1601 = vdwg.mxu0
    %v1602 = vmax.f32 %v1432, 0.0
    %v1603 = vmax.f32 %v1434, 0.0
    %v1604 = vmax.f32 %v1596, 0.0
    %v1605 = vmax.f32 %v1598, 0.0
    %v1606 = vand.u32 2147483647, %v1432
    %v1607 = vand.u32 2147483647, %v1434
    %v1608 = vand.u32 2147483647, %v1596
    %v1609 = vand.u32 2147483647, %v1598
    %v1610 = vsub.f32 0.0, %v1606
    %v1611 = vsub.f32 0.0, %v1607
    %v1612 = vsub.f32 0.0, %v1608
    %v1613 = vsub.f32 0.0, %v1609
    %v1614 = vmul.f32 %v1610, 1.442695
    %v1615 = vpow.pop %v1614
    %v1616 = vmul.f32 %v1611, 1.442695
    %v1617 = vpow.pop %v1616
    %v1618 = vmul.f32 %v1612, 1.442695
    %v1619 = vpow.pop %v1618
    %v1620 = vmul.f32 %v1613, 1.442695
    %v1621 = vpow.pop %v1620
    %v1622 = vadd.f32 %v1615, 1.0
    %v1623 = vlog2.pop %v1622
    %v1624 = vmul.f32 %v1623, 0.6931472
    %v1625 = vmul.f32 -0.5, %v1615
    %v1626 = vadd.f32 %v1625, 1.0
    %v1627 = vmul.f32 %v1626, %v1615
    %v1628 = vand.u32 2147483647, %v1615
    %vm1629 = vcmp.lt.f32.partialorder %v1628, 0.0004427343
    %v1630 = vsel %vm1629, %v1627, %v1624
    %v1631 = vadd.f32 %v1617, 1.0
    %v1632 = vlog2.pop %v1631
    %v1633 = vmul.f32 %v1632, 0.6931472
    %v1634 = vmul.f32 -0.5, %v1617
    %v1635 = vadd.f32 %v1634, 1.0
    %v1636 = vmul.f32 %v1635, %v1617
    %v1637 = vand.u32 2147483647, %v1617
    %vm1638 = vcmp.lt.f32.partialorder %v1637, 0.0004427343
    %v1639 = vsel %vm1638, %v1636, %v1633
    %v1640 = vadd.f32 %v1619, 1.0
    %v1641 = vlog2.pop %v1640
    %v1642 = vmul.f32 %v1641, 0.6931472
    %v1643 = vmul.f32 -0.5, %v1619
    %v1644 = vadd.f32 %v1643, 1.0
    %v1645 = vmul.f32 %v1644, %v1619
    %v1646 = vand.u32 2147483647, %v1619
    %vm1647 = vcmp.lt.f32.partialorder %v1646, 0.0004427343
    %v1648 = vsel %vm1647, %v1645, %v1642
    %v1649 = vadd.f32 %v1621, 1.0
    %v1650 = vlog2.pop %v1649
    %v1651 = vmul.f32 %v1650, 0.6931472
    %v1652 = vmul.f32 -0.5, %v1621
    %v1653 = vadd.f32 %v1652, 1.0
    %v1654 = vmul.f32 %v1653, %v1621
    %v1655 = vand.u32 2147483647, %v1621
    %vm1656 = vcmp.lt.f32.partialorder %v1655, 0.0004427343
    %v1657 = vsel %vm1656, %v1654, %v1651
    %v1658 = vadd.f32 %v1602, %v1630
    %v1659 = vadd.f32 %v1603, %v1639
    %v1660 = vadd.f32 %v1604, %v1648
    %v1661 = vadd.f32 %v1605, %v1657
    %v1662 = vld [vmem:[%s3] sm:$0xff]
    %v1663 = vld [vmem:[%s3 + $0x8] sm:$0xff]
    %v1664 = vld [vmem:[%s3 + $0x10] sm:$0xff]
    %v1665 = vld [vmem:[%s3 + $0x18] sm:$0xff]
    %v1666 = vld [vmem:[%s3 + $0x20] sm:$0xff]
    %v1667 = vld [vmem:[%s3 + $0x28] sm:$0xff]
    %v1668 = vld [vmem:[%s3 + $0x30] sm:$0xff]
    %v1669 = vld [vmem:[%s3 + $0x38] sm:$0xff]
    %v1670 = vld [vmem:[%s3 + $0x40] sm:$0xff]
    %v1671 = vld [vmem:[%s3 + $0x48] sm:$0xff]
    %v1672 = vld [vmem:[%s3 + $0x50] sm:$0xff]
    %v1673 = vld [vmem:[%s3 + $0x58] sm:$0xff]
    %v1674 = vld [vmem:[%s3 + $0x60] sm:$0xff]
    %v1675 = vld [vmem:[%s3 + $0x68] sm:$0xff]
    %v1676 = vld [vmem:[%s3 + $0x70] sm:$0xff]
    %v1677 = vld [vmem:[%s3 + $0x78] sm:$0xff]
    %v1678 = vld [vmem:[%s3 + $0x80] sm:$0xff]
    %v1679 = vld [vmem:[%s3 + $0x88] sm:$0xff]
    %v1680 = vld [vmem:[%s3 + $0x90] sm:$0xff]
    %v1681 = vld [vmem:[%s3 + $0x98] sm:$0xff]
    %v1682 = vld [vmem:[%s3 + $0xa0] sm:$0xff]
    %v1683 = vld [vmem:[%s3 + $0xa8] sm:$0xff]
    %v1684 = vld [vmem:[%s3 + $0xb0] sm:$0xff]
    %v1685 = vld [vmem:[%s3 + $0xb8] sm:$0xff]
    %v1686 = vld [vmem:[%s3 + $0xc0] sm:$0xff]
    %v1687 = vld [vmem:[%s3 + $0xc8] sm:$0xff]
    %v1688 = vld [vmem:[%s3 + $0xd0] sm:$0xff]
    %v1689 = vld [vmem:[%s3 + $0xd8] sm:$0xff]
    %v1690 = vld [vmem:[%s3 + $0xe0] sm:$0xff]
    %v1691 = vld [vmem:[%s3 + $0xe8] sm:$0xff]
    %v1692 = vld [vmem:[%s3 + $0xf0] sm:$0xff]
    %v1693 = vld [vmem:[%s3 + $0xf8] sm:$0xff]
    %v1694 = vld [vmem:[%s3 + $0x100] sm:$0xff]
    %v1695 = vld [vmem:[%s3 + $0x108] sm:$0xff]
    %v1696 = vld [vmem:[%s3 + $0x110] sm:$0xff]
    %v1697 = vld [vmem:[%s3 + $0x118] sm:$0xff]
    %v1698 = vld [vmem:[%s3 + $0x120] sm:$0xff]
    %v1699 = vld [vmem:[%s3 + $0x128] sm:$0xff]
    %v1700 = vld [vmem:[%s3 + $0x130] sm:$0xff]
    %v1701 = vld [vmem:[%s3 + $0x138] sm:$0xff]
    %v1702 = vld [vmem:[%s3 + $0x140] sm:$0xff]
    %v1703 = vld [vmem:[%s3 + $0x148] sm:$0xff]
    %v1704 = vld [vmem:[%s3 + $0x150] sm:$0xff]
    %v1705 = vld [vmem:[%s3 + $0x158] sm:$0xff]
    %v1706 = vld [vmem:[%s3 + $0x160] sm:$0xff]
    %v1707 = vld [vmem:[%s3 + $0x168] sm:$0xff]
    %v1708 = vld [vmem:[%s3 + $0x170] sm:$0xff]
    %v1709 = vld [vmem:[%s3 + $0x178] sm:$0xff]
    %v1710 = vld [vmem:[%s3 + $0x180] sm:$0xff]
    %v1711 = vld [vmem:[%s3 + $0x188] sm:$0xff]
    %v1712 = vld [vmem:[%s3 + $0x190] sm:$0xff]
    %v1713 = vld [vmem:[%s3 + $0x198] sm:$0xff]
    %v1714 = vld [vmem:[%s3 + $0x1a0] sm:$0xff]
    %v1715 = vld [vmem:[%s3 + $0x1a8] sm:$0xff]
    %v1716 = vld [vmem:[%s3 + $0x1b0] sm:$0xff]
    %v1717 = vld [vmem:[%s3 + $0x1b8] sm:$0xff]
    %v1718 = vld [vmem:[%s3 + $0x1c0] sm:$0xff]
    %v1719 = vld [vmem:[%s3 + $0x1c8] sm:$0xff]
    %v1720 = vld [vmem:[%s3 + $0x1d0] sm:$0xff]
    %v1721 = vld [vmem:[%s3 + $0x1d8] sm:$0xff]
    %v1722 = vld [vmem:[%s3 + $0x1e0] sm:$0xff]
    %v1723 = vld [vmem:[%s3 + $0x1e8] sm:$0xff]
    %v1724 = vld [vmem:[%s3 + $0x1f0] sm:$0xff]
    %v1725 = vld [vmem:[%s3 + $0x1f8] sm:$0xff]
    %v1726 = vld [vmem:[%s4] sm:$0x3]
    %v1727 = vpack.c.bf16 %v1658, %v1658
    %v1728 = vpack.c.bf16 %v1659, %v1659
    %v1729 = vpack.c.bf16 %v1660, %v1660
    %v1730 = vpack.c.bf16 %v1661, %v1661
    %v1732 = vlaneseq
    %v1733 = vshrl.u32 %v1732, 7
    %v1734 = vsub.s32 0, %v1733
    %v1735 = vrot.slane %v1726, %v1734
    %v1736 = vlaneseq
    %v1737 = vshrl.u32 %v1736, 7
    %v1738 = vsub.s32 1, %v1737
    %v1739 = vrot.slane %v1726, %v1738
    %v1806 = vunpack.c.l.b16 %v1662
    %v1807 = vunpack.c.h.b16 %v1662
    %v1808 = vunpack.c.l.b16 %v1663
    %v1809 = vunpack.c.h.b16 %v1663
    %v1810 = vunpack.c.l.b16 %v1664
    %v1811 = vunpack.c.h.b16 %v1664
    %v1812 = vunpack.c.l.b16 %v1665
    %v1813 = vunpack.c.h.b16 %v1665
    %v1814 = vunpack.c.l.b16 %v1666
    %v1815 = vunpack.c.h.b16 %v1666
    %v1816 = vunpack.c.l.b16 %v1667
    %v1817 = vunpack.c.h.b16 %v1667
    %v1818 = vunpack.c.l.b16 %v1668
    %v1819 = vunpack.c.h.b16 %v1668
    %v1820 = vunpack.c.l.b16 %v1669
    %v1821 = vunpack.c.h.b16 %v1669
    %v1822 = vunpack.c.l.b16 %v1670
    %v1823 = vunpack.c.h.b16 %v1670
    %v1824 = vunpack.c.l.b16 %v1671
    %v1825 = vunpack.c.h.b16 %v1671
    %v1826 = vunpack.c.l.b16 %v1672
    %v1827 = vunpack.c.h.b16 %v1672
    %v1828 = vunpack.c.l.b16 %v1673
    %v1829 = vunpack.c.h.b16 %v1673
    %v1830 = vunpack.c.l.b16 %v1674
    %v1831 = vunpack.c.h.b16 %v1674
    %v1832 = vunpack.c.l.b16 %v1675
    %v1833 = vunpack.c.h.b16 %v1675
    %v1834 = vunpack.c.l.b16 %v1676
    %v1835 = vunpack.c.h.b16 %v1676
    %v1836 = vunpack.c.l.b16 %v1677
    %v1837 = vunpack.c.h.b16 %v1677
    %v1838 = vunpack.c.l.b16 %v1678
    %v1839 = vunpack.c.h.b16 %v1678
    %v1840 = vunpack.c.l.b16 %v1679
    %v1841 = vunpack.c.h.b16 %v1679
    %v1842 = vunpack.c.l.b16 %v1680
    %v1843 = vunpack.c.h.b16 %v1680
    %v1844 = vunpack.c.l.b16 %v1681
    %v1845 = vunpack.c.h.b16 %v1681
    %v1846 = vunpack.c.l.b16 %v1682
    %v1847 = vunpack.c.h.b16 %v1682
    %v1848 = vunpack.c.l.b16 %v1683
    %v1849 = vunpack.c.h.b16 %v1683
    %v1850 = vunpack.c.l.b16 %v1684
    %v1851 = vunpack.c.h.b16 %v1684
    %v1852 = vunpack.c.l.b16 %v1685
    %v1853 = vunpack.c.h.b16 %v1685
    %v1854 = vunpack.c.l.b16 %v1686
    %v1855 = vunpack.c.h.b16 %v1686
    %v1856 = vunpack.c.l.b16 %v1687
    %v1857 = vunpack.c.h.b16 %v1687
    %v1858 = vunpack.c.l.b16 %v1688
    %v1859 = vunpack.c.h.b16 %v1688
    %v1860 = vunpack.c.l.b16 %v1689
    %v1861 = vunpack.c.h.b16 %v1689
    %v1862 = vunpack.c.l.b16 %v1690
    %v1863 = vunpack.c.h.b16 %v1690
    %v1864 = vunpack.c.l.b16 %v1691
    %v1865 = vunpack.c.h.b16 %v1691
    %v1866 = vunpack.c.l.b16 %v1692
    %v1867 = vunpack.c.h.b16 %v1692
    %v1868 = vunpack.c.l.b16 %v1693
    %v1869 = vunpack.c.h.b16 %v1693
    %v1870 = vunpack.c.l.b16 %v1694
    %v1871 = vunpack.c.h.b16 %v1694
    %v1872 = vunpack.c.l.b16 %v1695
    %v1873 = vunpack.c.h.b16 %v1695
    %v1874 = vunpack.c.l.b16 %v1696
    %v1875 = vunpack.c.h.b16 %v1696
    %v1876 = vunpack.c.l.b16 %v1697
    %v1877 = vunpack.c.h.b16 %v1697
    %v1878 = vunpack.c.l.b16 %v1698
    %v1879 = vunpack.c.h.b16 %v1698
    %v1880 = vunpack.c.l.b16 %v1699
    %v1881 = vunpack.c.h.b16 %v1699
    %v1882 = vunpack.c.l.b16 %v1700
    %v1883 = vunpack.c.h.b16 %v1700
    %v1884 = vunpack.c.l.b16 %v1701
    %v1885 = vunpack.c.h.b16 %v1701
    %v1886 = vunpack.c.l.b16 %v1702
    %v1887 = vunpack.c.h.b16 %v1702
    %v1888 = vunpack.c.l.b16 %v1703
    %v1889 = vunpack.c.h.b16 %v1703
    %v1890 = vunpack.c.l.b16 %v1704
    %v1891 = vunpack.c.h.b16 %v1704
    %v1892 = vunpack.c.l.b16 %v1705
    %v1893 = vunpack.c.h.b16 %v1705
    %v1894 = vunpack.c.l.b16 %v1706
    %v1895 = vunpack.c.h.b16 %v1706
    %v1896 = vunpack.c.l.b16 %v1707
    %v1897 = vunpack.c.h.b16 %v1707
    %v1898 = vunpack.c.l.b16 %v1708
    %v1899 = vunpack.c.h.b16 %v1708
    %v1900 = vunpack.c.l.b16 %v1709
    %v1901 = vunpack.c.h.b16 %v1709
    %v1902 = vunpack.c.l.b16 %v1710
    %v1903 = vunpack.c.h.b16 %v1710
    %v1904 = vunpack.c.l.b16 %v1711
    %v1905 = vunpack.c.h.b16 %v1711
    %v1906 = vunpack.c.l.b16 %v1712
    %v1907 = vunpack.c.h.b16 %v1712
    %v1908 = vunpack.c.l.b16 %v1713
    %v1909 = vunpack.c.h.b16 %v1713
    %v1910 = vunpack.c.l.b16 %v1714
    %v1911 = vunpack.c.h.b16 %v1714
    %v1912 = vunpack.c.l.b16 %v1715
    %v1913 = vunpack.c.h.b16 %v1715
    %v1914 = vunpack.c.l.b16 %v1716
    %v1915 = vunpack.c.h.b16 %v1716
    %v1916 = vunpack.c.l.b16 %v1717
    %v1917 = vunpack.c.h.b16 %v1717
    %v1918 = vunpack.c.l.b16 %v1718
    %v1919 = vunpack.c.h.b16 %v1718
    %v1920 = vunpack.c.l.b16 %v1719
    %v1921 = vunpack.c.h.b16 %v1719
    %v1922 = vunpack.c.l.b16 %v1720
    %v1923 = vunpack.c.h.b16 %v1720
    %v1924 = vunpack.c.l.b16 %v1721
    %v1925 = vunpack.c.h.b16 %v1721
    %v1926 = vunpack.c.l.b16 %v1722
    %v1927 = vunpack.c.h.b16 %v1722
    %v1928 = vunpack.c.l.b16 %v1723
    %v1929 = vunpack.c.h.b16 %v1723
    %v1930 = vunpack.c.l.b16 %v1724
    %v1931 = vunpack.c.h.b16 %v1724
    %v1932 = vunpack.c.l.b16 %v1725
    %v1933 = vunpack.c.h.b16 %v1725
    %v1934 = vpack.c.b16 %v1808, %v1806
    %v1935 = vpack.c.b16 %v1809, %v1807
    %v1936 = vpack.c.b16 %v1812, %v1810
    %v1937 = vpack.c.b16 %v1813, %v1811
    %v1938 = vpack.c.b16 %v1816, %v1814
    %v1939 = vpack.c.b16 %v1817, %v1815
    %v1940 = vpack.c.b16 %v1820, %v1818
    %v1941 = vpack.c.b16 %v1821, %v1819
    %v1942 = vpack.c.b16 %v1824, %v1822
    %v1943 = vpack.c.b16 %v1825, %v1823
    %v1944 = vpack.c.b16 %v1828, %v1826
    %v1945 = vpack.c.b16 %v1829, %v1827
    %v1946 = vpack.c.b16 %v1832, %v1830
    %v1947 = vpack.c.b16 %v1833, %v1831
    %v1948 = vpack.c.b16 %v1836, %v1834
    %v1949 = vpack.c.b16 %v1837, %v1835
    %v1950 = vpack.c.b16 %v1840, %v1838
    %v1951 = vpack.c.b16 %v1841, %v1839
    %v1952 = vpack.c.b16 %v1844, %v1842
    %v1953 = vpack.c.b16 %v1845, %v1843
    %v1954 = vpack.c.b16 %v1848, %v1846
    %v1955 = vpack.c.b16 %v1849, %v1847
    %v1956 = vpack.c.b16 %v1852, %v1850
    %v1957 = vpack.c.b16 %v1853, %v1851
    %v1958 = vpack.c.b16 %v1856, %v1854
    %v1959 = vpack.c.b16 %v1857, %v1855
    %v1960 = vpack.c.b16 %v1860, %v1858
    %v1961 = vpack.c.b16 %v1861, %v1859
    %v1962 = vpack.c.b16 %v1864, %v1862
    %v1963 = vpack.c.b16 %v1865, %v1863
    %v1964 = vpack.c.b16 %v1868, %v1866
    %v1965 = vpack.c.b16 %v1869, %v1867
    %v1966 = vpack.c.b16 %v1872, %v1870
    %v1967 = vpack.c.b16 %v1873, %v1871
    %v1968 = vpack.c.b16 %v1876, %v1874
    %v1969 = vpack.c.b16 %v1877, %v1875
    %v1970 = vpack.c.b16 %v1880, %v1878
    %v1971 = vpack.c.b16 %v1881, %v1879
    %v1972 = vpack.c.b16 %v1884, %v1882
    %v1973 = vpack.c.b16 %v1885, %v1883
    %v1974 = vpack.c.b16 %v1888, %v1886
    %v1975 = vpack.c.b16 %v1889, %v1887
    %v1976 = vpack.c.b16 %v1892, %v1890
    %v1977 = vpack.c.b16 %v1893, %v1891
    %v1978 = vpack.c.b16 %v1896, %v1894
    %v1979 = vpack.c.b16 %v1897, %v1895
    %v1980 = vpack.c.b16 %v1900, %v1898
    %v1981 = vpack.c.b16 %v1901, %v1899
    %v1982 = vpack.c.b16 %v1904, %v1902
    %v1983 = vpack.c.b16 %v1905, %v1903
    %v1984 = vpack.c.b16 %v1908, %v1906
    %v1985 = vpack.c.b16 %v1909, %v1907
    %v1986 = vpack.c.b16 %v1912, %v1910
    %v1987 = vpack.c.b16 %v1913, %v1911
    %v1988 = vpack.c.b16 %v1916, %v1914
    %v1989 = vpack.c.b16 %v1917, %v1915
    %v1990 = vpack.c.b16 %v1920, %v1918
    %v1991 = vpack.c.b16 %v1921, %v1919
    %v1992 = vpack.c.b16 %v1924, %v1922
    %v1993 = vpack.c.b16 %v1925, %v1923
    %v1994 = vpack.c.b16 %v1928, %v1926
    %v1995 = vpack.c.b16 %v1929, %v1927
    %v1996 = vpack.c.b16 %v1932, %v1930
    %v1997 = vpack.c.b16 %v1933, %v1931
    %2062 = vmatprep.subr.bf16.mxu0 %v1935
    %2063 = vmatpush1.bf16.msra.mxu0 %v1934
    %2064 = vmatprep.subr.bf16.mxu0 %v1937
    %2065 = vmatpush1.bf16.msra.mxu0 %v1936
    %2066 = vmatprep.subr.bf16.mxu0 %v1939
    %2067 = vmatpush1.bf16.msra.mxu0 %v1938
    %2068 = vmatprep.subr.bf16.mxu0 %v1941
    %2069 = vmatpush1.bf16.msra.mxu0 %v1940
    %2070 = vmatprep.subr.bf16.mxu0 %v1943
    %2071 = vmatpush1.bf16.msra.mxu0 %v1942
    %2072 = vmatprep.subr.bf16.mxu0 %v1945
    %2073 = vmatpush1.bf16.msra.mxu0 %v1944
    %2074 = vmatprep.subr.bf16.mxu0 %v1947
    %2075 = vmatpush1.bf16.msra.mxu0 %v1946
    %2076 = vmatprep.subr.bf16.mxu0 %v1949
    %2077 = vmatpush1.bf16.msra.mxu0 %v1948
    %2078 = vmatprep.subr.bf16.mxu0 %v1951
    %2079 = vmatpush1.bf16.msra.mxu0 %v1950
    %2080 = vmatprep.subr.bf16.mxu0 %v1953
    %2081 = vmatpush1.bf16.msra.mxu0 %v1952
    %2082 = vmatprep.subr.bf16.mxu0 %v1955
    %2083 = vmatpush1.bf16.msra.mxu0 %v1954
    %2084 = vmatprep.subr.bf16.mxu0 %v1957
    %2085 = vmatpush1.bf16.msra.mxu0 %v1956
    %2086 = vmatprep.subr.bf16.mxu0 %v1959
    %2087 = vmatpush1.bf16.msra.mxu0 %v1958
    %2088 = vmatprep.subr.bf16.mxu0 %v1961
    %2089 = vmatpush1.bf16.msra.mxu0 %v1960
    %2090 = vmatprep.subr.bf16.mxu0 %v1963
    %2091 = vmatpush1.bf16.msra.mxu0 %v1962
    %2092 = vmatprep.subr.bf16.mxu0 %v1965
    %2093 = vmatpush1.bf16.msra.mxu0 %v1964
    %2094 = vmatprep.mubr.bf16.mxu0 %v1728
    %2095 = vmatmul.mubr.bf16.gmra.mrb[0].mxu0 %v1727
    %v2096 = vpop.f32.mrb[0].mxu0
    %v2097 = vadd.f32 %v1735, %v2096
    %v2098 = vpop.f32.mrb[0].mxu0
    %v2099 = vadd.f32 %v1739, %v2098
    %v2100 = vpop.f32.mrb[0].mxu0
    %v2101 = vpop.f32.mrb[0].mxu0
    %2102 = vdwg.mxu0
    %2103 = vmatprep.subr.bf16.mxu0 %v1967
    %2104 = vmatpush1.bf16.msra.mxu0 %v1966
    %2105 = vmatprep.subr.bf16.mxu0 %v1969
    %2106 = vmatpush1.bf16.msra.mxu0 %v1968
    %2107 = vmatprep.subr.bf16.mxu0 %v1971
    %2108 = vmatpush1.bf16.msra.mxu0 %v1970
    %2109 = vmatprep.subr.bf16.mxu0 %v1973
    %2110 = vmatpush1.bf16.msra.mxu0 %v1972
    %2111 = vmatprep.subr.bf16.mxu0 %v1975
    %2112 = vmatpush1.bf16.msra.mxu0 %v1974
    %2113 = vmatprep.subr.bf16.mxu0 %v1977
    %2114 = vmatpush1.bf16.msra.mxu0 %v1976
    %2115 = vmatprep.subr.bf16.mxu0 %v1979
    %2116 = vmatpush1.bf16.msra.mxu0 %v1978
    %2117 = vmatprep.subr.bf16.mxu0 %v1981
    %2118 = vmatpush1.bf16.msra.mxu0 %v1980
    %2119 = vmatprep.subr.bf16.mxu0 %v1983
    %2120 = vmatpush1.bf16.msra.mxu0 %v1982
    %2121 = vmatprep.subr.bf16.mxu0 %v1985
    %2122 = vmatpush1.bf16.msra.mxu0 %v1984
    %2123 = vmatprep.subr.bf16.mxu0 %v1987
    %2124 = vmatpush1.bf16.msra.mxu0 %v1986
    %2125 = vmatprep.subr.bf16.mxu0 %v1989
    %2126 = vmatpush1.bf16.msra.mxu0 %v1988
    %2127 = vmatprep.subr.bf16.mxu0 %v1991
    %2128 = vmatpush1.bf16.msra.mxu0 %v1990
    %2129 = vmatprep.subr.bf16.mxu0 %v1993
    %2130 = vmatpush1.bf16.msra.mxu0 %v1992
    %2131 = vmatprep.subr.bf16.mxu0 %v1995
    %2132 = vmatpush1.bf16.msra.mxu0 %v1994
    %2133 = vmatprep.subr.bf16.mxu0 %v1997
    %2134 = vmatpush1.bf16.msra.mxu0 %v1996
    %2135 = vmatprep.mubr.bf16.mxu0 %v1730
    %2136 = vmatmul.mubr.bf16.gmra.mrb[0].mxu0 %v1729
    %v2137 = vpop.f32.mrb[0].mxu0
    %v2138 = vadd.f32 %v2097, %v2137
    %v2139 = vpop.f32.mrb[0].mxu0
    %v2140 = vadd.f32 %v2099, %v2139
    %v2141 = vpop.f32.mrb[0].mxu0
    %v2142 = vpop.f32.mrb[0].mxu0
    %2143 = vdwg.mxu0
    %v2144 = vmax.f32 %v2138, 0.0
    %v2145 = vmax.f32 %v2140, 0.0
    %v2146 = vand.u32 2147483647, %v2138
    %v2147 = vand.u32 2147483647, %v2140
    %v2148 = vsub.f32 0.0, %v2146
    %v2149 = vsub.f32 0.0, %v2147
    %v2150 = vmul.f32 %v2148, 1.442695
    %v2151 = vpow.pop %v2150
    %v2152 = vmul.f32 %v2149, 1.442695
    %v2153 = vpow.pop %v2152
    %v2154 = vadd.f32 %v2151, 1.0
    %v2155 = vlog2.pop %v2154
    %v2156 = vmul.f32 %v2155, 0.6931472
    %v2157 = vmul.f32 -0.5, %v2151
    %v2158 = vadd.f32 %v2157, 1.0
    %v2159 = vmul.f32 %v2158, %v2151
    %v2160 = vand.u32 2147483647, %v2151
    %vm2161 = vcmp.lt.f32.partialorder %v2160, 0.0004427343
    %v2162 = vsel %vm2161, %v2159, %v2156
    %v2163 = vadd.f32 %v2153, 1.0
    %v2164 = vlog2.pop %v2163
    %v2165 = vmul.f32 %v2164, 0.6931472
    %v2166 = vmul.f32 -0.5, %v2153
    %v2167 = vadd.f32 %v2166, 1.0
    %v2168 = vmul.f32 %v2167, %v2153
    %v2169 = vand.u32 2147483647, %v2153
    %vm2170 = vcmp.lt.f32.partialorder %v2169, 0.0004427343
    %v2171 = vsel %vm2170, %v2168, %v2165
    %v2172 = vadd.f32 %v2144, %v2162
    %v2173 = vadd.f32 %v2145, %v2171
    %v2174 = vld [vmem:[%s5] sm:$0xf]
    %v2175 = vld [vmem:[%s5 + $0x4] sm:$0xf]
    %v2176 = vld [vmem:[%s5 + $0x8] sm:$0xf]
    %v2177 = vld [vmem:[%s5 + $0xc] sm:$0xf]
    %v2178 = vld [vmem:[%s5 + $0x10] sm:$0xf]
    %v2179 = vld [vmem:[%s5 + $0x14] sm:$0xf]
    %v2180 = vld [vmem:[%s5 + $0x18] sm:$0xf]
    %v2181 = vld [vmem:[%s5 + $0x1c] sm:$0xf]
    %v2182 = vld [vmem:[%s5 + $0x20] sm:$0xf]
    %v2183 = vld [vmem:[%s5 + $0x24] sm:$0xf]
    %v2184 = vld [vmem:[%s5 + $0x28] sm:$0xf]
    %v2185 = vld [vmem:[%s5 + $0x2c] sm:$0xf]
    %v2186 = vld [vmem:[%s5 + $0x30] sm:$0xf]
    %v2187 = vld [vmem:[%s5 + $0x34] sm:$0xf]
    %v2188 = vld [vmem:[%s5 + $0x38] sm:$0xf]
    %v2189 = vld [vmem:[%s5 + $0x3c] sm:$0xf]
    %v2190 = vld [vmem:[%s5 + $0x40] sm:$0xf]
    %v2191 = vld [vmem:[%s5 + $0x44] sm:$0xf]
    %v2192 = vld [vmem:[%s5 + $0x48] sm:$0xf]
    %v2193 = vld [vmem:[%s5 + $0x4c] sm:$0xf]
    %v2194 = vld [vmem:[%s5 + $0x50] sm:$0xf]
    %v2195 = vld [vmem:[%s5 + $0x54] sm:$0xf]
    %v2196 = vld [vmem:[%s5 + $0x58] sm:$0xf]
    %v2197 = vld [vmem:[%s5 + $0x5c] sm:$0xf]
    %v2198 = vld [vmem:[%s5 + $0x60] sm:$0xf]
    %v2199 = vld [vmem:[%s5 + $0x64] sm:$0xf]
    %v2200 = vld [vmem:[%s5 + $0x68] sm:$0xf]
    %v2201 = vld [vmem:[%s5 + $0x6c] sm:$0xf]
    %v2202 = vld [vmem:[%s5 + $0x70] sm:$0xf]
    %v2203 = vld [vmem:[%s5 + $0x74] sm:$0xf]
    %v2204 = vld [vmem:[%s5 + $0x78] sm:$0xf]
    %v2205 = vld [vmem:[%s5 + $0x7c] sm:$0xf]
    %v2206 = vld [vmem:[%s6] sm:$0x1]
    %v2207 = vpack.c.bf16 %v2172, %v2172
    %v2208 = vpack.c.bf16 %v2173, %v2173
    %v2210 = vlaneseq
    %v2211 = vshrl.u32 %v2210, 7
    %v2212 = vsub.s32 0, %v2211
    %v2213 = vrot.slane %v2206, %v2212
    %v2247 = vunpack.c.l.b16 %v2174
    %v2248 = vunpack.c.l.b16 %v2175
    %v2249 = vunpack.c.l.b16 %v2176
    %v2250 = vunpack.c.l.b16 %v2177
    %v2251 = vunpack.c.l.b16 %v2178
    %v2252 = vunpack.c.l.b16 %v2179
    %v2253 = vunpack.c.l.b16 %v2180
    %v2254 = vunpack.c.l.b16 %v2181
    %v2255 = vunpack.c.l.b16 %v2182
    %v2256 = vunpack.c.l.b16 %v2183
    %v2257 = vunpack.c.l.b16 %v2184
    %v2258 = vunpack.c.l.b16 %v2185
    %v2259 = vunpack.c.l.b16 %v2186
    %v2260 = vunpack.c.l.b16 %v2187
    %v2261 = vunpack.c.l.b16 %v2188
    %v2262 = vunpack.c.l.b16 %v2189
    %v2263 = vunpack.c.l.b16 %v2190
    %v2264 = vunpack.c.l.b16 %v2191
    %v2265 = vunpack.c.l.b16 %v2192
    %v2266 = vunpack.c.l.b16 %v2193
    %v2267 = vunpack.c.l.b16 %v2194
    %v2268 = vunpack.c.l.b16 %v2195
    %v2269 = vunpack.c.l.b16 %v2196
    %v2270 = vunpack.c.l.b16 %v2197
    %v2271 = vunpack.c.l.b16 %v2198
    %v2272 = vunpack.c.l.b16 %v2199
    %v2273 = vunpack.c.l.b16 %v2200
    %v2274 = vunpack.c.l.b16 %v2201
    %v2275 = vunpack.c.l.b16 %v2202
    %v2276 = vunpack.c.l.b16 %v2203
    %v2277 = vunpack.c.l.b16 %v2204
    %v2278 = vunpack.c.l.b16 %v2205
    %v2279 = vpack.c.b16 %v2248, %v2247
    %v2280 = vpack.c.b16 %v2250, %v2249
    %v2281 = vpack.c.b16 %v2252, %v2251
    %v2282 = vpack.c.b16 %v2254, %v2253
    %v2283 = vpack.c.b16 %v2256, %v2255
    %v2284 = vpack.c.b16 %v2258, %v2257
    %v2285 = vpack.c.b16 %v2260, %v2259
    %v2286 = vpack.c.b16 %v2262, %v2261
    %v2287 = vpack.c.b16 %v2264, %v2263
    %v2288 = vpack.c.b16 %v2266, %v2265
    %v2289 = vpack.c.b16 %v2268, %v2267
    %v2290 = vpack.c.b16 %v2270, %v2269
    %v2291 = vpack.c.b16 %v2272, %v2271
    %v2292 = vpack.c.b16 %v2274, %v2273
    %v2293 = vpack.c.b16 %v2276, %v2275
    %v2294 = vpack.c.b16 %v2278, %v2277
    %2311 = vmatprep.subr.bf16.mxu0 0
    %2312 = vmatpush1.bf16.msra.mxu0 %v2279
    %2313 = vmatprep.subr.bf16.mxu0 0
    %2314 = vmatpush1.bf16.msra.mxu0 %v2280
    %2315 = vmatprep.subr.bf16.mxu0 0
    %2316 = vmatpush1.bf16.msra.mxu0 %v2281
    %2317 = vmatprep.subr.bf16.mxu0 0
    %2318 = vmatpush1.bf16.msra.mxu0 %v2282
    %2319 = vmatprep.subr.bf16.mxu0 0
    %2320 = vmatpush1.bf16.msra.mxu0 %v2283
    %2321 = vmatprep.subr.bf16.mxu0 0
    %2322 = vmatpush1.bf16.msra.mxu0 %v2284
    %2323 = vmatprep.subr.bf16.mxu0 0
    %2324 = vmatpush1.bf16.msra.mxu0 %v2285
    %2325 = vmatprep.subr.bf16.mxu0 0
    %2326 = vmatpush1.bf16.msra.mxu0 %v2286
    %2327 = vmatprep.subr.bf16.mxu0 0
    %2328 = vmatpush1.bf16.msra.mxu0 %v2287
    %2329 = vmatprep.subr.bf16.mxu0 0
    %2330 = vmatpush1.bf16.msra.mxu0 %v2288
    %2331 = vmatprep.subr.bf16.mxu0 0
    %2332 = vmatpush1.bf16.msra.mxu0 %v2289
    %2333 = vmatprep.subr.bf16.mxu0 0
    %2334 = vmatpush1.bf16.msra.mxu0 %v2290
    %2335 = vmatprep.subr.bf16.mxu0 0
    %2336 = vmatpush1.bf16.msra.mxu0 %v2291
    %2337 = vmatprep.subr.bf16.mxu0 0
    %2338 = vmatpush1.bf16.msra.mxu0 %v2292
    %2339 = vmatprep.subr.bf16.mxu0 0
    %2340 = vmatpush1.bf16.msra.mxu0 %v2293
    %2341 = vmatprep.subr.bf16.mxu0 0
    %2342 = vmatpush1.bf16.msra.mxu0 %v2294
    %2343 = vmatprep.mubr.bf16.mxu0 %v2208
    %2344 = vmatmul.mubr.bf16.gmra.mrb[0].mxu0 %v2207
    %v2345 = vpop.f32.mrb[0].mxu0
    %v2346 = vadd.f32 %v2213, %v2345
    %v2347 = vpop.f32.mrb[0].mxu0
    %v2348 = vpop.f32.mrb[0].mxu0
    %v2349 = vpop.f32.mrb[0].mxu0
    %2350 = vdwg.mxu0
    %v2351 = vmax.f32 %v2346, 0.0
    %v2352 = vand.u32 2147483647, %v2346
    %v2353 = vsub.f32 0.0, %v2352
    %v2354 = vmul.f32 %v2353, 1.442695
    %v2355 = vpow.pop %v2354
    %v2356 = vadd.f32 %v2355, 1.0
    %v2357 = vlog2.pop %v2356
    %v2358 = vmul.f32 %v2357, 0.6931472
    %v2359 = vmul.f32 -0.5, %v2355
    %v2360 = vadd.f32 %v2359, 1.0
    %v2361 = vmul.f32 %v2360, %v2355
    %v2362 = vand.u32 2147483647, %v2355
    %vm2363 = vcmp.lt.f32.partialorder %v2362, 0.0004427343
    %v2364 = vsel %vm2363, %v2361, %v2358
    %v2365 = vadd.f32 %v2351, %v2364
    %v2366 = vld [vmem:[%s7] sm:$0xf]
    %v2367 = vld [vmem:[%s7 + $0x4] sm:$0xf]
    %v2368 = vld [vmem:[%s7 + $0x8] sm:$0xf]
    %v2369 = vld [vmem:[%s7 + $0xc] sm:$0xf]
    %v2370 = vld [vmem:[%s7 + $0x10] sm:$0xf]
    %v2371 = vld [vmem:[%s7 + $0x14] sm:$0xf]
    %v2372 = vld [vmem:[%s7 + $0x18] sm:$0xf]
    %v2373 = vld [vmem:[%s7 + $0x1c] sm:$0xf]
    %v2374 = vld [vmem:[%s7 + $0x20] sm:$0xf]
    %v2375 = vld [vmem:[%s7 + $0x24] sm:$0xf]
    %v2376 = vld [vmem:[%s7 + $0x28] sm:$0xf]
    %v2377 = vld [vmem:[%s7 + $0x2c] sm:$0xf]
    %v2378 = vld [vmem:[%s7 + $0x30] sm:$0xf]
    %v2379 = vld [vmem:[%s7 + $0x34] sm:$0xf]
    %v2380 = vld [vmem:[%s7 + $0x38] sm:$0xf]
    %v2381 = vld [vmem:[%s7 + $0x3c] sm:$0xf]
    %v2382 = vld [vmem:[%s8] sm:$0x1]
    %v2383 = vpack.c.bf16 %v2365, %v2365
    %v2385 = vlaneseq
    %v2386 = vshrl.u32 %v2385, 7
    %v2387 = vsub.s32 0, %v2386
    %v2388 = vrot.slane %v2382, %v2387
    %v2406 = vunpack.c.l.b16 %v2366
    %v2407 = vunpack.c.l.b16 %v2367
    %v2408 = vunpack.c.l.b16 %v2368
    %v2409 = vunpack.c.l.b16 %v2369
    %v2410 = vunpack.c.l.b16 %v2370
    %v2411 = vunpack.c.l.b16 %v2371
    %v2412 = vunpack.c.l.b16 %v2372
    %v2413 = vunpack.c.l.b16 %v2373
    %v2414 = vunpack.c.l.b16 %v2374
    %v2415 = vunpack.c.l.b16 %v2375
    %v2416 = vunpack.c.l.b16 %v2376
    %v2417 = vunpack.c.l.b16 %v2377
    %v2418 = vunpack.c.l.b16 %v2378
    %v2419 = vunpack.c.l.b16 %v2379
    %v2420 = vunpack.c.l.b16 %v2380
    %v2421 = vunpack.c.l.b16 %v2381
    %v2422 = vpack.c.b16 %v2407, %v2406
    %v2423 = vpack.c.b16 %v2409, %v2408
    %v2424 = vpack.c.b16 %v2411, %v2410
    %v2425 = vpack.c.b16 %v2413, %v2412
    %v2426 = vpack.c.b16 %v2415, %v2414
    %v2427 = vpack.c.b16 %v2417, %v2416
    %v2428 = vpack.c.b16 %v2419, %v2418
    %v2429 = vpack.c.b16 %v2421, %v2420
    %2438 = vmatprep.subr.bf16.mxu0 0
    %2439 = vmatpush1.bf16.msra.mxu0 %v2422
    %2440 = vmatprep.subr.bf16.mxu0 0
    %2441 = vmatpush1.bf16.msra.mxu0 %v2423
    %2442 = vmatprep.subr.bf16.mxu0 0
    %2443 = vmatpush1.bf16.msra.mxu0 %v2424
    %2444 = vmatprep.subr.bf16.mxu0 0
    %2445 = vmatpush1.bf16.msra.mxu0 %v2425
    %2446 = vmatprep.subr.bf16.mxu0 0
    %2447 = vmatpush1.bf16.msra.mxu0 %v2426
    %2448 = vmatprep.subr.bf16.mxu0 0
    %2449 = vmatpush1.bf16.msra.mxu0 %v2427
    %2450 = vmatprep.subr.bf16.mxu0 0
    %2451 = vmatpush1.bf16.msra.mxu0 %v2428
    %2452 = vmatprep.subr.bf16.mxu0 0
    %2453 = vmatpush1.bf16.msra.mxu0 %v2429
    %2454 = vmatprep.subr.bf16.mxu0 0
    %2455 = vmatpush1.bf16.msra.mxu0 0
    %2456 = vmatprep.subr.bf16.mxu0 0
    %2457 = vmatpush1.bf16.msra.mxu0 0
    %2458 = vmatprep.subr.bf16.mxu0 0
    %2459 = vmatpush1.bf16.msra.mxu0 0
    %2460 = vmatprep.subr.bf16.mxu0 0
    %2461 = vmatpush1.bf16.msra.mxu0 0
    %2462 = vmatprep.subr.bf16.mxu0 0
    %2463 = vmatpush1.bf16.msra.mxu0 0
    %2464 = vmatprep.subr.bf16.mxu0 0
    %2465 = vmatpush1.bf16.msra.mxu0 0
    %2466 = vmatprep.subr.bf16.mxu0 0
    %2467 = vmatpush1.bf16.msra.mxu0 0
    %2468 = vmatprep.subr.bf16.mxu0 0
    %2469 = vmatpush1.bf16.msra.mxu0 0
    %2470 = vmatprep.mubr.bf16.mxu0 0
    %2471 = vmatmul.mubr.bf16.gmra.mrb[0].mxu0 %v2383
    %v2472 = vpop.f32.mrb[0].mxu0
    %v2473 = vadd.f32 %v2388, %v2472
    %v2474 = vpop.f32.mrb[0].mxu0
    %v2475 = vpop.f32.mrb[0].mxu0
    %v2476 = vpop.f32.mrb[0].mxu0
    %2477 = vdwg.mxu0
    %v2478 = vmax.f32 %v2473, 0.0
    %v2479 = vand.u32 2147483647, %v2473
    %v2480 = vsub.f32 0.0, %v2479
    %v2481 = vmul.f32 %v2480, 1.442695
    %v2482 = vpow.pop %v2481
    %v2483 = vadd.f32 %v2482, 1.0
    %v2484 = vlog2.pop %v2483
    %v2485 = vmul.f32 %v2484, 0.6931472
    %v2486 = vmul.f32 -0.5, %v2482
    %v2487 = vadd.f32 %v2486, 1.0
    %v2488 = vmul.f32 %v2487, %v2482
    %v2489 = vand.u32 2147483647, %v2482
    %vm2490 = vcmp.lt.f32.partialorder %v2489, 0.0004427343
    %v2491 = vsel %vm2490, %v2488, %v2485
    %v2492 = vadd.f32 %v2478, %v2491
    %v2493 = vld [vmem:[%s9] sm:$0xf]
    %v2494 = vld [vmem:[%s9 + $0x4] sm:$0xf]
    %v2495 = vld [vmem:[%s9 + $0x8] sm:$0xf]
    %v2496 = vld [vmem:[%s9 + $0xc] sm:$0xf]
    %v2497 = vld [vmem:[%s9 + $0x10] sm:$0xf]
    %v2498 = vld [vmem:[%s9 + $0x14] sm:$0xf]
    %v2499 = vld [vmem:[%s9 + $0x18] sm:$0xf]
    %v2500 = vld [vmem:[%s9 + $0x1c] sm:$0xf]
    %v2501 = vld [vmem:[%s9 + $0x20] sm:$0xf]
    %v2502 = vld [vmem:[%s9 + $0x24] sm:$0xf]
    %v2503 = vld [vmem:[%s9 + $0x28] sm:$0xf]
    %v2504 = vld [vmem:[%s9 + $0x2c] sm:$0xf]
    %v2505 = vld [vmem:[%s9 + $0x30] sm:$0xf]
    %v2506 = vld [vmem:[%s9 + $0x34] sm:$0xf]
    %v2507 = vld [vmem:[%s9 + $0x38] sm:$0xf]
    %v2508 = vld [vmem:[%s9 + $0x3c] sm:$0xf]
    %v2509 = vld [vmem:[%s10] sm:$0x1]
    %v2510 = vpack.c.bf16 %v2492, %v2492
    %v2512 = vlaneseq
    %v2513 = vshrl.u32 %v2512, 7
    %v2514 = vsub.s32 0, %v2513
    %v2515 = vrot.slane %v2509, %v2514
    %v2533 = vunpack.c.l.b16 %v2493
    %v2534 = vunpack.c.l.b16 %v2494
    %v2535 = vunpack.c.l.b16 %v2495
    %v2536 = vunpack.c.l.b16 %v2496
    %v2537 = vunpack.c.l.b16 %v2497
    %v2538 = vunpack.c.l.b16 %v2498
    %v2539 = vunpack.c.l.b16 %v2499
    %v2540 = vunpack.c.l.b16 %v2500
    %v2541 = vunpack.c.l.b16 %v2501
    %v2542 = vunpack.c.l.b16 %v2502
    %v2543 = vunpack.c.l.b16 %v2503
    %v2544 = vunpack.c.l.b16 %v2504
    %v2545 = vunpack.c.l.b16 %v2505
    %v2546 = vunpack.c.l.b16 %v2506
    %v2547 = vunpack.c.l.b16 %v2507
    %v2548 = vunpack.c.l.b16 %v2508
    %v2549 = vpack.c.b16 %v2534, %v2533
    %v2550 = vpack.c.b16 %v2536, %v2535
    %v2551 = vpack.c.b16 %v2538, %v2537
    %v2552 = vpack.c.b16 %v2540, %v2539
    %v2553 = vpack.c.b16 %v2542, %v2541
    %v2554 = vpack.c.b16 %v2544, %v2543
    %v2555 = vpack.c.b16 %v2546, %v2545
    %v2556 = vpack.c.b16 %v2548, %v2547
    %2565 = vmatprep.subr.bf16.mxu0 0
    %2566 = vmatpush1.bf16.msra.mxu0 %v2549
    %2567 = vmatprep.subr.bf16.mxu0 0
    %2568 = vmatpush1.bf16.msra.mxu0 %v2550
    %2569 = vmatprep.subr.bf16.mxu0 0
    %2570 = vmatpush1.bf16.msra.mxu0 %v2551
    %2571 = vmatprep.subr.bf16.mxu0 0
    %2572 = vmatpush1.bf16.msra.mxu0 %v2552
    %2573 = vmatprep.subr.bf16.mxu0 0
    %2574 = vmatpush1.bf16.msra.mxu0 %v2553
    %2575 = vmatprep.subr.bf16.mxu0 0
    %2576 = vmatpush1.bf16.msra.mxu0 %v2554
    %2577 = vmatprep.subr.bf16.mxu0 0
    %2578 = vmatpush1.bf16.msra.mxu0 %v2555
    %2579 = vmatprep.subr.bf16.mxu0 0
    %2580 = vmatpush1.bf16.msra.mxu0 %v2556
    %2581 = vmatprep.subr.bf16.mxu0 0
    %2582 = vmatpush1.bf16.msra.mxu0 0
    %2583 = vmatprep.subr.bf16.mxu0 0
    %2584 = vmatpush1.bf16.msra.mxu0 0
    %2585 = vmatprep.subr.bf16.mxu0 0
    %2586 = vmatpush1.bf16.msra.mxu0 0
    %2587 = vmatprep.subr.bf16.mxu0 0
    %2588 = vmatpush1.bf16.msra.mxu0 0
    %2589 = vmatprep.subr.bf16.mxu0 0
    %2590 = vmatpush1.bf16.msra.mxu0 0
    %2591 = vmatprep.subr.bf16.mxu0 0
    %2592 = vmatpush1.bf16.msra.mxu0 0
    %2593 = vmatprep.subr.bf16.mxu0 0
    %2594 = vmatpush1.bf16.msra.mxu0 0
    %2595 = vmatprep.subr.bf16.mxu0 0
    %2596 = vmatpush1.bf16.msra.mxu0 0
    %2597 = vmatprep.mubr.bf16.mxu0 0
    %2598 = vmatmul.mubr.bf16.gmra.mrb[0].mxu0 %v2510
    %v2599 = vpop.f32.mrb[0].mxu0
    %v2600 = vadd.f32 %v2515, %v2599
    %v2601 = vpop.f32.mrb[0].mxu0
    %v2602 = vpop.f32.mrb[0].mxu0
    %v2603 = vpop.f32.mrb[0].mxu0
    %2604 = vdwg.mxu0
    %v2605 = vmax.f32 %v2600, 0.0
    %v2606 = vand.u32 2147483647, %v2600
    %v2607 = vsub.f32 0.0, %v2606
    %v2608 = vmul.f32 %v2607, 1.442695
    %v2609 = vpow.pop %v2608
    %v2610 = vadd.f32 %v2609, 1.0
    %v2611 = vlog2.pop %v2610
    %v2612 = vmul.f32 %v2611, 0.6931472
    %v2613 = vmul.f32 -0.5, %v2609
    %v2614 = vadd.f32 %v2613, 1.0
    %v2615 = vmul.f32 %v2614, %v2609
    %v2616 = vand.u32 2147483647, %v2609
    %vm2617 = vcmp.lt.f32.partialorder %v2616, 0.0004427343
    %v2618 = vsel %vm2617, %v2615, %v2612
    %v2619 = vadd.f32 %v2605, %v2618
    %v2620 = vld [vmem:[%s11] sm:$0xff]
    %v2621 = vld [vmem:[%s11 + $0x8] sm:$0xff]
    %v2622 = vld [vmem:[%s11 + $0x10] sm:$0xff]
    %v2623 = vld [vmem:[%s11 + $0x18] sm:$0xff]
    %v2624 = vld [vmem:[%s11 + $0x20] sm:$0xff]
    %v2625 = vld [vmem:[%s11 + $0x28] sm:$0xff]
    %v2626 = vld [vmem:[%s11 + $0x30] sm:$0xff]
    %v2627 = vld [vmem:[%s11 + $0x38] sm:$0xff]
    %v2628 = vld [vmem:[%s11 + $0x40] sm:$0xff]
    %v2629 = vld [vmem:[%s11 + $0x48] sm:$0xff]
    %v2630 = vld [vmem:[%s11 + $0x50] sm:$0xff]
    %v2631 = vld [vmem:[%s11 + $0x58] sm:$0xff]
    %v2632 = vld [vmem:[%s11 + $0x60] sm:$0xff]
    %v2633 = vld [vmem:[%s11 + $0x68] sm:$0xff]
    %v2634 = vld [vmem:[%s11 + $0x70] sm:$0xff]
    %v2635 = vld [vmem:[%s11 + $0x78] sm:$0xff]
    %v2636 = vld [vmem:[%s12] sm:$0x3]
    %v2637 = vpack.c.bf16 %v2619, %v2619
    %v2639 = vlaneseq
    %v2640 = vshrl.u32 %v2639, 7
    %v2641 = vsub.s32 0, %v2640
    %v2642 = vrot.slane %v2636, %v2641
    %v2643 = vlaneseq
    %v2644 = vshrl.u32 %v2643, 7
    %v2645 = vsub.s32 1, %v2644
    %v2646 = vrot.slane %v2636, %v2645
    %v2665 = vunpack.c.l.b16 %v2620
    %v2666 = vunpack.c.h.b16 %v2620
    %v2667 = vunpack.c.l.b16 %v2621
    %v2668 = vunpack.c.h.b16 %v2621
    %v2669 = vunpack.c.l.b16 %v2622
    %v2670 = vunpack.c.h.b16 %v2622
    %v2671 = vunpack.c.l.b16 %v2623
    %v2672 = vunpack.c.h.b16 %v2623
    %v2673 = vunpack.c.l.b16 %v2624
    %v2674 = vunpack.c.h.b16 %v2624
    %v2675 = vunpack.c.l.b16 %v2625
    %v2676 = vunpack.c.h.b16 %v2625
    %v2677 = vunpack.c.l.b16 %v2626
    %v2678 = vunpack.c.h.b16 %v2626
    %v2679 = vunpack.c.l.b16 %v2627
    %v2680 = vunpack.c.h.b16 %v2627
    %v2681 = vunpack.c.l.b16 %v2628
    %v2682 = vunpack.c.h.b16 %v2628
    %v2683 = vunpack.c.l.b16 %v2629
    %v2684 = vunpack.c.h.b16 %v2629
    %v2685 = vunpack.c.l.b16 %v2630
    %v2686 = vunpack.c.h.b16 %v2630
    %v2687 = vunpack.c.l.b16 %v2631
    %v2688 = vunpack.c.h.b16 %v2631
    %v2689 = vunpack.c.l.b16 %v2632
    %v2690 = vunpack.c.h.b16 %v2632
    %v2691 = vunpack.c.l.b16 %v2633
    %v2692 = vunpack.c.h.b16 %v2633
    %v2693 = vunpack.c.l.b16 %v2634
    %v2694 = vunpack.c.h.b16 %v2634
    %v2695 = vunpack.c.l.b16 %v2635
    %v2696 = vunpack.c.h.b16 %v2635
    %v2697 = vpack.c.b16 %v2667, %v2665
    %v2698 = vpack.c.b16 %v2668, %v2666
    %v2699 = vpack.c.b16 %v2671, %v2669
    %v2700 = vpack.c.b16 %v2672, %v2670
    %v2701 = vpack.c.b16 %v2675, %v2673
    %v2702 = vpack.c.b16 %v2676, %v2674
    %v2703 = vpack.c.b16 %v2679, %v2677
    %v2704 = vpack.c.b16 %v2680, %v2678
    %v2705 = vpack.c.b16 %v2683, %v2681
    %v2706 = vpack.c.b16 %v2684, %v2682
    %v2707 = vpack.c.b16 %v2687, %v2685
    %v2708 = vpack.c.b16 %v2688, %v2686
    %v2709 = vpack.c.b16 %v2691, %v2689
    %v2710 = vpack.c.b16 %v2692, %v2690
    %v2711 = vpack.c.b16 %v2695, %v2693
    %v2712 = vpack.c.b16 %v2696, %v2694
    %2729 = vmatprep.subr.bf16.mxu0 %v2698
    %2730 = vmatpush1.bf16.msra.mxu0 %v2697
    %2731 = vmatprep.subr.bf16.mxu0 %v2700
    %2732 = vmatpush1.bf16.msra.mxu0 %v2699
    %2733 = vmatprep.subr.bf16.mxu0 %v2702
    %2734 = vmatpush1.bf16.msra.mxu0 %v2701
    %2735 = vmatprep.subr.bf16.mxu0 %v2704
    %2736 = vmatpush1.bf16.msra.mxu0 %v2703
    %2737 = vmatprep.subr.bf16.mxu0 %v2706
    %2738 = vmatpush1.bf16.msra.mxu0 %v2705
    %2739 = vmatprep.subr.bf16.mxu0 %v2708
    %2740 = vmatpush1.bf16.msra.mxu0 %v2707
    %2741 = vmatprep.subr.bf16.mxu0 %v2710
    %2742 = vmatpush1.bf16.msra.mxu0 %v2709
    %2743 = vmatprep.subr.bf16.mxu0 %v2712
    %2744 = vmatpush1.bf16.msra.mxu0 %v2711
    %2745 = vmatprep.subr.bf16.mxu0 0
    %2746 = vmatpush1.bf16.msra.mxu0 0
    %2747 = vmatprep.subr.bf16.mxu0 0
    %2748 = vmatpush1.bf16.msra.mxu0 0
    %2749 = vmatprep.subr.bf16.mxu0 0
    %2750 = vmatpush1.bf16.msra.mxu0 0
    %2751 = vmatprep.subr.bf16.mxu0 0
    %2752 = vmatpush1.bf16.msra.mxu0 0
    %2753 = vmatprep.subr.bf16.mxu0 0
    %2754 = vmatpush1.bf16.msra.mxu0 0
    %2755 = vmatprep.subr.bf16.mxu0 0
    %2756 = vmatpush1.bf16.msra.mxu0 0
    %2757 = vmatprep.subr.bf16.mxu0 0
    %2758 = vmatpush1.bf16.msra.mxu0 0
    %2759 = vmatprep.subr.bf16.mxu0 0
    %2760 = vmatpush1.bf16.msra.mxu0 0
    %2761 = vmatprep.mubr.bf16.mxu0 0
    %2762 = vmatmul.mubr.bf16.gmra.mrb[0].mxu0 %v2637
    %v2763 = vpop.f32.mrb[0].mxu0
    %v2764 = vadd.f32 %v2642, %v2763
    %v2765 = vpop.f32.mrb[0].mxu0
    %v2766 = vadd.f32 %v2646, %v2765
    %v2767 = vpop.f32.mrb[0].mxu0
    %v2768 = vpop.f32.mrb[0].mxu0
    %2769 = vdwg.mxu0
    %v2770 = vmax.f32 %v2764, 0.0
    %v2771 = vmax.f32 %v2766, 0.0
    %v2772 = vand.u32 2147483647, %v2764
    %v2773 = vand.u32 2147483647, %v2766
    %v2774 = vsub.f32 0.0, %v2772
    %v2775 = vsub.f32 0.0, %v2773
    %v2776 = vmul.f32 %v2774, 1.442695
    %v2777 = vpow.pop %v2776
    %v2778 = vmul.f32 %v2775, 1.442695
    %v2779 = vpow.pop %v2778
    %v2780 = vadd.f32 %v2777, 1.0
    %v2781 = vlog2.pop %v2780
    %v2782 = vmul.f32 %v2781, 0.6931472
    %v2783 = vmul.f32 -0.5, %v2777
    %v2784 = vadd.f32 %v2783, 1.0
    %v2785 = vmul.f32 %v2784, %v2777
    %v2786 = vand.u32 2147483647, %v2777
    %vm2787 = vcmp.lt.f32.partialorder %v2786, 0.0004427343
    %v2788 = vsel %vm2787, %v2785, %v2782
    %v2789 = vadd.f32 %v2779, 1.0
    %v2790 = vlog2.pop %v2789
    %v2791 = vmul.f32 %v2790, 0.6931472
    %v2792 = vmul.f32 -0.5, %v2779
    %v2793 = vadd.f32 %v2792, 1.0
    %v2794 = vmul.f32 %v2793, %v2779
    %v2795 = vand.u32 2147483647, %v2779
    %vm2796 = vcmp.lt.f32.partialorder %v2795, 0.0004427343
    %v2797 = vsel %vm2796, %v2794, %v2791
    %v2798 = vadd.f32 %v2770, %v2788
    %v2799 = vadd.f32 %v2771, %v2797
    %v2800 = vld [vmem:[%s13] sm:$0xff]
    %v2801 = vld [vmem:[%s13 + $0x8] sm:$0xff]
    %v2802 = vld [vmem:[%s13 + $0x10] sm:$0xff]
    %v2803 = vld [vmem:[%s13 + $0x18] sm:$0xff]
    %v2804 = vld [vmem:[%s13 + $0x20] sm:$0xff]
    %v2805 = vld [vmem:[%s13 + $0x28] sm:$0xff]
    %v2806 = vld [vmem:[%s13 + $0x30] sm:$0xff]
    %v2807 = vld [vmem:[%s13 + $0x38] sm:$0xff]
    %v2808 = vld [vmem:[%s13 + $0x40] sm:$0xff]
    %v2809 = vld [vmem:[%s13 + $0x48] sm:$0xff]
    %v2810 = vld [vmem:[%s13 + $0x50] sm:$0xff]
    %v2811 = vld [vmem:[%s13 + $0x58] sm:$0xff]
    %v2812 = vld [vmem:[%s13 + $0x60] sm:$0xff]
    %v2813 = vld [vmem:[%s13 + $0x68] sm:$0xff]
    %v2814 = vld [vmem:[%s13 + $0x70] sm:$0xff]
    %v2815 = vld [vmem:[%s13 + $0x78] sm:$0xff]
    %v2816 = vld [vmem:[%s13 + $0x80] sm:$0xff]
    %v2817 = vld [vmem:[%s13 + $0x88] sm:$0xff]
    %v2818 = vld [vmem:[%s13 + $0x90] sm:$0xff]
    %v2819 = vld [vmem:[%s13 + $0x98] sm:$0xff]
    %v2820 = vld [vmem:[%s13 + $0xa0] sm:$0xff]
    %v2821 = vld [vmem:[%s13 + $0xa8] sm:$0xff]
    %v2822 = vld [vmem:[%s13 + $0xb0] sm:$0xff]
    %v2823 = vld [vmem:[%s13 + $0xb8] sm:$0xff]
    %v2824 = vld [vmem:[%s13 + $0xc0] sm:$0xff]
    %v2825 = vld [vmem:[%s13 + $0xc8] sm:$0xff]
    %v2826 = vld [vmem:[%s13 + $0xd0] sm:$0xff]
    %v2827 = vld [vmem:[%s13 + $0xd8] sm:$0xff]
    %v2828 = vld [vmem:[%s13 + $0xe0] sm:$0xff]
    %v2829 = vld [vmem:[%s13 + $0xe8] sm:$0xff]
    %v2830 = vld [vmem:[%s13 + $0xf0] sm:$0xff]
    %v2831 = vld [vmem:[%s13 + $0xf8] sm:$0xff]
    %v2832 = vld [vmem:[%s13 + $0x100] sm:$0xff]
    %v2833 = vld [vmem:[%s13 + $0x108] sm:$0xff]
    %v2834 = vld [vmem:[%s13 + $0x110] sm:$0xff]
    %v2835 = vld [vmem:[%s13 + $0x118] sm:$0xff]
    %v2836 = vld [vmem:[%s13 + $0x120] sm:$0xff]
    %v2837 = vld [vmem:[%s13 + $0x128] sm:$0xff]
    %v2838 = vld [vmem:[%s13 + $0x130] sm:$0xff]
    %v2839 = vld [vmem:[%s13 + $0x138] sm:$0xff]
    %v2840 = vld [vmem:[%s13 + $0x140] sm:$0xff]
    %v2841 = vld [vmem:[%s13 + $0x148] sm:$0xff]
    %v2842 = vld [vmem:[%s13 + $0x150] sm:$0xff]
    %v2843 = vld [vmem:[%s13 + $0x158] sm:$0xff]
    %v2844 = vld [vmem:[%s13 + $0x160] sm:$0xff]
    %v2845 = vld [vmem:[%s13 + $0x168] sm:$0xff]
    %v2846 = vld [vmem:[%s13 + $0x170] sm:$0xff]
    %v2847 = vld [vmem:[%s13 + $0x178] sm:$0xff]
    %v2848 = vld [vmem:[%s13 + $0x180] sm:$0xff]
    %v2849 = vld [vmem:[%s13 + $0x188] sm:$0xff]
    %v2850 = vld [vmem:[%s13 + $0x190] sm:$0xff]
    %v2851 = vld [vmem:[%s13 + $0x198] sm:$0xff]
    %v2852 = vld [vmem:[%s13 + $0x1a0] sm:$0xff]
    %v2853 = vld [vmem:[%s13 + $0x1a8] sm:$0xff]
    %v2854 = vld [vmem:[%s13 + $0x1b0] sm:$0xff]
    %v2855 = vld [vmem:[%s13 + $0x1b8] sm:$0xff]
    %v2856 = vld [vmem:[%s13 + $0x1c0] sm:$0xff]
    %v2857 = vld [vmem:[%s13 + $0x1c8] sm:$0xff]
    %v2858 = vld [vmem:[%s13 + $0x1d0] sm:$0xff]
    %v2859 = vld [vmem:[%s13 + $0x1d8] sm:$0xff]
    %v2860 = vld [vmem:[%s13 + $0x1e0] sm:$0xff]
    %v2861 = vld [vmem:[%s13 + $0x1e8] sm:$0xff]
    %v2862 = vld [vmem:[%s13 + $0x1f0] sm:$0xff]
    %v2863 = vld [vmem:[%s13 + $0x1f8] sm:$0xff]
    %v2864 = vld [vmem:[%s14] sm:$0xf]
    %v2865 = vpack.c.bf16 %v2798, %v2798
    %v2866 = vpack.c.bf16 %v2799, %v2799
    %v2868 = vlaneseq
    %v2869 = vshrl.u32 %v2868, 7
    %v2870 = vsub.s32 0, %v2869
    %v2871 = vrot.slane %v2864, %v2870
    %v2872 = vlaneseq
    %v2873 = vshrl.u32 %v2872, 7
    %v2874 = vsub.s32 1, %v2873
    %v2875 = vrot.slane %v2864, %v2874
    %v2876 = vlaneseq
    %v2877 = vshrl.u32 %v2876, 7
    %v2878 = vsub.s32 2, %v2877
    %v2879 = vrot.slane %v2864, %v2878
    %v2880 = vlaneseq
    %v2881 = vshrl.u32 %v2880, 7
    %v2882 = vsub.s32 3, %v2881
    %v2883 = vrot.slane %v2864, %v2882
    %v2952 = vunpack.c.l.b16 %v2800
    %v2953 = vunpack.c.h.b16 %v2800
    %v2954 = vunpack.c.l.b16 %v2801
    %v2955 = vunpack.c.h.b16 %v2801
    %v2956 = vunpack.c.l.b16 %v2802
    %v2957 = vunpack.c.h.b16 %v2802
    %v2958 = vunpack.c.l.b16 %v2803
    %v2959 = vunpack.c.h.b16 %v2803
    %v2960 = vunpack.c.l.b16 %v2804
    %v2961 = vunpack.c.h.b16 %v2804
    %v2962 = vunpack.c.l.b16 %v2805
    %v2963 = vunpack.c.h.b16 %v2805
    %v2964 = vunpack.c.l.b16 %v2806
    %v2965 = vunpack.c.h.b16 %v2806
    %v2966 = vunpack.c.l.b16 %v2807
    %v2967 = vunpack.c.h.b16 %v2807
    %v2968 = vunpack.c.l.b16 %v2808
    %v2969 = vunpack.c.h.b16 %v2808
    %v2970 = vunpack.c.l.b16 %v2809
    %v2971 = vunpack.c.h.b16 %v2809
    %v2972 = vunpack.c.l.b16 %v2810
    %v2973 = vunpack.c.h.b16 %v2810
    %v2974 = vunpack.c.l.b16 %v2811
    %v2975 = vunpack.c.h.b16 %v2811
    %v2976 = vunpack.c.l.b16 %v2812
    %v2977 = vunpack.c.h.b16 %v2812
    %v2978 = vunpack.c.l.b16 %v2813
    %v2979 = vunpack.c.h.b16 %v2813
    %v2980 = vunpack.c.l.b16 %v2814
    %v2981 = vunpack.c.h.b16 %v2814
    %v2982 = vunpack.c.l.b16 %v2815
    %v2983 = vunpack.c.h.b16 %v2815
    %v2984 = vunpack.c.l.b16 %v2816
    %v2985 = vunpack.c.h.b16 %v2816
    %v2986 = vunpack.c.l.b16 %v2817
    %v2987 = vunpack.c.h.b16 %v2817
    %v2988 = vunpack.c.l.b16 %v2818
    %v2989 = vunpack.c.h.b16 %v2818
    %v2990 = vunpack.c.l.b16 %v2819
    %v2991 = vunpack.c.h.b16 %v2819
    %v2992 = vunpack.c.l.b16 %v2820
    %v2993 = vunpack.c.h.b16 %v2820
    %v2994 = vunpack.c.l.b16 %v2821
    %v2995 = vunpack.c.h.b16 %v2821
    %v2996 = vunpack.c.l.b16 %v2822
    %v2997 = vunpack.c.h.b16 %v2822
    %v2998 = vunpack.c.l.b16 %v2823
    %v2999 = vunpack.c.h.b16 %v2823
    %v3000 = vunpack.c.l.b16 %v2824
    %v3001 = vunpack.c.h.b16 %v2824
    %v3002 = vunpack.c.l.b16 %v2825
    %v3003 = vunpack.c.h.b16 %v2825
    %v3004 = vunpack.c.l.b16 %v2826
    %v3005 = vunpack.c.h.b16 %v2826
    %v3006 = vunpack.c.l.b16 %v2827
    %v3007 = vunpack.c.h.b16 %v2827
    %v3008 = vunpack.c.l.b16 %v2828
    %v3009 = vunpack.c.h.b16 %v2828
    %v3010 = vunpack.c.l.b16 %v2829
    %v3011 = vunpack.c.h.b16 %v2829
    %v3012 = vunpack.c.l.b16 %v2830
    %v3013 = vunpack.c.h.b16 %v2830
    %v3014 = vunpack.c.l.b16 %v2831
    %v3015 = vunpack.c.h.b16 %v2831
    %v3016 = vunpack.c.l.b16 %v2832
    %v3017 = vunpack.c.h.b16 %v2832
    %v3018 = vunpack.c.l.b16 %v2833
    %v3019 = vunpack.c.h.b16 %v2833
    %v3020 = vunpack.c.l.b16 %v2834
    %v3021 = vunpack.c.h.b16 %v2834
    %v3022 = vunpack.c.l.b16 %v2835
    %v3023 = vunpack.c.h.b16 %v2835
    %v3024 = vunpack.c.l.b16 %v2836
    %v3025 = vunpack.c.h.b16 %v2836
    %v3026 = vunpack.c.l.b16 %v2837
    %v3027 = vunpack.c.h.b16 %v2837
    %v3028 = vunpack.c.l.b16 %v2838
    %v3029 = vunpack.c.h.b16 %v2838
    %v3030 = vunpack.c.l.b16 %v2839
    %v3031 = vunpack.c.h.b16 %v2839
    %v3032 = vunpack.c.l.b16 %v2840
    %v3033 = vunpack.c.h.b16 %v2840
    %v3034 = vunpack.c.l.b16 %v2841
    %v3035 = vunpack.c.h.b16 %v2841
    %v3036 = vunpack.c.l.b16 %v2842
    %v3037 = vunpack.c.h.b16 %v2842
    %v3038 = vunpack.c.l.b16 %v2843
    %v3039 = vunpack.c.h.b16 %v2843
    %v3040 = vunpack.c.l.b16 %v2844
    %v3041 = vunpack.c.h.b16 %v2844
    %v3042 = vunpack.c.l.b16 %v2845
    %v3043 = vunpack.c.h.b16 %v2845
    %v3044 = vunpack.c.l.b16 %v2846
    %v3045 = vunpack.c.h.b16 %v2846
    %v3046 = vunpack.c.l.b16 %v2847
    %v3047 = vunpack.c.h.b16 %v2847
    %v3048 = vunpack.c.l.b16 %v2848
    %v3049 = vunpack.c.h.b16 %v2848
    %v3050 = vunpack.c.l.b16 %v2849
    %v3051 = vunpack.c.h.b16 %v2849
    %v3052 = vunpack.c.l.b16 %v2850
    %v3053 = vunpack.c.h.b16 %v2850
    %v3054 = vunpack.c.l.b16 %v2851
    %v3055 = vunpack.c.h.b16 %v2851
    %v3056 = vunpack.c.l.b16 %v2852
    %v3057 = vunpack.c.h.b16 %v2852
    %v3058 = vunpack.c.l.b16 %v2853
    %v3059 = vunpack.c.h.b16 %v2853
    %v3060 = vunpack.c.l.b16 %v2854
    %v3061 = vunpack.c.h.b16 %v2854
    %v3062 = vunpack.c.l.b16 %v2855
    %v3063 = vunpack.c.h.b16 %v2855
    %v3064 = vunpack.c.l.b16 %v2856
    %v3065 = vunpack.c.h.b16 %v2856
    %v3066 = vunpack.c.l.b16 %v2857
    %v3067 = vunpack.c.h.b16 %v2857
    %v3068 = vunpack.c.l.b16 %v2858
    %v3069 = vunpack.c.h.b16 %v2858
    %v3070 = vunpack.c.l.b16 %v2859
    %v3071 = vunpack.c.h.b16 %v2859
    %v3072 = vunpack.c.l.b16 %v2860
    %v3073 = vunpack.c.h.b16 %v2860
    %v3074 = vunpack.c.l.b16 %v2861
    %v3075 = vunpack.c.h.b16 %v2861
    %v3076 = vunpack.c.l.b16 %v2862
    %v3077 = vunpack.c.h.b16 %v2862
    %v3078 = vunpack.c.l.b16 %v2863
    %v3079 = vunpack.c.h.b16 %v2863
    %v3080 = vpack.c.b16 %v2956, %v2952
    %v3081 = vpack.c.b16 %v2957, %v2953
    %v3082 = vpack.c.b16 %v2958, %v2954
    %v3083 = vpack.c.b16 %v2959, %v2955
    %v3084 = vpack.c.b16 %v2964, %v2960
    %v3085 = vpack.c.b16 %v2965, %v2961
    %v3086 = vpack.c.b16 %v2966, %v2962
    %v3087 = vpack.c.b16 %v2967, %v2963
    %v3088 = vpack.c.b16 %v2972, %v2968
    %v3089 = vpack.c.b16 %v2973, %v2969
    %v3090 = vpack.c.b16 %v2974, %v2970
    %v3091 = vpack.c.b16 %v2975, %v2971
    %v3092 = vpack.c.b16 %v2980, %v2976
    %v3093 = vpack.c.b16 %v2981, %v2977
    %v3094 = vpack.c.b16 %v2982, %v2978
    %v3095 = vpack.c.b16 %v2983, %v2979
    %v3096 = vpack.c.b16 %v2988, %v2984
    %v3097 = vpack.c.b16 %v2989, %v2985
    %v3098 = vpack.c.b16 %v2990, %v2986
    %v3099 = vpack.c.b16 %v2991, %v2987
    %v3100 = vpack.c.b16 %v2996, %v2992
    %v3101 = vpack.c.b16 %v2997, %v2993
    %v3102 = vpack.c.b16 %v2998, %v2994
    %v3103 = vpack.c.b16 %v2999, %v2995
    %v3104 = vpack.c.b16 %v3004, %v3000
    %v3105 = vpack.c.b16 %v3005, %v3001
    %v3106 = vpack.c.b16 %v3006, %v3002
    %v3107 = vpack.c.b16 %v3007, %v3003
    %v3108 = vpack.c.b16 %v3012, %v3008
    %v3109 = vpack.c.b16 %v3013, %v3009
    %v3110 = vpack.c.b16 %v3014, %v3010
    %v3111 = vpack.c.b16 %v3015, %v3011
    %v3112 = vpack.c.b16 %v3020, %v3016
    %v3113 = vpack.c.b16 %v3021, %v3017
    %v3114 = vpack.c.b16 %v3022, %v3018
    %v3115 = vpack.c.b16 %v3023, %v3019
    %v3116 = vpack.c.b16 %v3028, %v3024
    %v3117 = vpack.c.b16 %v3029, %v3025
    %v3118 = vpack.c.b16 %v3030, %v3026
    %v3119 = vpack.c.b16 %v3031, %v3027
    %v3120 = vpack.c.b16 %v3036, %v3032
    %v3121 = vpack.c.b16 %v3037, %v3033
    %v3122 = vpack.c.b16 %v3038, %v3034
    %v3123 = vpack.c.b16 %v3039, %v3035
    %v3124 = vpack.c.b16 %v3044, %v3040
    %v3125 = vpack.c.b16 %v3045, %v3041
    %v3126 = vpack.c.b16 %v3046, %v3042
    %v3127 = vpack.c.b16 %v3047, %v3043
    %v3128 = vpack.c.b16 %v3052, %v3048
    %v3129 = vpack.c.b16 %v3053, %v3049
    %v3130 = vpack.c.b16 %v3054, %v3050
    %v3131 = vpack.c.b16 %v3055, %v3051
    %v3132 = vpack.c.b16 %v3060, %v3056
    %v3133 = vpack.c.b16 %v3061, %v3057
    %v3134 = vpack.c.b16 %v3062, %v3058
    %v3135 = vpack.c.b16 %v3063, %v3059
    %v3136 = vpack.c.b16 %v3068, %v3064
    %v3137 = vpack.c.b16 %v3069, %v3065
    %v3138 = vpack.c.b16 %v3070, %v3066
    %v3139 = vpack.c.b16 %v3071, %v3067
    %v3140 = vpack.c.b16 %v3076, %v3072
    %v3141 = vpack.c.b16 %v3077, %v3073
    %v3142 = vpack.c.b16 %v3078, %v3074
    %v3143 = vpack.c.b16 %v3079, %v3075
    %3208 = vmatprep.subr.bf16.mxu0 %v3081
    %3209 = vmatpush1.bf16.msra.mxu0 %v3080
    %3210 = vmatprep.subr.bf16.mxu0 %v3085
    %3211 = vmatpush1.bf16.msra.mxu0 %v3084
    %3212 = vmatprep.subr.bf16.mxu0 %v3089
    %3213 = vmatpush1.bf16.msra.mxu0 %v3088
    %3214 = vmatprep.subr.bf16.mxu0 %v3093
    %3215 = vmatpush1.bf16.msra.mxu0 %v3092
    %3216 = vmatprep.subr.bf16.mxu0 %v3097
    %3217 = vmatpush1.bf16.msra.mxu0 %v3096
    %3218 = vmatprep.subr.bf16.mxu0 %v3101
    %3219 = vmatpush1.bf16.msra.mxu0 %v3100
    %3220 = vmatprep.subr.bf16.mxu0 %v3105
    %3221 = vmatpush1.bf16.msra.mxu0 %v3104
    %3222 = vmatprep.subr.bf16.mxu0 %v3109
    %3223 = vmatpush1.bf16.msra.mxu0 %v3108
    %3224 = vmatprep.subr.bf16.mxu0 %v3113
    %3225 = vmatpush1.bf16.msra.mxu0 %v3112
    %3226 = vmatprep.subr.bf16.mxu0 %v3117
    %3227 = vmatpush1.bf16.msra.mxu0 %v3116
    %3228 = vmatprep.subr.bf16.mxu0 %v3121
    %3229 = vmatpush1.bf16.msra.mxu0 %v3120
    %3230 = vmatprep.subr.bf16.mxu0 %v3125
    %3231 = vmatpush1.bf16.msra.mxu0 %v3124
    %3232 = vmatprep.subr.bf16.mxu0 %v3129
    %3233 = vmatpush1.bf16.msra.mxu0 %v3128
    %3234 = vmatprep.subr.bf16.mxu0 %v3133
    %3235 = vmatpush1.bf16.msra.mxu0 %v3132
    %3236 = vmatprep.subr.bf16.mxu0 %v3137
    %3237 = vmatpush1.bf16.msra.mxu0 %v3136
    %3238 = vmatprep.subr.bf16.mxu0 %v3141
    %3239 = vmatpush1.bf16.msra.mxu0 %v3140
    %3240 = vmatprep.mubr.bf16.mxu0 %v2866
    %3241 = vmatmul.mubr.bf16.gmra.mrb[0].mxu0 %v2865
    %v3242 = vpop.f32.mrb[0].mxu0
    %v3243 = vadd.f32 %v2871, %v3242
    %v3244 = vpop.f32.mrb[0].mxu0
    %v3245 = vadd.f32 %v2875, %v3244
    %v3246 = vpop.f32.mrb[0].mxu0
    %v3247 = vpop.f32.mrb[0].mxu0
    %3248 = vdwg.mxu0
    %3249 = vmatprep.subr.bf16.mxu0 %v3083
    %3250 = vmatpush1.bf16.msra.mxu0 %v3082
    %3251 = vmatprep.subr.bf16.mxu0 %v3087
    %3252 = vmatpush1.bf16.msra.mxu0 %v3086
    %3253 = vmatprep.subr.bf16.mxu0 %v3091
    %3254 = vmatpush1.bf16.msra.mxu0 %v3090
    %3255 = vmatprep.subr.bf16.mxu0 %v3095
    %3256 = vmatpush1.bf16.msra.mxu0 %v3094
    %3257 = vmatprep.subr.bf16.mxu0 %v3099
    %3258 = vmatpush1.bf16.msra.mxu0 %v3098
    %3259 = vmatprep.subr.bf16.mxu0 %v3103
    %3260 = vmatpush1.bf16.msra.mxu0 %v3102
    %3261 = vmatprep.subr.bf16.mxu0 %v3107
    %3262 = vmatpush1.bf16.msra.mxu0 %v3106
    %3263 = vmatprep.subr.bf16.mxu0 %v3111
    %3264 = vmatpush1.bf16.msra.mxu0 %v3110
    %3265 = vmatprep.subr.bf16.mxu0 %v3115
    %3266 = vmatpush1.bf16.msra.mxu0 %v3114
    %3267 = vmatprep.subr.bf16.mxu0 %v3119
    %3268 = vmatpush1.bf16.msra.mxu0 %v3118
    %3269 = vmatprep.subr.bf16.mxu0 %v3123
    %3270 = vmatpush1.bf16.msra.mxu0 %v3122
    %3271 = vmatprep.subr.bf16.mxu0 %v3127
    %3272 = vmatpush1.bf16.msra.mxu0 %v3126
    %3273 = vmatprep.subr.bf16.mxu0 %v3131
    %3274 = vmatpush1.bf16.msra.mxu0 %v3130
    %3275 = vmatprep.subr.bf16.mxu0 %v3135
    %3276 = vmatpush1.bf16.msra.mxu0 %v3134
    %3277 = vmatprep.subr.bf16.mxu0 %v3139
    %3278 = vmatpush1.bf16.msra.mxu0 %v3138
    %3279 = vmatprep.subr.bf16.mxu0 %v3143
    %3280 = vmatpush1.bf16.msra.mxu0 %v3142
    %3281 = vmatprep.mubr.bf16.mxu0 %v2866
    %3282 = vmatmul.mubr.bf16.gmra.mrb[0].mxu0 %v2865
    %v3283 = vpop.f32.mrb[0].mxu0
    %v3284 = vadd.f32 %v2879, %v3283
    %v3285 = vpop.f32.mrb[0].mxu0
    %v3286 = vadd.f32 %v2883, %v3285
    %v3287 = vpop.f32.mrb[0].mxu0
    %v3288 = vpop.f32.mrb[0].mxu0
    %3289 = vdwg.mxu0
    %v3290 = vmax.f32 %v3243, 0.0
    %v3291 = vmax.f32 %v3245, 0.0
    %v3292 = vmax.f32 %v3284, 0.0
    %v3293 = vmax.f32 %v3286, 0.0
    %v3294 = vand.u32 2147483647, %v3243
    %v3295 = vand.u32 2147483647, %v3245
    %v3296 = vand.u32 2147483647, %v3284
    %v3297 = vand.u32 2147483647, %v3286
    %v3298 = vsub.f32 0.0, %v3294
    %v3299 = vsub.f32 0.0, %v3295
    %v3300 = vsub.f32 0.0, %v3296
    %v3301 = vsub.f32 0.0, %v3297
    %v3302 = vmul.f32 %v3298, 1.442695
    %v3303 = vpow.pop %v3302
    %v3304 = vmul.f32 %v3299, 1.442695
    %v3305 = vpow.pop %v3304
    %v3306 = vmul.f32 %v3300, 1.442695
    %v3307 = vpow.pop %v3306
    %v3308 = vmul.f32 %v3301, 1.442695
    %v3309 = vpow.pop %v3308
    %v3310 = vadd.f32 %v3303, 1.0
    %v3311 = vlog2.pop %v3310
    %v3312 = vmul.f32 %v3311, 0.6931472
    %v3313 = vmul.f32 -0.5, %v3303
    %v3314 = vadd.f32 %v3313, 1.0
    %v3315 = vmul.f32 %v3314, %v3303
    %v3316 = vand.u32 2147483647, %v3303
    %vm3317 = vcmp.lt.f32.partialorder %v3316, 0.0004427343
    %v3318 = vsel %vm3317, %v3315, %v3312
    %v3319 = vadd.f32 %v3305, 1.0
    %v3320 = vlog2.pop %v3319
    %v3321 = vmul.f32 %v3320, 0.6931472
    %v3322 = vmul.f32 -0.5, %v3305
    %v3323 = vadd.f32 %v3322, 1.0
    %v3324 = vmul.f32 %v3323, %v3305
    %v3325 = vand.u32 2147483647, %v3305
    %vm3326 = vcmp.lt.f32.partialorder %v3325, 0.0004427343
    %v3327 = vsel %vm3326, %v3324, %v3321
    %v3328 = vadd.f32 %v3307, 1.0
    %v3329 = vlog2.pop %v3328
    %v3330 = vmul.f32 %v3329, 0.6931472
    %v3331 = vmul.f32 -0.5, %v3307
    %v3332 = vadd.f32 %v3331, 1.0
    %v3333 = vmul.f32 %v3332, %v3307
    %v3334 = vand.u32 2147483647, %v3307
    %vm3335 = vcmp.lt.f32.partialorder %v3334, 0.0004427343
    %v3336 = vsel %vm3335, %v3333, %v3330
    %v3337 = vadd.f32 %v3309, 1.0
    %v3338 = vlog2.pop %v3337
    %v3339 = vmul.f32 %v3338, 0.6931472
    %v3340 = vmul.f32 -0.5, %v3309
    %v3341 = vadd.f32 %v3340, 1.0
    %v3342 = vmul.f32 %v3341, %v3309
    %v3343 = vand.u32 2147483647, %v3309
    %vm3344 = vcmp.lt.f32.partialorder %v3343, 0.0004427343
    %v3345 = vsel %vm3344, %v3342, %v3339
    %v3346 = vadd.f32 %v3290, %v3318
    %v3347 = vadd.f32 %v3291, %v3327
    %v3348 = vadd.f32 %v3292, %v3336
    %v3349 = vadd.f32 %v3293, %v3345
    %v3350 = vld [vmem:[%s15] sm:$0xff]
    %v3351 = vld [vmem:[%s15 + $0x8] sm:$0xff]
    %v3352 = vld [vmem:[%s15 + $0x10] sm:$0xff]
    %v3353 = vld [vmem:[%s15 + $0x18] sm:$0xf]
    %v3354 = vld [vmem:[%s15 + $0x1c] sm:$0xff]
    %v3355 = vld [vmem:[%s15 + $0x24] sm:$0xff]
    %v3356 = vld [vmem:[%s15 + $0x2c] sm:$0xff]
    %v3357 = vld [vmem:[%s15 + $0x34] sm:$0xf]
    %v3358 = vld [vmem:[%s15 + $0x38] sm:$0xff]
    %v3359 = vld [vmem:[%s15 + $0x40] sm:$0xff]
    %v3360 = vld [vmem:[%s15 + $0x48] sm:$0xff]
    %v3361 = vld [vmem:[%s15 + $0x50] sm:$0xf]
    %v3362 = vld [vmem:[%s15 + $0x54] sm:$0xff]
    %v3363 = vld [vmem:[%s15 + $0x5c] sm:$0xff]
    %v3364 = vld [vmem:[%s15 + $0x64] sm:$0xff]
    %v3365 = vld [vmem:[%s15 + $0x6c] sm:$0xf]
    %v3366 = vld [vmem:[%s15 + $0x70] sm:$0xff]
    %v3367 = vld [vmem:[%s15 + $0x78] sm:$0xff]
    %v3368 = vld [vmem:[%s15 + $0x80] sm:$0xff]
    %v3369 = vld [vmem:[%s15 + $0x88] sm:$0xf]
    %v3370 = vld [vmem:[%s15 + $0x8c] sm:$0xff]
    %v3371 = vld [vmem:[%s15 + $0x94] sm:$0xff]
    %v3372 = vld [vmem:[%s15 + $0x9c] sm:$0xff]
    %v3373 = vld [vmem:[%s15 + $0xa4] sm:$0xf]
    %v3374 = vld [vmem:[%s15 + $0xa8] sm:$0xff]
    %v3375 = vld [vmem:[%s15 + $0xb0] sm:$0xff]
    %v3376 = vld [vmem:[%s15 + $0xb8] sm:$0xff]
    %v3377 = vld [vmem:[%s15 + $0xc0] sm:$0xf]
    %v3378 = vld [vmem:[%s15 + $0xc4] sm:$0xff]
    %v3379 = vld [vmem:[%s15 + $0xcc] sm:$0xff]
    %v3380 = vld [vmem:[%s15 + $0xd4] sm:$0xff]
    %v3381 = vld [vmem:[%s15 + $0xdc] sm:$0xf]
    %v3382 = vld [vmem:[%s15 + $0xe0] sm:$0xff]
    %v3383 = vld [vmem:[%s15 + $0xe8] sm:$0xff]
    %v3384 = vld [vmem:[%s15 + $0xf0] sm:$0xff]
    %v3385 = vld [vmem:[%s15 + $0xf8] sm:$0xf]
    %v3386 = vld [vmem:[%s15 + $0xfc] sm:$0xff]
    %v3387 = vld [vmem:[%s15 + $0x104] sm:$0xff]
    %v3388 = vld [vmem:[%s15 + $0x10c] sm:$0xff]
    %v3389 = vld [vmem:[%s15 + $0x114] sm:$0xf]
    %v3390 = vld [vmem:[%s15 + $0x118] sm:$0xff]
    %v3391 = vld [vmem:[%s15 + $0x120] sm:$0xff]
    %v3392 = vld [vmem:[%s15 + $0x128] sm:$0xff]
    %v3393 = vld [vmem:[%s15 + $0x130] sm:$0xf]
    %v3394 = vld [vmem:[%s15 + $0x134] sm:$0xff]
    %v3395 = vld [vmem:[%s15 + $0x13c] sm:$0xff]
    %v3396 = vld [vmem:[%s15 + $0x144] sm:$0xff]
    %v3397 = vld [vmem:[%s15 + $0x14c] sm:$0xf]
    %v3398 = vld [vmem:[%s15 + $0x150] sm:$0xff]
    %v3399 = vld [vmem:[%s15 + $0x158] sm:$0xff]
    %v3400 = vld [vmem:[%s15 + $0x160] sm:$0xff]
    %v3401 = vld [vmem:[%s15 + $0x168] sm:$0xf]
    %v3402 = vld [vmem:[%s15 + $0x16c] sm:$0xff]
    %v3403 = vld [vmem:[%s15 + $0x174] sm:$0xff]
    %v3404 = vld [vmem:[%s15 + $0x17c] sm:$0xff]
    %v3405 = vld [vmem:[%s15 + $0x184] sm:$0xf]
    %v3406 = vld [vmem:[%s15 + $0x188] sm:$0xff]
    %v3407 = vld [vmem:[%s15 + $0x190] sm:$0xff]
    %v3408 = vld [vmem:[%s15 + $0x198] sm:$0xff]
    %v3409 = vld [vmem:[%s15 + $0x1a0] sm:$0xf]
    %v3410 = vld [vmem:[%s15 + $0x1a4] sm:$0xff]
    %v3411 = vld [vmem:[%s15 + $0x1ac] sm:$0xff]
    %v3412 = vld [vmem:[%s15 + $0x1b4] sm:$0xff]
    %v3413 = vld [vmem:[%s15 + $0x1bc] sm:$0xf]
    %v3414 = vld [vmem:[%s15 + $0x1c0] sm:$0xff]
    %v3415 = vld [vmem:[%s15 + $0x1c8] sm:$0xff]
    %v3416 = vld [vmem:[%s15 + $0x1d0] sm:$0xff]
    %v3417 = vld [vmem:[%s15 + $0x1d8] sm:$0xf]
    %v3418 = vld [vmem:[%s15 + $0x1dc] sm:$0xff]
    %v3419 = vld [vmem:[%s15 + $0x1e4] sm:$0xff]
    %v3420 = vld [vmem:[%s15 + $0x1ec] sm:$0xff]
    %v3421 = vld [vmem:[%s15 + $0x1f4] sm:$0xf]
    %v3422 = vld [vmem:[%s15 + $0x1f8] sm:$0xff]
    %v3423 = vld [vmem:[%s15 + $0x200] sm:$0xff]
    %v3424 = vld [vmem:[%s15 + $0x208] sm:$0xff]
    %v3425 = vld [vmem:[%s15 + $0x210] sm:$0xf]
    %v3426 = vld [vmem:[%s15 + $0x214] sm:$0xff]
    %v3427 = vld [vmem:[%s15 + $0x21c] sm:$0xff]
    %v3428 = vld [vmem:[%s15 + $0x224] sm:$0xff]
    %v3429 = vld [vmem:[%s15 + $0x22c] sm:$0xf]
    %v3430 = vld [vmem:[%s15 + $0x230] sm:$0xff]
    %v3431 = vld [vmem:[%s15 + $0x238] sm:$0xff]
    %v3432 = vld [vmem:[%s15 + $0x240] sm:$0xff]
    %v3433 = vld [vmem:[%s15 + $0x248] sm:$0xf]
    %v3434 = vld [vmem:[%s15 + $0x24c] sm:$0xff]
    %v3435 = vld [vmem:[%s15 + $0x254] sm:$0xff]
    %v3436 = vld [vmem:[%s15 + $0x25c] sm:$0xff]
    %v3437 = vld [vmem:[%s15 + $0x264] sm:$0xf]
    %v3438 = vld [vmem:[%s15 + $0x268] sm:$0xff]
    %v3439 = vld [vmem:[%s15 + $0x270] sm:$0xff]
    %v3440 = vld [vmem:[%s15 + $0x278] sm:$0xff]
    %v3441 = vld [vmem:[%s15 + $0x280] sm:$0xf]
    %v3442 = vld [vmem:[%s15 + $0x284] sm:$0xff]
    %v3443 = vld [vmem:[%s15 + $0x28c] sm:$0xff]
    %v3444 = vld [vmem:[%s15 + $0x294] sm:$0xff]
    %v3445 = vld [vmem:[%s15 + $0x29c] sm:$0xf]
    %v3446 = vld [vmem:[%s15 + $0x2a0] sm:$0xff]
    %v3447 = vld [vmem:[%s15 + $0x2a8] sm:$0xff]
    %v3448 = vld [vmem:[%s15 + $0x2b0] sm:$0xff]
    %v3449 = vld [vmem:[%s15 + $0x2b8] sm:$0xf]
    %v3450 = vld [vmem:[%s15 + $0x2bc] sm:$0xff]
    %v3451 = vld [vmem:[%s15 + $0x2c4] sm:$0xff]
    %v3452 = vld [vmem:[%s15 + $0x2cc] sm:$0xff]
    %v3453 = vld [vmem:[%s15 + $0x2d4] sm:$0xf]
    %v3454 = vld [vmem:[%s15 + $0x2d8] sm:$0xff]
    %v3455 = vld [vmem:[%s15 + $0x2e0] sm:$0xff]
    %v3456 = vld [vmem:[%s15 + $0x2e8] sm:$0xff]
    %v3457 = vld [vmem:[%s15 + $0x2f0] sm:$0xf]
    %v3458 = vld [vmem:[%s15 + $0x2f4] sm:$0xff]
    %v3459 = vld [vmem:[%s15 + $0x2fc] sm:$0xff]
    %v3460 = vld [vmem:[%s15 + $0x304] sm:$0xff]
    %v3461 = vld [vmem:[%s15 + $0x30c] sm:$0xf]
    %v3462 = vld [vmem:[%s15 + $0x310] sm:$0xff]
    %v3463 = vld [vmem:[%s15 + $0x318] sm:$0xff]
    %v3464 = vld [vmem:[%s15 + $0x320] sm:$0xff]
    %v3465 = vld [vmem:[%s15 + $0x328] sm:$0xf]
    %v3466 = vld [vmem:[%s15 + $0x32c] sm:$0xff]
    %v3467 = vld [vmem:[%s15 + $0x334] sm:$0xff]
    %v3468 = vld [vmem:[%s15 + $0x33c] sm:$0xff]
    %v3469 = vld [vmem:[%s15 + $0x344] sm:$0xf]
    %v3470 = vld [vmem:[%s15 + $0x348] sm:$0xff]
    %v3471 = vld [vmem:[%s15 + $0x350] sm:$0xff]
    %v3472 = vld [vmem:[%s15 + $0x358] sm:$0xff]
    %v3473 = vld [vmem:[%s15 + $0x360] sm:$0xf]
    %v3474 = vld [vmem:[%s15 + $0x364] sm:$0xff]
    %v3475 = vld [vmem:[%s15 + $0x36c] sm:$0xff]
    %v3476 = vld [vmem:[%s15 + $0x374] sm:$0xff]
    %v3477 = vld [vmem:[%s15 + $0x37c] sm:$0xf]
    %v3478 = vld [vmem:[%s15 + $0x380] sm:$0xff]
    %v3479 = vld [vmem:[%s15 + $0x388] sm:$0xff]
    %v3480 = vld [vmem:[%s15 + $0x390] sm:$0xff]
    %v3481 = vld [vmem:[%s15 + $0x398] sm:$0xf]
    %v3482 = vld [vmem:[%s15 + $0x39c] sm:$0xff]
    %v3483 = vld [vmem:[%s15 + $0x3a4] sm:$0xff]
    %v3484 = vld [vmem:[%s15 + $0x3ac] sm:$0xff]
    %v3485 = vld [vmem:[%s15 + $0x3b4] sm:$0xf]
    %v3486 = vld [vmem:[%s15 + $0x3b8] sm:$0xff]
    %v3487 = vld [vmem:[%s15 + $0x3c0] sm:$0xff]
    %v3488 = vld [vmem:[%s15 + $0x3c8] sm:$0xff]
    %v3489 = vld [vmem:[%s15 + $0x3d0] sm:$0xf]
    %v3490 = vld [vmem:[%s15 + $0x3d4] sm:$0xff]
    %v3491 = vld [vmem:[%s15 + $0x3dc] sm:$0xff]
    %v3492 = vld [vmem:[%s15 + $0x3e4] sm:$0xff]
    %v3493 = vld [vmem:[%s15 + $0x3ec] sm:$0xf]
    %v3494 = vld [vmem:[%s15 + $0x3f0] sm:$0xff]
    %v3495 = vld [vmem:[%s15 + $0x3f8] sm:$0xff]
    %v3496 = vld [vmem:[%s15 + $0x400] sm:$0xff]
    %v3497 = vld [vmem:[%s15 + $0x408] sm:$0xf]
    %v3498 = vld [vmem:[%s15 + $0x40c] sm:$0xff]
    %v3499 = vld [vmem:[%s15 + $0x414] sm:$0xff]
    %v3500 = vld [vmem:[%s15 + $0x41c] sm:$0xff]
    %v3501 = vld [vmem:[%s15 + $0x424] sm:$0xf]
    %v3502 = vld [vmem:[%s15 + $0x428] sm:$0xff]
    %v3503 = vld [vmem:[%s15 + $0x430] sm:$0xff]
    %v3504 = vld [vmem:[%s15 + $0x438] sm:$0xff]
    %v3505 = vld [vmem:[%s15 + $0x440] sm:$0xf]
    %v3506 = vld [vmem:[%s15 + $0x444] sm:$0xff]
    %v3507 = vld [vmem:[%s15 + $0x44c] sm:$0xff]
    %v3508 = vld [vmem:[%s15 + $0x454] sm:$0xff]
    %v3509 = vld [vmem:[%s15 + $0x45c] sm:$0xf]
    %v3510 = vld [vmem:[%s15 + $0x460] sm:$0xff]
    %v3511 = vld [vmem:[%s15 + $0x468] sm:$0xff]
    %v3512 = vld [vmem:[%s15 + $0x470] sm:$0xff]
    %v3513 = vld [vmem:[%s15 + $0x478] sm:$0xf]
    %v3514 = vld [vmem:[%s15 + $0x47c] sm:$0xff]
    %v3515 = vld [vmem:[%s15 + $0x484] sm:$0xff]
    %v3516 = vld [vmem:[%s15 + $0x48c] sm:$0xff]
    %v3517 = vld [vmem:[%s15 + $0x494] sm:$0xf]
    %v3518 = vld [vmem:[%s15 + $0x498] sm:$0xff]
    %v3519 = vld [vmem:[%s15 + $0x4a0] sm:$0xff]
    %v3520 = vld [vmem:[%s15 + $0x4a8] sm:$0xff]
    %v3521 = vld [vmem:[%s15 + $0x4b0] sm:$0xf]
    %v3522 = vld [vmem:[%s15 + $0x4b4] sm:$0xff]
    %v3523 = vld [vmem:[%s15 + $0x4bc] sm:$0xff]
    %v3524 = vld [vmem:[%s15 + $0x4c4] sm:$0xff]
    %v3525 = vld [vmem:[%s15 + $0x4cc] sm:$0xf]
    %v3526 = vld [vmem:[%s15 + $0x4d0] sm:$0xff]
    %v3527 = vld [vmem:[%s15 + $0x4d8] sm:$0xff]
    %v3528 = vld [vmem:[%s15 + $0x4e0] sm:$0xff]
    %v3529 = vld [vmem:[%s15 + $0x4e8] sm:$0xf]
    %v3530 = vld [vmem:[%s15 + $0x4ec] sm:$0xff]
    %v3531 = vld [vmem:[%s15 + $0x4f4] sm:$0xff]
    %v3532 = vld [vmem:[%s15 + $0x4fc] sm:$0xff]
    %v3533 = vld [vmem:[%s15 + $0x504] sm:$0xf]
    %v3534 = vld [vmem:[%s15 + $0x508] sm:$0xff]
    %v3535 = vld [vmem:[%s15 + $0x510] sm:$0xff]
    %v3536 = vld [vmem:[%s15 + $0x518] sm:$0xff]
    %v3537 = vld [vmem:[%s15 + $0x520] sm:$0xf]
    %v3538 = vld [vmem:[%s15 + $0x524] sm:$0xff]
    %v3539 = vld [vmem:[%s15 + $0x52c] sm:$0xff]
    %v3540 = vld [vmem:[%s15 + $0x534] sm:$0xff]
    %v3541 = vld [vmem:[%s15 + $0x53c] sm:$0xf]
    %v3542 = vld [vmem:[%s15 + $0x540] sm:$0xff]
    %v3543 = vld [vmem:[%s15 + $0x548] sm:$0xff]
    %v3544 = vld [vmem:[%s15 + $0x550] sm:$0xff]
    %v3545 = vld [vmem:[%s15 + $0x558] sm:$0xf]
    %v3546 = vld [vmem:[%s15 + $0x55c] sm:$0xff]
    %v3547 = vld [vmem:[%s15 + $0x564] sm:$0xff]
    %v3548 = vld [vmem:[%s15 + $0x56c] sm:$0xff]
    %v3549 = vld [vmem:[%s15 + $0x574] sm:$0xf]
    %v3550 = vld [vmem:[%s15 + $0x578] sm:$0xff]
    %v3551 = vld [vmem:[%s15 + $0x580] sm:$0xff]
    %v3552 = vld [vmem:[%s15 + $0x588] sm:$0xff]
    %v3553 = vld [vmem:[%s15 + $0x590] sm:$0xf]
    %v3554 = vld [vmem:[%s15 + $0x594] sm:$0xff]
    %v3555 = vld [vmem:[%s15 + $0x59c] sm:$0xff]
    %v3556 = vld [vmem:[%s15 + $0x5a4] sm:$0xff]
    %v3557 = vld [vmem:[%s15 + $0x5ac] sm:$0xf]
    %v3558 = vld [vmem:[%s15 + $0x5b0] sm:$0xff]
    %v3559 = vld [vmem:[%s15 + $0x5b8] sm:$0xff]
    %v3560 = vld [vmem:[%s15 + $0x5c0] sm:$0xff]
    %v3561 = vld [vmem:[%s15 + $0x5c8] sm:$0xf]
    %v3562 = vld [vmem:[%s15 + $0x5cc] sm:$0xff]
    %v3563 = vld [vmem:[%s15 + $0x5d4] sm:$0xff]
    %v3564 = vld [vmem:[%s15 + $0x5dc] sm:$0xff]
    %v3565 = vld [vmem:[%s15 + $0x5e4] sm:$0xf]
    %v3566 = vld [vmem:[%s15 + $0x5e8] sm:$0xff]
    %v3567 = vld [vmem:[%s15 + $0x5f0] sm:$0xff]
    %v3568 = vld [vmem:[%s15 + $0x5f8] sm:$0xff]
    %v3569 = vld [vmem:[%s15 + $0x600] sm:$0xf]
    %v3570 = vld [vmem:[%s15 + $0x604] sm:$0xff]
    %v3571 = vld [vmem:[%s15 + $0x60c] sm:$0xff]
    %v3572 = vld [vmem:[%s15 + $0x614] sm:$0xff]
    %v3573 = vld [vmem:[%s15 + $0x61c] sm:$0xf]
    %v3574 = vld [vmem:[%s15 + $0x620] sm:$0xff]
    %v3575 = vld [vmem:[%s15 + $0x628] sm:$0xff]
    %v3576 = vld [vmem:[%s15 + $0x630] sm:$0xff]
    %v3577 = vld [vmem:[%s15 + $0x638] sm:$0xf]
    %v3578 = vld [vmem:[%s15 + $0x63c] sm:$0xff]
    %v3579 = vld [vmem:[%s15 + $0x644] sm:$0xff]
    %v3580 = vld [vmem:[%s15 + $0x64c] sm:$0xff]
    %v3581 = vld [vmem:[%s15 + $0x654] sm:$0xf]
    %v3582 = vld [vmem:[%s15 + $0x658] sm:$0xff]
    %v3583 = vld [vmem:[%s15 + $0x660] sm:$0xff]
    %v3584 = vld [vmem:[%s15 + $0x668] sm:$0xff]
    %v3585 = vld [vmem:[%s15 + $0x670] sm:$0xf]
    %v3586 = vld [vmem:[%s15 + $0x674] sm:$0xff]
    %v3587 = vld [vmem:[%s15 + $0x67c] sm:$0xff]
    %v3588 = vld [vmem:[%s15 + $0x684] sm:$0xff]
    %v3589 = vld [vmem:[%s15 + $0x68c] sm:$0xf]
    %v3590 = vld [vmem:[%s15 + $0x690] sm:$0xff]
    %v3591 = vld [vmem:[%s15 + $0x698] sm:$0xff]
    %v3592 = vld [vmem:[%s15 + $0x6a0] sm:$0xff]
    %v3593 = vld [vmem:[%s15 + $0x6a8] sm:$0xf]
    %v3594 = vld [vmem:[%s15 + $0x6ac] sm:$0xff]
    %v3595 = vld [vmem:[%s15 + $0x6b4] sm:$0xff]
    %v3596 = vld [vmem:[%s15 + $0x6bc] sm:$0xff]
    %v3597 = vld [vmem:[%s15 + $0x6c4] sm:$0xf]
    %v3598 = vld [vmem:[%s15 + $0x6c8] sm:$0xff]
    %v3599 = vld [vmem:[%s15 + $0x6d0] sm:$0xff]
    %v3600 = vld [vmem:[%s15 + $0x6d8] sm:$0xff]
    %v3601 = vld [vmem:[%s15 + $0x6e0] sm:$0xf]
    %v3602 = vld [vmem:[%s15 + $0x6e4] sm:$0xff]
    %v3603 = vld [vmem:[%s15 + $0x6ec] sm:$0xff]
    %v3604 = vld [vmem:[%s15 + $0x6f4] sm:$0xff]
    %v3605 = vld [vmem:[%s15 + $0x6fc] sm:$0xf]
    %v3606 = vld [vmem:[%s16] sm:$0x7f]
    %v3607 = vpack.c.bf16 %v3346, %v3346
    %v3608 = vpack.c.bf16 %v3347, %v3347
    %v3609 = vpack.c.bf16 %v3348, %v3348
    %v3610 = vpack.c.bf16 %v3349, %v3349
    %v3612 = vlaneseq
    %v3613 = vshrl.u32 %v3612, 7
    %v3614 = vsub.s32 0, %v3613
    %v3615 = vrot.slane %v3606, %v3614
    %v3616 = vlaneseq
    %v3617 = vshrl.u32 %v3616, 7
    %v3618 = vsub.s32 1, %v3617
    %v3619 = vrot.slane %v3606, %v3618
    %v3620 = vlaneseq
    %v3621 = vshrl.u32 %v3620, 7
    %v3622 = vsub.s32 2, %v3621
    %v3623 = vrot.slane %v3606, %v3622
    %v3624 = vlaneseq
    %v3625 = vshrl.u32 %v3624, 7
    %v3626 = vsub.s32 3, %v3625
    %v3627 = vrot.slane %v3606, %v3626
    %v3628 = vlaneseq
    %v3629 = vshrl.u32 %v3628, 7
    %v3630 = vsub.s32 4, %v3629
    %v3631 = vrot.slane %v3606, %v3630
    %v3632 = vlaneseq
    %v3633 = vshrl.u32 %v3632, 7
    %v3634 = vsub.s32 5, %v3633
    %v3635 = vrot.slane %v3606, %v3634
    %v3636 = vlaneseq
    %v3637 = vshrl.u32 %v3636, 7
    %v3638 = vsub.s32 6, %v3637
    %v3639 = vrot.slane %v3606, %v3638
    %v3903 = vunpack.c.l.b16 %v3350
    %v3904 = vunpack.c.h.b16 %v3350
    %v3905 = vunpack.c.l.b16 %v3351
    %v3906 = vunpack.c.h.b16 %v3351
    %v3907 = vunpack.c.l.b16 %v3352
    %v3908 = vunpack.c.h.b16 %v3352
    %v3909 = vunpack.c.l.b16 %v3353
    %v3910 = vunpack.c.l.b16 %v3354
    %v3911 = vunpack.c.h.b16 %v3354
    %v3912 = vunpack.c.l.b16 %v3355
    %v3913 = vunpack.c.h.b16 %v3355
    %v3914 = vunpack.c.l.b16 %v3356
    %v3915 = vunpack.c.h.b16 %v3356
    %v3916 = vunpack.c.l.b16 %v3357
    %v3917 = vunpack.c.l.b16 %v3358
    %v3918 = vunpack.c.h.b16 %v3358
    %v3919 = vunpack.c.l.b16 %v3359
    %v3920 = vunpack.c.h.b16 %v3359
    %v3921 = vunpack.c.l.b16 %v3360
    %v3922 = vunpack.c.h.b16 %v3360
    %v3923 = vunpack.c.l.b16 %v3361
    %v3924 = vunpack.c.l.b16 %v3362
    %v3925 = vunpack.c.h.b16 %v3362
    %v3926 = vunpack.c.l.b16 %v3363
    %v3927 = vunpack.c.h.b16 %v3363
    %v3928 = vunpack.c.l.b16 %v3364
    %v3929 = vunpack.c.h.b16 %v3364
    %v3930 = vunpack.c.l.b16 %v3365
    %v3931 = vunpack.c.l.b16 %v3366
    %v3932 = vunpack.c.h.b16 %v3366
    %v3933 = vunpack.c.l.b16 %v3367
    %v3934 = vunpack.c.h.b16 %v3367
    %v3935 = vunpack.c.l.b16 %v3368
    %v3936 = vunpack.c.h.b16 %v3368
    %v3937 = vunpack.c.l.b16 %v3369
    %v3938 = vunpack.c.l.b16 %v3370
    %v3939 = vunpack.c.h.b16 %v3370
    %v3940 = vunpack.c.l.b16 %v3371
    %v3941 = vunpack.c.h.b16 %v3371
    %v3942 = vunpack.c.l.b16 %v3372
    %v3943 = vunpack.c.h.b16 %v3372
    %v3944 = vunpack.c.l.b16 %v3373
    %v3945 = vunpack.c.l.b16 %v3374
    %v3946 = vunpack.c.h.b16 %v3374
    %v3947 = vunpack.c.l.b16 %v3375
    %v3948 = vunpack.c.h.b16 %v3375
    %v3949 = vunpack.c.l.b16 %v3376
    %v3950 = vunpack.c.h.b16 %v3376
    %v3951 = vunpack.c.l.b16 %v3377
    %v3952 = vunpack.c.l.b16 %v3378
    %v3953 = vunpack.c.h.b16 %v3378
    %v3954 = vunpack.c.l.b16 %v3379
    %v3955 = vunpack.c.h.b16 %v3379
    %v3956 = vunpack.c.l.b16 %v3380
    %v3957 = vunpack.c.h.b16 %v3380
    %v3958 = vunpack.c.l.b16 %v3381
    %v3959 = vunpack.c.l.b16 %v3382
    %v3960 = vunpack.c.h.b16 %v3382
    %v3961 = vunpack.c.l.b16 %v3383
    %v3962 = vunpack.c.h.b16 %v3383
    %v3963 = vunpack.c.l.b16 %v3384
    %v3964 = vunpack.c.h.b16 %v3384
    %v3965 = vunpack.c.l.b16 %v3385
    %v3966 = vunpack.c.l.b16 %v3386
    %v3967 = vunpack.c.h.b16 %v3386
    %v3968 = vunpack.c.l.b16 %v3387
    %v3969 = vunpack.c.h.b16 %v3387
    %v3970 = vunpack.c.l.b16 %v3388
    %v3971 = vunpack.c.h.b16 %v3388
    %v3972 = vunpack.c.l.b16 %v3389
    %v3973 = vunpack.c.l.b16 %v3390
    %v3974 = vunpack.c.h.b16 %v3390
    %v3975 = vunpack.c.l.b16 %v3391
    %v3976 = vunpack.c.h.b16 %v3391
    %v3977 = vunpack.c.l.b16 %v3392
    %v3978 = vunpack.c.h.b16 %v3392
    %v3979 = vunpack.c.l.b16 %v3393
    %v3980 = vunpack.c.l.b16 %v3394
    %v3981 = vunpack.c.h.b16 %v3394
    %v3982 = vunpack.c.l.b16 %v3395
    %v3983 = vunpack.c.h.b16 %v3395
    %v3984 = vunpack.c.l.b16 %v3396
    %v3985 = vunpack.c.h.b16 %v3396
    %v3986 = vunpack.c.l.b16 %v3397
    %v3987 = vunpack.c.l.b16 %v3398
    %v3988 = vunpack.c.h.b16 %v3398
    %v3989 = vunpack.c.l.b16 %v3399
    %v3990 = vunpack.c.h.b16 %v3399
    %v3991 = vunpack.c.l.b16 %v3400
    %v3992 = vunpack.c.h.b16 %v3400
    %v3993 = vunpack.c.l.b16 %v3401
    %v3994 = vunpack.c.l.b16 %v3402
    %v3995 = vunpack.c.h.b16 %v3402
    %v3996 = vunpack.c.l.b16 %v3403
    %v3997 = vunpack.c.h.b16 %v3403
    %v3998 = vunpack.c.l.b16 %v3404
    %v3999 = vunpack.c.h.b16 %v3404
    %v4000 = vunpack.c.l.b16 %v3405
    %v4001 = vunpack.c.l.b16 %v3406
    %v4002 = vunpack.c.h.b16 %v3406
    %v4003 = vunpack.c.l.b16 %v3407
    %v4004 = vunpack.c.h.b16 %v3407
    %v4005 = vunpack.c.l.b16 %v3408
    %v4006 = vunpack.c.h.b16 %v3408
    %v4007 = vunpack.c.l.b16 %v3409
    %v4008 = vunpack.c.l.b16 %v3410
    %v4009 = vunpack.c.h.b16 %v3410
    %v4010 = vunpack.c.l.b16 %v3411
    %v4011 = vunpack.c.h.b16 %v3411
    %v4012 = vunpack.c.l.b16 %v3412
    %v4013 = vunpack.c.h.b16 %v3412
    %v4014 = vunpack.c.l.b16 %v3413
    %v4015 = vunpack.c.l.b16 %v3414
    %v4016 = vunpack.c.h.b16 %v3414
    %v4017 = vunpack.c.l.b16 %v3415
    %v4018 = vunpack.c.h.b16 %v3415
    %v4019 = vunpack.c.l.b16 %v3416
    %v4020 = vunpack.c.h.b16 %v3416
    %v4021 = vunpack.c.l.b16 %v3417
    %v4022 = vunpack.c.l.b16 %v3418
    %v4023 = vunpack.c.h.b16 %v3418
    %v4024 = vunpack.c.l.b16 %v3419
    %v4025 = vunpack.c.h.b16 %v3419
    %v4026 = vunpack.c.l.b16 %v3420
    %v4027 = vunpack.c.h.b16 %v3420
    %v4028 = vunpack.c.l.b16 %v3421
    %v4029 = vunpack.c.l.b16 %v3422
    %v4030 = vunpack.c.h.b16 %v3422
    %v4031 = vunpack.c.l.b16 %v3423
    %v4032 = vunpack.c.h.b16 %v3423
    %v4033 = vunpack.c.l.b16 %v3424
    %v4034 = vunpack.c.h.b16 %v3424
    %v4035 = vunpack.c.l.b16 %v3425
    %v4036 = vunpack.c.l.b16 %v3426
    %v4037 = vunpack.c.h.b16 %v3426
    %v4038 = vunpack.c.l.b16 %v3427
    %v4039 = vunpack.c.h.b16 %v3427
    %v4040 = vunpack.c.l.b16 %v3428
    %v4041 = vunpack.c.h.b16 %v3428
    %v4042 = vunpack.c.l.b16 %v3429
    %v4043 = vunpack.c.l.b16 %v3430
    %v4044 = vunpack.c.h.b16 %v3430
    %v4045 = vunpack.c.l.b16 %v3431
    %v4046 = vunpack.c.h.b16 %v3431
    %v4047 = vunpack.c.l.b16 %v3432
    %v4048 = vunpack.c.h.b16 %v3432
    %v4049 = vunpack.c.l.b16 %v3433
    %v4050 = vunpack.c.l.b16 %v3434
    %v4051 = vunpack.c.h.b16 %v3434
    %v4052 = vunpack.c.l.b16 %v3435
    %v4053 = vunpack.c.h.b16 %v3435
    %v4054 = vunpack.c.l.b16 %v3436
    %v4055 = vunpack.c.h.b16 %v3436
    %v4056 = vunpack.c.l.b16 %v3437
    %v4057 = vunpack.c.l.b16 %v3438
    %v4058 = vunpack.c.h.b16 %v3438
    %v4059 = vunpack.c.l.b16 %v3439
    %v4060 = vunpack.c.h.b16 %v3439
    %v4061 = vunpack.c.l.b16 %v3440
    %v4062 = vunpack.c.h.b16 %v3440
    %v4063 = vunpack.c.l.b16 %v3441
    %v4064 = vunpack.c.l.b16 %v3442
    %v4065 = vunpack.c.h.b16 %v3442
    %v4066 = vunpack.c.l.b16 %v3443
    %v4067 = vunpack.c.h.b16 %v3443
    %v4068 = vunpack.c.l.b16 %v3444
    %v4069 = vunpack.c.h.b16 %v3444
    %v4070 = vunpack.c.l.b16 %v3445
    %v4071 = vunpack.c.l.b16 %v3446
    %v4072 = vunpack.c.h.b16 %v3446
    %v4073 = vunpack.c.l.b16 %v3447
    %v4074 = vunpack.c.h.b16 %v3447
    %v4075 = vunpack.c.l.b16 %v3448
    %v4076 = vunpack.c.h.b16 %v3448
    %v4077 = vunpack.c.l.b16 %v3449
    %v4078 = vunpack.c.l.b16 %v3450
    %v4079 = vunpack.c.h.b16 %v3450
    %v4080 = vunpack.c.l.b16 %v3451
    %v4081 = vunpack.c.h.b16 %v3451
    %v4082 = vunpack.c.l.b16 %v3452
    %v4083 = vunpack.c.h.b16 %v3452
    %v4084 = vunpack.c.l.b16 %v3453
    %v4085 = vunpack.c.l.b16 %v3454
    %v4086 = vunpack.c.h.b16 %v3454
    %v4087 = vunpack.c.l.b16 %v3455
    %v4088 = vunpack.c.h.b16 %v3455
    %v4089 = vunpack.c.l.b16 %v3456
    %v4090 = vunpack.c.h.b16 %v3456
    %v4091 = vunpack.c.l.b16 %v3457
    %v4092 = vunpack.c.l.b16 %v3458
    %v4093 = vunpack.c.h.b16 %v3458
    %v4094 = vunpack.c.l.b16 %v3459
    %v4095 = vunpack.c.h.b16 %v3459
    %v4096 = vunpack.c.l.b16 %v3460
    %v4097 = vunpack.c.h.b16 %v3460
    %v4098 = vunpack.c.l.b16 %v3461
    %v4099 = vunpack.c.l.b16 %v3462
    %v4100 = vunpack.c.h.b16 %v3462
    %v4101 = vunpack.c.l.b16 %v3463
    %v4102 = vunpack.c.h.b16 %v3463
    %v4103 = vunpack.c.l.b16 %v3464
    %v4104 = vunpack.c.h.b16 %v3464
    %v4105 = vunpack.c.l.b16 %v3465
    %v4106 = vunpack.c.l.b16 %v3466
    %v4107 = vunpack.c.h.b16 %v3466
    %v4108 = vunpack.c.l.b16 %v3467
    %v4109 = vunpack.c.h.b16 %v3467
    %v4110 = vunpack.c.l.b16 %v3468
    %v4111 = vunpack.c.h.b16 %v3468
    %v4112 = vunpack.c.l.b16 %v3469
    %v4113 = vunpack.c.l.b16 %v3470
    %v4114 = vunpack.c.h.b16 %v3470
    %v4115 = vunpack.c.l.b16 %v3471
    %v4116 = vunpack.c.h.b16 %v3471
    %v4117 = vunpack.c.l.b16 %v3472
    %v4118 = vunpack.c.h.b16 %v3472
    %v4119 = vunpack.c.l.b16 %v3473
    %v4120 = vunpack.c.l.b16 %v3474
    %v4121 = vunpack.c.h.b16 %v3474
    %v4122 = vunpack.c.l.b16 %v3475
    %v4123 = vunpack.c.h.b16 %v3475
    %v4124 = vunpack.c.l.b16 %v3476
    %v4125 = vunpack.c.h.b16 %v3476
    %v4126 = vunpack.c.l.b16 %v3477
    %v4127 = vunpack.c.l.b16 %v3478
    %v4128 = vunpack.c.h.b16 %v3478
    %v4129 = vunpack.c.l.b16 %v3479
    %v4130 = vunpack.c.h.b16 %v3479
    %v4131 = vunpack.c.l.b16 %v3480
    %v4132 = vunpack.c.h.b16 %v3480
    %v4133 = vunpack.c.l.b16 %v3481
    %v4134 = vunpack.c.l.b16 %v3482
    %v4135 = vunpack.c.h.b16 %v3482
    %v4136 = vunpack.c.l.b16 %v3483
    %v4137 = vunpack.c.h.b16 %v3483
    %v4138 = vunpack.c.l.b16 %v3484
    %v4139 = vunpack.c.h.b16 %v3484
    %v4140 = vunpack.c.l.b16 %v3485
    %v4141 = vunpack.c.l.b16 %v3486
    %v4142 = vunpack.c.h.b16 %v3486
    %v4143 = vunpack.c.l.b16 %v3487
    %v4144 = vunpack.c.h.b16 %v3487
    %v4145 = vunpack.c.l.b16 %v3488
    %v4146 = vunpack.c.h.b16 %v3488
    %v4147 = vunpack.c.l.b16 %v3489
    %v4148 = vunpack.c.l.b16 %v3490
    %v4149 = vunpack.c.h.b16 %v3490
    %v4150 = vunpack.c.l.b16 %v3491
    %v4151 = vunpack.c.h.b16 %v3491
    %v4152 = vunpack.c.l.b16 %v3492
    %v4153 = vunpack.c.h.b16 %v3492
    %v4154 = vunpack.c.l.b16 %v3493
    %v4155 = vunpack.c.l.b16 %v3494
    %v4156 = vunpack.c.h.b16 %v3494
    %v4157 = vunpack.c.l.b16 %v3495
    %v4158 = vunpack.c.h.b16 %v3495
    %v4159 = vunpack.c.l.b16 %v3496
    %v4160 = vunpack.c.h.b16 %v3496
    %v4161 = vunpack.c.l.b16 %v3497
    %v4162 = vunpack.c.l.b16 %v3498
    %v4163 = vunpack.c.h.b16 %v3498
    %v4164 = vunpack.c.l.b16 %v3499
    %v4165 = vunpack.c.h.b16 %v3499
    %v4166 = vunpack.c.l.b16 %v3500
    %v4167 = vunpack.c.h.b16 %v3500
    %v4168 = vunpack.c.l.b16 %v3501
    %v4169 = vunpack.c.l.b16 %v3502
    %v4170 = vunpack.c.h.b16 %v3502
    %v4171 = vunpack.c.l.b16 %v3503
    %v4172 = vunpack.c.h.b16 %v3503
    %v4173 = vunpack.c.l.b16 %v3504
    %v4174 = vunpack.c.h.b16 %v3504
    %v4175 = vunpack.c.l.b16 %v3505
    %v4176 = vunpack.c.l.b16 %v3506
    %v4177 = vunpack.c.h.b16 %v3506
    %v4178 = vunpack.c.l.b16 %v3507
    %v4179 = vunpack.c.h.b16 %v3507
    %v4180 = vunpack.c.l.b16 %v3508
    %v4181 = vunpack.c.h.b16 %v3508
    %v4182 = vunpack.c.l.b16 %v3509
    %v4183 = vunpack.c.l.b16 %v3510
    %v4184 = vunpack.c.h.b16 %v3510
    %v4185 = vunpack.c.l.b16 %v3511
    %v4186 = vunpack.c.h.b16 %v3511
    %v4187 = vunpack.c.l.b16 %v3512
    %v4188 = vunpack.c.h.b16 %v3512
    %v4189 = vunpack.c.l.b16 %v3513
    %v4190 = vunpack.c.l.b16 %v3514
    %v4191 = vunpack.c.h.b16 %v3514
    %v4192 = vunpack.c.l.b16 %v3515
    %v4193 = vunpack.c.h.b16 %v3515
    %v4194 = vunpack.c.l.b16 %v3516
    %v4195 = vunpack.c.h.b16 %v3516
    %v4196 = vunpack.c.l.b16 %v3517
    %v4197 = vunpack.c.l.b16 %v3518
    %v4198 = vunpack.c.h.b16 %v3518
    %v4199 = vunpack.c.l.b16 %v3519
    %v4200 = vunpack.c.h.b16 %v3519
    %v4201 = vunpack.c.l.b16 %v3520
    %v4202 = vunpack.c.h.b16 %v3520
    %v4203 = vunpack.c.l.b16 %v3521
    %v4204 = vunpack.c.l.b16 %v3522
    %v4205 = vunpack.c.h.b16 %v3522
    %v4206 = vunpack.c.l.b16 %v3523
    %v4207 = vunpack.c.h.b16 %v3523
    %v4208 = vunpack.c.l.b16 %v3524
    %v4209 = vunpack.c.h.b16 %v3524
    %v4210 = vunpack.c.l.b16 %v3525
    %v4211 = vunpack.c.l.b16 %v3526
    %v4212 = vunpack.c.h.b16 %v3526
    %v4213 = vunpack.c.l.b16 %v3527
    %v4214 = vunpack.c.h.b16 %v3527
    %v4215 = vunpack.c.l.b16 %v3528
    %v4216 = vunpack.c.h.b16 %v3528
    %v4217 = vunpack.c.l.b16 %v3529
    %v4218 = vunpack.c.l.b16 %v3530
    %v4219 = vunpack.c.h.b16 %v3530
    %v4220 = vunpack.c.l.b16 %v3531
    %v4221 = vunpack.c.h.b16 %v3531
    %v4222 = vunpack.c.l.b16 %v3532
    %v4223 = vunpack.c.h.b16 %v3532
    %v4224 = vunpack.c.l.b16 %v3533
    %v4225 = vunpack.c.l.b16 %v3534
    %v4226 = vunpack.c.h.b16 %v3534
    %v4227 = vunpack.c.l.b16 %v3535
    %v4228 = vunpack.c.h.b16 %v3535
    %v4229 = vunpack.c.l.b16 %v3536
    %v4230 = vunpack.c.h.b16 %v3536
    %v4231 = vunpack.c.l.b16 %v3537
    %v4232 = vunpack.c.l.b16 %v3538
    %v4233 = vunpack.c.h.b16 %v3538
    %v4234 = vunpack.c.l.b16 %v3539
    %v4235 = vunpack.c.h.b16 %v3539
    %v4236 = vunpack.c.l.b16 %v3540
    %v4237 = vunpack.c.h.b16 %v3540
    %v4238 = vunpack.c.l.b16 %v3541
    %v4239 = vunpack.c.l.b16 %v3542
    %v4240 = vunpack.c.h.b16 %v3542
    %v4241 = vunpack.c.l.b16 %v3543
    %v4242 = vunpack.c.h.b16 %v3543
    %v4243 = vunpack.c.l.b16 %v3544
    %v4244 = vunpack.c.h.b16 %v3544
    %v4245 = vunpack.c.l.b16 %v3545
    %v4246 = vunpack.c.l.b16 %v3546
    %v4247 = vunpack.c.h.b16 %v3546
    %v4248 = vunpack.c.l.b16 %v3547
    %v4249 = vunpack.c.h.b16 %v3547
    %v4250 = vunpack.c.l.b16 %v3548
    %v4251 = vunpack.c.h.b16 %v3548
    %v4252 = vunpack.c.l.b16 %v3549
    %v4253 = vunpack.c.l.b16 %v3550
    %v4254 = vunpack.c.h.b16 %v3550
    %v4255 = vunpack.c.l.b16 %v3551
    %v4256 = vunpack.c.h.b16 %v3551
    %v4257 = vunpack.c.l.b16 %v3552
    %v4258 = vunpack.c.h.b16 %v3552
    %v4259 = vunpack.c.l.b16 %v3553
    %v4260 = vunpack.c.l.b16 %v3554
    %v4261 = vunpack.c.h.b16 %v3554
    %v4262 = vunpack.c.l.b16 %v3555
    %v4263 = vunpack.c.h.b16 %v3555
    %v4264 = vunpack.c.l.b16 %v3556
    %v4265 = vunpack.c.h.b16 %v3556
    %v4266 = vunpack.c.l.b16 %v3557
    %v4267 = vunpack.c.l.b16 %v3558
    %v4268 = vunpack.c.h.b16 %v3558
    %v4269 = vunpack.c.l.b16 %v3559
    %v4270 = vunpack.c.h.b16 %v3559
    %v4271 = vunpack.c.l.b16 %v3560
    %v4272 = vunpack.c.h.b16 %v3560
    %v4273 = vunpack.c.l.b16 %v3561
    %v4274 = vunpack.c.l.b16 %v3562
    %v4275 = vunpack.c.h.b16 %v3562
    %v4276 = vunpack.c.l.b16 %v3563
    %v4277 = vunpack.c.h.b16 %v3563
    %v4278 = vunpack.c.l.b16 %v3564
    %v4279 = vunpack.c.h.b16 %v3564
    %v4280 = vunpack.c.l.b16 %v3565
    %v4281 = vunpack.c.l.b16 %v3566
    %v4282 = vunpack.c.h.b16 %v3566
    %v4283 = vunpack.c.l.b16 %v3567
    %v4284 = vunpack.c.h.b16 %v3567
    %v4285 = vunpack.c.l.b16 %v3568
    %v4286 = vunpack.c.h.b16 %v3568
    %v4287 = vunpack.c.l.b16 %v3569
    %v4288 = vunpack.c.l.b16 %v3570
    %v4289 = vunpack.c.h.b16 %v3570
    %v4290 = vunpack.c.l.b16 %v3571
    %v4291 = vunpack.c.h.b16 %v3571
    %v4292 = vunpack.c.l.b16 %v3572
    %v4293 = vunpack.c.h.b16 %v3572
    %v4294 = vunpack.c.l.b16 %v3573
    %v4295 = vunpack.c.l.b16 %v3574
    %v4296 = vunpack.c.h.b16 %v3574
    %v4297 = vunpack.c.l.b16 %v3575
    %v4298 = vunpack.c.h.b16 %v3575
    %v4299 = vunpack.c.l.b16 %v3576
    %v4300 = vunpack.c.h.b16 %v3576
    %v4301 = vunpack.c.l.b16 %v3577
    %v4302 = vunpack.c.l.b16 %v3578
    %v4303 = vunpack.c.h.b16 %v3578
    %v4304 = vunpack.c.l.b16 %v3579
    %v4305 = vunpack.c.h.b16 %v3579
    %v4306 = vunpack.c.l.b16 %v3580
    %v4307 = vunpack.c.h.b16 %v3580
    %v4308 = vunpack.c.l.b16 %v3581
    %v4309 = vunpack.c.l.b16 %v3582
    %v4310 = vunpack.c.h.b16 %v3582
    %v4311 = vunpack.c.l.b16 %v3583
    %v4312 = vunpack.c.h.b16 %v3583
    %v4313 = vunpack.c.l.b16 %v3584
    %v4314 = vunpack.c.h.b16 %v3584
    %v4315 = vunpack.c.l.b16 %v3585
    %v4316 = vunpack.c.l.b16 %v3586
    %v4317 = vunpack.c.h.b16 %v3586
    %v4318 = vunpack.c.l.b16 %v3587
    %v4319 = vunpack.c.h.b16 %v3587
    %v4320 = vunpack.c.l.b16 %v3588
    %v4321 = vunpack.c.h.b16 %v3588
    %v4322 = vunpack.c.l.b16 %v3589
    %v4323 = vunpack.c.l.b16 %v3590
    %v4324 = vunpack.c.h.b16 %v3590
    %v4325 = vunpack.c.l.b16 %v3591
    %v4326 = vunpack.c.h.b16 %v3591
    %v4327 = vunpack.c.l.b16 %v3592
    %v4328 = vunpack.c.h.b16 %v3592
    %v4329 = vunpack.c.l.b16 %v3593
    %v4330 = vunpack.c.l.b16 %v3594
    %v4331 = vunpack.c.h.b16 %v3594
    %v4332 = vunpack.c.l.b16 %v3595
    %v4333 = vunpack.c.h.b16 %v3595
    %v4334 = vunpack.c.l.b16 %v3596
    %v4335 = vunpack.c.h.b16 %v3596
    %v4336 = vunpack.c.l.b16 %v3597
    %v4337 = vunpack.c.l.b16 %v3598
    %v4338 = vunpack.c.h.b16 %v3598
    %v4339 = vunpack.c.l.b16 %v3599
    %v4340 = vunpack.c.h.b16 %v3599
    %v4341 = vunpack.c.l.b16 %v3600
    %v4342 = vunpack.c.h.b16 %v3600
    %v4343 = vunpack.c.l.b16 %v3601
    %v4344 = vunpack.c.l.b16 %v3602
    %v4345 = vunpack.c.h.b16 %v3602
    %v4346 = vunpack.c.l.b16 %v3603
    %v4347 = vunpack.c.h.b16 %v3603
    %v4348 = vunpack.c.l.b16 %v3604
    %v4349 = vunpack.c.h.b16 %v3604
    %v4350 = vunpack.c.l.b16 %v3605
    %v4351 = vpack.c.b16 %v3910, %v3903
    %v4352 = vpack.c.b16 %v3911, %v3904
    %v4353 = vpack.c.b16 %v3912, %v3905
    %v4354 = vpack.c.b16 %v3913, %v3906
    %v4355 = vpack.c.b16 %v3914, %v3907
    %v4356 = vpack.c.b16 %v3915, %v3908
    %v4357 = vpack.c.b16 %v3916, %v3909
    %v4358 = vpack.c.b16 %v3924, %v3917
    %v4359 = vpack.c.b16 %v3925, %v3918
    %v4360 = vpack.c.b16 %v3926, %v3919
    %v4361 = vpack.c.b16 %v3927, %v3920
    %v4362 = vpack.c.b16 %v3928, %v3921
    %v4363 = vpack.c.b16 %v3929, %v3922
    %v4364 = vpack.c.b16 %v3930, %v3923
    %v4365 = vpack.c.b16 %v3938, %v3931
    %v4366 = vpack.c.b16 %v3939, %v3932
    %v4367 = vpack.c.b16 %v3940, %v3933
    %v4368 = vpack.c.b16 %v3941, %v3934
    %v4369 = vpack.c.b16 %v3942, %v3935
    %v4370 = vpack.c.b16 %v3943, %v3936
    %v4371 = vpack.c.b16 %v3944, %v3937
    %v4372 = vpack.c.b16 %v3952, %v3945
    %v4373 = vpack.c.b16 %v3953, %v3946
    %v4374 = vpack.c.b16 %v3954, %v3947
    %v4375 = vpack.c.b16 %v3955, %v3948
    %v4376 = vpack.c.b16 %v3956, %v3949
    %v4377 = vpack.c.b16 %v3957, %v3950
    %v4378 = vpack.c.b16 %v3958, %v3951
    %v4379 = vpack.c.b16 %v3966, %v3959
    %v4380 = vpack.c.b16 %v3967, %v3960
    %v4381 = vpack.c.b16 %v3968, %v3961
    %v4382 = vpack.c.b16 %v3969, %v3962
    %v4383 = vpack.c.b16 %v3970, %v3963
    %v4384 = vpack.c.b16 %v3971, %v3964
    %v4385 = vpack.c.b16 %v3972, %v3965
    %v4386 = vpack.c.b16 %v3980, %v3973
    %v4387 = vpack.c.b16 %v3981, %v3974
    %v4388 = vpack.c.b16 %v3982, %v3975
    %v4389 = vpack.c.b16 %v3983, %v3976
    %v4390 = vpack.c.b16 %v3984, %v3977
    %v4391 = vpack.c.b16 %v3985, %v3978
    %v4392 = vpack.c.b16 %v3986, %v3979
    %v4393 = vpack.c.b16 %v3994, %v3987
    %v4394 = vpack.c.b16 %v3995, %v3988
    %v4395 = vpack.c.b16 %v3996, %v3989
    %v4396 = vpack.c.b16 %v3997, %v3990
    %v4397 = vpack.c.b16 %v3998, %v3991
    %v4398 = vpack.c.b16 %v3999, %v3992
    %v4399 = vpack.c.b16 %v4000, %v3993
    %v4400 = vpack.c.b16 %v4008, %v4001
    %v4401 = vpack.c.b16 %v4009, %v4002
    %v4402 = vpack.c.b16 %v4010, %v4003
    %v4403 = vpack.c.b16 %v4011, %v4004
    %v4404 = vpack.c.b16 %v4012, %v4005
    %v4405 = vpack.c.b16 %v4013, %v4006
    %v4406 = vpack.c.b16 %v4014, %v4007
    %v4407 = vpack.c.b16 %v4022, %v4015
    %v4408 = vpack.c.b16 %v4023, %v4016
    %v4409 = vpack.c.b16 %v4024, %v4017
    %v4410 = vpack.c.b16 %v4025, %v4018
    %v4411 = vpack.c.b16 %v4026, %v4019
    %v4412 = vpack.c.b16 %v4027, %v4020
    %v4413 = vpack.c.b16 %v4028, %v4021
    %v4414 = vpack.c.b16 %v4036, %v4029
    %v4415 = vpack.c.b16 %v4037, %v4030
    %v4416 = vpack.c.b16 %v4038, %v4031
    %v4417 = vpack.c.b16 %v4039, %v4032
    %v4418 = vpack.c.b16 %v4040, %v4033
    %v4419 = vpack.c.b16 %v4041, %v4034
    %v4420 = vpack.c.b16 %v4042, %v4035
    %v4421 = vpack.c.b16 %v4050, %v4043
    %v4422 = vpack.c.b16 %v4051, %v4044
    %v4423 = vpack.c.b16 %v4052, %v4045
    %v4424 = vpack.c.b16 %v4053, %v4046
    %v4425 = vpack.c.b16 %v4054, %v4047
    %v4426 = vpack.c.b16 %v4055, %v4048
    %v4427 = vpack.c.b16 %v4056, %v4049
    %v4428 = vpack.c.b16 %v4064, %v4057
    %v4429 = vpack.c.b16 %v4065, %v4058
    %v4430 = vpack.c.b16 %v4066, %v4059
    %v4431 = vpack.c.b16 %v4067, %v4060
    %v4432 = vpack.c.b16 %v4068, %v4061
    %v4433 = vpack.c.b16 %v4069, %v4062
    %v4434 = vpack.c.b16 %v4070, %v4063
    %v4435 = vpack.c.b16 %v4078, %v4071
    %v4436 = vpack.c.b16 %v4079, %v4072
    %v4437 = vpack.c.b16 %v4080, %v4073
    %v4438 = vpack.c.b16 %v4081, %v4074
    %v4439 = vpack.c.b16 %v4082, %v4075
    %v4440 = vpack.c.b16 %v4083, %v4076
    %v4441 = vpack.c.b16 %v4084, %v4077
    %v4442 = vpack.c.b16 %v4092, %v4085
    %v4443 = vpack.c.b16 %v4093, %v4086
    %v4444 = vpack.c.b16 %v4094, %v4087
    %v4445 = vpack.c.b16 %v4095, %v4088
    %v4446 = vpack.c.b16 %v4096, %v4089
    %v4447 = vpack.c.b16 %v4097, %v4090
    %v4448 = vpack.c.b16 %v4098, %v4091
    %v4449 = vpack.c.b16 %v4106, %v4099
    %v4450 = vpack.c.b16 %v4107, %v4100
    %v4451 = vpack.c.b16 %v4108, %v4101
    %v4452 = vpack.c.b16 %v4109, %v4102
    %v4453 = vpack.c.b16 %v4110, %v4103
    %v4454 = vpack.c.b16 %v4111, %v4104
    %v4455 = vpack.c.b16 %v4112, %v4105
    %v4456 = vpack.c.b16 %v4120, %v4113
    %v4457 = vpack.c.b16 %v4121, %v4114
    %v4458 = vpack.c.b16 %v4122, %v4115
    %v4459 = vpack.c.b16 %v4123, %v4116
    %v4460 = vpack.c.b16 %v4124, %v4117
    %v4461 = vpack.c.b16 %v4125, %v4118
    %v4462 = vpack.c.b16 %v4126, %v4119
    %v4463 = vpack.c.b16 %v4134, %v4127
    %v4464 = vpack.c.b16 %v4135, %v4128
    %v4465 = vpack.c.b16 %v4136, %v4129
    %v4466 = vpack.c.b16 %v4137, %v4130
    %v4467 = vpack.c.b16 %v4138, %v4131
    %v4468 = vpack.c.b16 %v4139, %v4132
    %v4469 = vpack.c.b16 %v4140, %v4133
    %v4470 = vpack.c.b16 %v4148, %v4141
    %v4471 = vpack.c.b16 %v4149, %v4142
    %v4472 = vpack.c.b16 %v4150, %v4143
    %v4473 = vpack.c.b16 %v4151, %v4144
    %v4474 = vpack.c.b16 %v4152, %v4145
    %v4475 = vpack.c.b16 %v4153, %v4146
    %v4476 = vpack.c.b16 %v4154, %v4147
    %v4477 = vpack.c.b16 %v4162, %v4155
    %v4478 = vpack.c.b16 %v4163, %v4156
    %v4479 = vpack.c.b16 %v4164, %v4157
    %v4480 = vpack.c.b16 %v4165, %v4158
    %v4481 = vpack.c.b16 %v4166, %v4159
    %v4482 = vpack.c.b16 %v4167, %v4160
    %v4483 = vpack.c.b16 %v4168, %v4161
    %v4484 = vpack.c.b16 %v4176, %v4169
    %v4485 = vpack.c.b16 %v4177, %v4170
    %v4486 = vpack.c.b16 %v4178, %v4171
    %v4487 = vpack.c.b16 %v4179, %v4172
    %v4488 = vpack.c.b16 %v4180, %v4173
    %v4489 = vpack.c.b16 %v4181, %v4174
    %v4490 = vpack.c.b16 %v4182, %v4175
    %v4491 = vpack.c.b16 %v4190, %v4183
    %v4492 = vpack.c.b16 %v4191, %v4184
    %v4493 = vpack.c.b16 %v4192, %v4185
    %v4494 = vpack.c.b16 %v4193, %v4186
    %v4495 = vpack.c.b16 %v4194, %v4187
    %v4496 = vpack.c.b16 %v4195, %v4188
    %v4497 = vpack.c.b16 %v4196, %v4189
    %v4498 = vpack.c.b16 %v4204, %v4197
    %v4499 = vpack.c.b16 %v4205, %v4198
    %v4500 = vpack.c.b16 %v4206, %v4199
    %v4501 = vpack.c.b16 %v4207, %v4200
    %v4502 = vpack.c.b16 %v4208, %v4201
    %v4503 = vpack.c.b16 %v4209, %v4202
    %v4504 = vpack.c.b16 %v4210, %v4203
    %v4505 = vpack.c.b16 %v4218, %v4211
    %v4506 = vpack.c.b16 %v4219, %v4212
    %v4507 = vpack.c.b16 %v4220, %v4213
    %v4508 = vpack.c.b16 %v4221, %v4214
    %v4509 = vpack.c.b16 %v4222, %v4215
    %v4510 = vpack.c.b16 %v4223, %v4216
    %v4511 = vpack.c.b16 %v4224, %v4217
    %v4512 = vpack.c.b16 %v4232, %v4225
    %v4513 = vpack.c.b16 %v4233, %v4226
    %v4514 = vpack.c.b16 %v4234, %v4227
    %v4515 = vpack.c.b16 %v4235, %v4228
    %v4516 = vpack.c.b16 %v4236, %v4229
    %v4517 = vpack.c.b16 %v4237, %v4230
    %v4518 = vpack.c.b16 %v4238, %v4231
    %v4519 = vpack.c.b16 %v4246, %v4239
    %v4520 = vpack.c.b16 %v4247, %v4240
    %v4521 = vpack.c.b16 %v4248, %v4241
    %v4522 = vpack.c.b16 %v4249, %v4242
    %v4523 = vpack.c.b16 %v4250, %v4243
    %v4524 = vpack.c.b16 %v4251, %v4244
    %v4525 = vpack.c.b16 %v4252, %v4245
    %v4526 = vpack.c.b16 %v4260, %v4253
    %v4527 = vpack.c.b16 %v4261, %v4254
    %v4528 = vpack.c.b16 %v4262, %v4255
    %v4529 = vpack.c.b16 %v4263, %v4256
    %v4530 = vpack.c.b16 %v4264, %v4257
    %v4531 = vpack.c.b16 %v4265, %v4258
    %v4532 = vpack.c.b16 %v4266, %v4259
    %v4533 = vpack.c.b16 %v4274, %v4267
    %v4534 = vpack.c.b16 %v4275, %v4268
    %v4535 = vpack.c.b16 %v4276, %v4269
    %v4536 = vpack.c.b16 %v4277, %v4270
    %v4537 = vpack.c.b16 %v4278, %v4271
    %v4538 = vpack.c.b16 %v4279, %v4272
    %v4539 = vpack.c.b16 %v4280, %v4273
    %v4540 = vpack.c.b16 %v4288, %v4281
    %v4541 = vpack.c.b16 %v4289, %v4282
    %v4542 = vpack.c.b16 %v4290, %v4283
    %v4543 = vpack.c.b16 %v4291, %v4284
    %v4544 = vpack.c.b16 %v4292, %v4285
    %v4545 = vpack.c.b16 %v4293, %v4286
    %v4546 = vpack.c.b16 %v4294, %v4287
    %v4547 = vpack.c.b16 %v4302, %v4295
    %v4548 = vpack.c.b16 %v4303, %v4296
    %v4549 = vpack.c.b16 %v4304, %v4297
    %v4550 = vpack.c.b16 %v4305, %v4298
    %v4551 = vpack.c.b16 %v4306, %v4299
    %v4552 = vpack.c.b16 %v4307, %v4300
    %v4553 = vpack.c.b16 %v4308, %v4301
    %v4554 = vpack.c.b16 %v4316, %v4309
    %v4555 = vpack.c.b16 %v4317, %v4310
    %v4556 = vpack.c.b16 %v4318, %v4311
    %v4557 = vpack.c.b16 %v4319, %v4312
    %v4558 = vpack.c.b16 %v4320, %v4313
    %v4559 = vpack.c.b16 %v4321, %v4314
    %v4560 = vpack.c.b16 %v4322, %v4315
    %v4561 = vpack.c.b16 %v4330, %v4323
    %v4562 = vpack.c.b16 %v4331, %v4324
    %v4563 = vpack.c.b16 %v4332, %v4325
    %v4564 = vpack.c.b16 %v4333, %v4326
    %v4565 = vpack.c.b16 %v4334, %v4327
    %v4566 = vpack.c.b16 %v4335, %v4328
    %v4567 = vpack.c.b16 %v4336, %v4329
    %v4568 = vpack.c.b16 %v4344, %v4337
    %v4569 = vpack.c.b16 %v4345, %v4338
    %v4570 = vpack.c.b16 %v4346, %v4339
    %v4571 = vpack.c.b16 %v4347, %v4340
    %v4572 = vpack.c.b16 %v4348, %v4341
    %v4573 = vpack.c.b16 %v4349, %v4342
    %v4574 = vpack.c.b16 %v4350, %v4343
    %4799 = vmatprep.subr.bf16.mxu0 %v4352
    %4800 = vmatpush1.bf16.msra.mxu0 %v4351
    %4801 = vmatprep.subr.bf16.mxu0 %v4359
    %4802 = vmatpush1.bf16.msra.mxu0 %v4358
    %4803 = vmatprep.subr.bf16.mxu0 %v4366
    %4804 = vmatpush1.bf16.msra.mxu0 %v4365
    %4805 = vmatprep.subr.bf16.mxu0 %v4373
    %4806 = vmatpush1.bf16.msra.mxu0 %v4372
    %4807 = vmatprep.subr.bf16.mxu0 %v4380
    %4808 = vmatpush1.bf16.msra.mxu0 %v4379
    %4809 = vmatprep.subr.bf16.mxu0 %v4387
    %4810 = vmatpush1.bf16.msra.mxu0 %v4386
    %4811 = vmatprep.subr.bf16.mxu0 %v4394
    %4812 = vmatpush1.bf16.msra.mxu0 %v4393
    %4813 = vmatprep.subr.bf16.mxu0 %v4401
    %4814 = vmatpush1.bf16.msra.mxu0 %v4400
    %4815 = vmatprep.subr.bf16.mxu0 %v4408
    %4816 = vmatpush1.bf16.msra.mxu0 %v4407
    %4817 = vmatprep.subr.bf16.mxu0 %v4415
    %4818 = vmatpush1.bf16.msra.mxu0 %v4414
    %4819 = vmatprep.subr.bf16.mxu0 %v4422
    %4820 = vmatpush1.bf16.msra.mxu0 %v4421
    %4821 = vmatprep.subr.bf16.mxu0 %v4429
    %4822 = vmatpush1.bf16.msra.mxu0 %v4428
    %4823 = vmatprep.subr.bf16.mxu0 %v4436
    %4824 = vmatpush1.bf16.msra.mxu0 %v4435
    %4825 = vmatprep.subr.bf16.mxu0 %v4443
    %4826 = vmatpush1.bf16.msra.mxu0 %v4442
    %4827 = vmatprep.subr.bf16.mxu0 %v4450
    %4828 = vmatpush1.bf16.msra.mxu0 %v4449
    %4829 = vmatprep.subr.bf16.mxu0 %v4457
    %4830 = vmatpush1.bf16.msra.mxu0 %v4456
    %4831 = vmatprep.mubr.bf16.mxu0 %v3608
    %4832 = vmatmul.mubr.bf16.gmra.mrb[0].mxu0 %v3607
    %v4833 = vpop.f32.mrb[0].mxu0
    %v4834 = vadd.f32 %v3615, %v4833
    %v4835 = vpop.f32.mrb[0].mxu0
    %v4836 = vadd.f32 %v3619, %v4835
    %v4837 = vpop.f32.mrb[0].mxu0
    %v4838 = vpop.f32.mrb[0].mxu0
    %4839 = vdwg.mxu0
    %4840 = vmatprep.subr.bf16.mxu0 %v4464
    %4841 = vmatpush1.bf16.msra.mxu0 %v4463
    %4842 = vmatprep.subr.bf16.mxu0 %v4471
    %4843 = vmatpush1.bf16.msra.mxu0 %v4470
    %4844 = vmatprep.subr.bf16.mxu0 %v4478
    %4845 = vmatpush1.bf16.msra.mxu0 %v4477
    %4846 = vmatprep.subr.bf16.mxu0 %v4485
    %4847 = vmatpush1.bf16.msra.mxu0 %v4484
    %4848 = vmatprep.subr.bf16.mxu0 %v4492
    %4849 = vmatpush1.bf16.msra.mxu0 %v4491
    %4850 = vmatprep.subr.bf16.mxu0 %v4499
    %4851 = vmatpush1.bf16.msra.mxu0 %v4498
    %4852 = vmatprep.subr.bf16.mxu0 %v4506
    %4853 = vmatpush1.bf16.msra.mxu0 %v4505
    %4854 = vmatprep.subr.bf16.mxu0 %v4513
    %4855 = vmatpush1.bf16.msra.mxu0 %v4512
    %4856 = vmatprep.subr.bf16.mxu0 %v4520
    %4857 = vmatpush1.bf16.msra.mxu0 %v4519
    %4858 = vmatprep.subr.bf16.mxu0 %v4527
    %4859 = vmatpush1.bf16.msra.mxu0 %v4526
    %4860 = vmatprep.subr.bf16.mxu0 %v4534
    %4861 = vmatpush1.bf16.msra.mxu0 %v4533
    %4862 = vmatprep.subr.bf16.mxu0 %v4541
    %4863 = vmatpush1.bf16.msra.mxu0 %v4540
    %4864 = vmatprep.subr.bf16.mxu0 %v4548
    %4865 = vmatpush1.bf16.msra.mxu0 %v4547
    %4866 = vmatprep.subr.bf16.mxu0 %v4555
    %4867 = vmatpush1.bf16.msra.mxu0 %v4554
    %4868 = vmatprep.subr.bf16.mxu0 %v4562
    %4869 = vmatpush1.bf16.msra.mxu0 %v4561
    %4870 = vmatprep.subr.bf16.mxu0 %v4569
    %4871 = vmatpush1.bf16.msra.mxu0 %v4568
    %4872 = vmatprep.mubr.bf16.mxu0 %v3610
    %4873 = vmatmul.mubr.bf16.gmra.mrb[0].mxu0 %v3609
    %v4874 = vpop.f32.mrb[0].mxu0
    %v4875 = vadd.f32 %v4834, %v4874
    %v4876 = vpop.f32.mrb[0].mxu0
    %v4877 = vadd.f32 %v4836, %v4876
    %v4878 = vpop.f32.mrb[0].mxu0
    %v4879 = vpop.f32.mrb[0].mxu0
    %4880 = vdwg.mxu0
    %4881 = vmatprep.subr.bf16.mxu0 %v4354
    %4882 = vmatpush1.bf16.msra.mxu0 %v4353
    %4883 = vmatprep.subr.bf16.mxu0 %v4361
    %4884 = vmatpush1.bf16.msra.mxu0 %v4360
    %4885 = vmatprep.subr.bf16.mxu0 %v4368
    %4886 = vmatpush1.bf16.msra.mxu0 %v4367
    %4887 = vmatprep.subr.bf16.mxu0 %v4375
    %4888 = vmatpush1.bf16.msra.mxu0 %v4374
    %4889 = vmatprep.subr.bf16.mxu0 %v4382
    %4890 = vmatpush1.bf16.msra.mxu0 %v4381
    %4891 = vmatprep.subr.bf16.mxu0 %v4389
    %4892 = vmatpush1.bf16.msra.mxu0 %v4388
    %4893 = vmatprep.subr.bf16.mxu0 %v4396
    %4894 = vmatpush1.bf16.msra.mxu0 %v4395
    %4895 = vmatprep.subr.bf16.mxu0 %v4403
    %4896 = vmatpush1.bf16.msra.mxu0 %v4402
    %4897 = vmatprep.subr.bf16.mxu0 %v4410
    %4898 = vmatpush1.bf16.msra.mxu0 %v4409
    %4899 = vmatprep.subr.bf16.mxu0 %v4417
    %4900 = vmatpush1.bf16.msra.mxu0 %v4416
    %4901 = vmatprep.subr.bf16.mxu0 %v4424
    %4902 = vmatpush1.bf16.msra.mxu0 %v4423
    %4903 = vmatprep.subr.bf16.mxu0 %v4431
    %4904 = vmatpush1.bf16.msra.mxu0 %v4430
    %4905 = vmatprep.subr.bf16.mxu0 %v4438
    %4906 = vmatpush1.bf16.msra.mxu0 %v4437
    %4907 = vmatprep.subr.bf16.mxu0 %v4445
    %4908 = vmatpush1.bf16.msra.mxu0 %v4444
    %4909 = vmatprep.subr.bf16.mxu0 %v4452
    %4910 = vmatpush1.bf16.msra.mxu0 %v4451
    %4911 = vmatprep.subr.bf16.mxu0 %v4459
    %4912 = vmatpush1.bf16.msra.mxu0 %v4458
    %4913 = vmatprep.mubr.bf16.mxu0 %v3608
    %4914 = vmatmul.mubr.bf16.gmra.mrb[0].mxu0 %v3607
    %v4915 = vpop.f32.mrb[0].mxu0
    %v4916 = vadd.f32 %v3623, %v4915
    %v4917 = vpop.f32.mrb[0].mxu0
    %v4918 = vadd.f32 %v3627, %v4917
    %v4919 = vpop.f32.mrb[0].mxu0
    %v4920 = vpop.f32.mrb[0].mxu0
    %4921 = vdwg.mxu0
    %4922 = vmatprep.subr.bf16.mxu0 %v4466
    %4923 = vmatpush1.bf16.msra.mxu0 %v4465
    %4924 = vmatprep.subr.bf16.mxu0 %v4473
    %4925 = vmatpush1.bf16.msra.mxu0 %v4472
    %4926 = vmatprep.subr.bf16.mxu0 %v4480
    %4927 = vmatpush1.bf16.msra.mxu0 %v4479
    %4928 = vmatprep.subr.bf16.mxu0 %v4487
    %4929 = vmatpush1.bf16.msra.mxu0 %v4486
    %4930 = vmatprep.subr.bf16.mxu0 %v4494
    %4931 = vmatpush1.bf16.msra.mxu0 %v4493
    %4932 = vmatprep.subr.bf16.mxu0 %v4501
    %4933 = vmatpush1.bf16.msra.mxu0 %v4500
    %4934 = vmatprep.subr.bf16.mxu0 %v4508
    %4935 = vmatpush1.bf16.msra.mxu0 %v4507
    %4936 = vmatprep.subr.bf16.mxu0 %v4515
    %4937 = vmatpush1.bf16.msra.mxu0 %v4514
    %4938 = vmatprep.subr.bf16.mxu0 %v4522
    %4939 = vmatpush1.bf16.msra.mxu0 %v4521
    %4940 = vmatprep.subr.bf16.mxu0 %v4529
    %4941 = vmatpush1.bf16.msra.mxu0 %v4528
    %4942 = vmatprep.subr.bf16.mxu0 %v4536
    %4943 = vmatpush1.bf16.msra.mxu0 %v4535
    %4944 = vmatprep.subr.bf16.mxu0 %v4543
    %4945 = vmatpush1.bf16.msra.mxu0 %v4542
    %4946 = vmatprep.subr.bf16.mxu0 %v4550
    %4947 = vmatpush1.bf16.msra.mxu0 %v4549
    %4948 = vmatprep.subr.bf16.mxu0 %v4557
    %4949 = vmatpush1.bf16.msra.mxu0 %v4556
    %4950 = vmatprep.subr.bf16.mxu0 %v4564
    %4951 = vmatpush1.bf16.msra.mxu0 %v4563
    %4952 = vmatprep.subr.bf16.mxu0 %v4571
    %4953 = vmatpush1.bf16.msra.mxu0 %v4570
    %4954 = vmatprep.mubr.bf16.mxu0 %v3610
    %4955 = vmatmul.mubr.bf16.gmra.mrb[0].mxu0 %v3609
    %v4956 = vpop.f32.mrb[0].mxu0
    %v4957 = vadd.f32 %v4916, %v4956
    %v4958 = vpop.f32.mrb[0].mxu0
    %v4959 = vadd.f32 %v4918, %v4958
    %v4960 = vpop.f32.mrb[0].mxu0
    %v4961 = vpop.f32.mrb[0].mxu0
    %4962 = vdwg.mxu0
    %4963 = vmatprep.subr.bf16.mxu0 %v4356
    %4964 = vmatpush1.bf16.msra.mxu0 %v4355
    %4965 = vmatprep.subr.bf16.mxu0 %v4363
    %4966 = vmatpush1.bf16.msra.mxu0 %v4362
    %4967 = vmatprep.subr.bf16.mxu0 %v4370
    %4968 = vmatpush1.bf16.msra.mxu0 %v4369
    %4969 = vmatprep.subr.bf16.mxu0 %v4377
    %4970 = vmatpush1.bf16.msra.mxu0 %v4376
    %4971 = vmatprep.subr.bf16.mxu0 %v4384
    %4972 = vmatpush1.bf16.msra.mxu0 %v4383
    %4973 = vmatprep.subr.bf16.mxu0 %v4391
    %4974 = vmatpush1.bf16.msra.mxu0 %v4390
    %4975 = vmatprep.subr.bf16.mxu0 %v4398
    %4976 = vmatpush1.bf16.msra.mxu0 %v4397
    %4977 = vmatprep.subr.bf16.mxu0 %v4405
    %4978 = vmatpush1.bf16.msra.mxu0 %v4404
    %4979 = vmatprep.subr.bf16.mxu0 %v4412
    %4980 = vmatpush1.bf16.msra.mxu0 %v4411
    %4981 = vmatprep.subr.bf16.mxu0 %v4419
    %4982 = vmatpush1.bf16.msra.mxu0 %v4418
    %4983 = vmatprep.subr.bf16.mxu0 %v4426
    %4984 = vmatpush1.bf16.msra.mxu0 %v4425
    %4985 = vmatprep.subr.bf16.mxu0 %v4433
    %4986 = vmatpush1.bf16.msra.mxu0 %v4432
    %4987 = vmatprep.subr.bf16.mxu0 %v4440
    %4988 = vmatpush1.bf16.msra.mxu0 %v4439
    %4989 = vmatprep.subr.bf16.mxu0 %v4447
    %4990 = vmatpush1.bf16.msra.mxu0 %v4446
    %4991 = vmatprep.subr.bf16.mxu0 %v4454
    %4992 = vmatpush1.bf16.msra.mxu0 %v4453
    %4993 = vmatprep.subr.bf16.mxu0 %v4461
    %4994 = vmatpush1.bf16.msra.mxu0 %v4460
    %4995 = vmatprep.mubr.bf16.mxu0 %v3608
    %4996 = vmatmul.mubr.bf16.gmra.mrb[0].mxu0 %v3607
    %v4997 = vpop.f32.mrb[0].mxu0
    %v4998 = vadd.f32 %v3631, %v4997
    %v4999 = vpop.f32.mrb[0].mxu0
    %v5000 = vadd.f32 %v3635, %v4999
    %v5001 = vpop.f32.mrb[0].mxu0
    %v5002 = vpop.f32.mrb[0].mxu0
    %5003 = vdwg.mxu0
    %5004 = vmatprep.subr.bf16.mxu0 %v4468
    %5005 = vmatpush1.bf16.msra.mxu0 %v4467
    %5006 = vmatprep.subr.bf16.mxu0 %v4475
    %5007 = vmatpush1.bf16.msra.mxu0 %v4474
    %5008 = vmatprep.subr.bf16.mxu0 %v4482
    %5009 = vmatpush1.bf16.msra.mxu0 %v4481
    %5010 = vmatprep.subr.bf16.mxu0 %v4489
    %5011 = vmatpush1.bf16.msra.mxu0 %v4488
    %5012 = vmatprep.subr.bf16.mxu0 %v4496
    %5013 = vmatpush1.bf16.msra.mxu0 %v4495
    %5014 = vmatprep.subr.bf16.mxu0 %v4503
    %5015 = vmatpush1.bf16.msra.mxu0 %v4502
    %5016 = vmatprep.subr.bf16.mxu0 %v4510
    %5017 = vmatpush1.bf16.msra.mxu0 %v4509
    %5018 = vmatprep.subr.bf16.mxu0 %v4517
    %5019 = vmatpush1.bf16.msra.mxu0 %v4516
    %5020 = vmatprep.subr.bf16.mxu0 %v4524
    %5021 = vmatpush1.bf16.msra.mxu0 %v4523
    %5022 = vmatprep.subr.bf16.mxu0 %v4531
    %5023 = vmatpush1.bf16.msra.mxu0 %v4530
    %5024 = vmatprep.subr.bf16.mxu0 %v4538
    %5025 = vmatpush1.bf16.msra.mxu0 %v4537
    %5026 = vmatprep.subr.bf16.mxu0 %v4545
    %5027 = vmatpush1.bf16.msra.mxu0 %v4544
    %5028 = vmatprep.subr.bf16.mxu0 %v4552
    %5029 = vmatpush1.bf16.msra.mxu0 %v4551
    %5030 = vmatprep.subr.bf16.mxu0 %v4559
    %5031 = vmatpush1.bf16.msra.mxu0 %v4558
    %5032 = vmatprep.subr.bf16.mxu0 %v4566
    %5033 = vmatpush1.bf16.msra.mxu0 %v4565
    %5034 = vmatprep.subr.bf16.mxu0 %v4573
    %5035 = vmatpush1.bf16.msra.mxu0 %v4572
    %5036 = vmatprep.mubr.bf16.mxu0 %v3610
    %5037 = vmatmul.mubr.bf16.gmra.mrb[0].mxu0 %v3609
    %v5038 = vpop.f32.mrb[0].mxu0
    %v5039 = vadd.f32 %v4998, %v5038
    %v5040 = vpop.f32.mrb[0].mxu0
    %v5041 = vadd.f32 %v5000, %v5040
    %v5042 = vpop.f32.mrb[0].mxu0
    %v5043 = vpop.f32.mrb[0].mxu0
    %5044 = vdwg.mxu0
    %5045 = vmatprep.subr.bf16.mxu0 0
    %5046 = vmatpush1.bf16.msra.mxu0 %v4357
    %5047 = vmatprep.subr.bf16.mxu0 0
    %5048 = vmatpush1.bf16.msra.mxu0 %v4364
    %5049 = vmatprep.subr.bf16.mxu0 0
    %5050 = vmatpush1.bf16.msra.mxu0 %v4371
    %5051 = vmatprep.subr.bf16.mxu0 0
    %5052 = vmatpush1.bf16.msra.mxu0 %v4378
    %5053 = vmatprep.subr.bf16.mxu0 0
    %5054 = vmatpush1.bf16.msra.mxu0 %v4385
    %5055 = vmatprep.subr.bf16.mxu0 0
    %5056 = vmatpush1.bf16.msra.mxu0 %v4392
    %5057 = vmatprep.subr.bf16.mxu0 0
    %5058 = vmatpush1.bf16.msra.mxu0 %v4399
    %5059 = vmatprep.subr.bf16.mxu0 0
    %5060 = vmatpush1.bf16.msra.mxu0 %v4406
    %5061 = vmatprep.subr.bf16.mxu0 0
    %5062 = vmatpush1.bf16.msra.mxu0 %v4413
    %5063 = vmatprep.subr.bf16.mxu0 0
    %5064 = vmatpush1.bf16.msra.mxu0 %v4420
    %5065 = vmatprep.subr.bf16.mxu0 0
    %5066 = vmatpush1.bf16.msra.mxu0 %v4427
    %5067 = vmatprep.subr.bf16.mxu0 0
    %5068 = vmatpush1.bf16.msra.mxu0 %v4434
    %5069 = vmatprep.subr.bf16.mxu0 0
    %5070 = vmatpush1.bf16.msra.mxu0 %v4441
    %5071 = vmatprep.subr.bf16.mxu0 0
    %5072 = vmatpush1.bf16.msra.mxu0 %v4448
    %5073 = vmatprep.subr.bf16.mxu0 0
    %5074 = vmatpush1.bf16.msra.mxu0 %v4455
    %5075 = vmatprep.subr.bf16.mxu0 0
    %5076 = vmatpush1.bf16.msra.mxu0 %v4462
    %5077 = vmatprep.mubr.bf16.mxu0 %v3608
    %5078 = vmatmul.mubr.bf16.gmra.mrb[0].mxu0 %v3607
    %v5079 = vpop.f32.mrb[0].mxu0
    %v5080 = vadd.f32 %v3639, %v5079
    %v5081 = vpop.f32.mrb[0].mxu0
    %v5082 = vpop.f32.mrb[0].mxu0
    %v5083 = vpop.f32.mrb[0].mxu0
    %5084 = vdwg.mxu0
    %5085 = vmatprep.subr.bf16.mxu0 0
    %5086 = vmatpush1.bf16.msra.mxu0 %v4469
    %5087 = vmatprep.subr.bf16.mxu0 0
    %5088 = vmatpush1.bf16.msra.mxu0 %v4476
    %5089 = vmatprep.subr.bf16.mxu0 0
    %5090 = vmatpush1.bf16.msra.mxu0 %v4483
    %5091 = vmatprep.subr.bf16.mxu0 0
    %5092 = vmatpush1.bf16.msra.mxu0 %v4490
    %5093 = vmatprep.subr.bf16.mxu0 0
    %5094 = vmatpush1.bf16.msra.mxu0 %v4497
    %5095 = vmatprep.subr.bf16.mxu0 0
    %5096 = vmatpush1.bf16.msra.mxu0 %v4504
    %5097 = vmatprep.subr.bf16.mxu0 0
    %5098 = vmatpush1.bf16.msra.mxu0 %v4511
    %5099 = vmatprep.subr.bf16.mxu0 0
    %5100 = vmatpush1.bf16.msra.mxu0 %v4518
    %5101 = vmatprep.subr.bf16.mxu0 0
    %5102 = vmatpush1.bf16.msra.mxu0 %v4525
    %5103 = vmatprep.subr.bf16.mxu0 0
    %5104 = vmatpush1.bf16.msra.mxu0 %v4532
    %5105 = vmatprep.subr.bf16.mxu0 0
    %5106 = vmatpush1.bf16.msra.mxu0 %v4539
    %5107 = vmatprep.subr.bf16.mxu0 0
    %5108 = vmatpush1.bf16.msra.mxu0 %v4546
    %5109 = vmatprep.subr.bf16.mxu0 0
    %5110 = vmatpush1.bf16.msra.mxu0 %v4553
    %5111 = vmatprep.subr.bf16.mxu0 0
    %5112 = vmatpush1.bf16.msra.mxu0 %v4560
    %5113 = vmatprep.subr.bf16.mxu0 0
    %5114 = vmatpush1.bf16.msra.mxu0 %v4567
    %5115 = vmatprep.subr.bf16.mxu0 0
    %5116 = vmatpush1.bf16.msra.mxu0 %v4574
    %5117 = vmatprep.mubr.bf16.mxu0 %v3610
    %5118 = vmatmul.mubr.bf16.gmra.mrb[0].mxu0 %v3609
    %v5119 = vpop.f32.mrb[0].mxu0
    %v5120 = vadd.f32 %v5080, %v5119
    %v5121 = vpop.f32.mrb[0].mxu0
    %v5122 = vpop.f32.mrb[0].mxu0
    %v5123 = vpop.f32.mrb[0].mxu0
    %5124 = vdwg.mxu0
    %v5125 = vxor.u32 %v4875, 2147483648
    %v5126 = vxor.u32 %v4877, 2147483648
    %v5127 = vxor.u32 %v4957, 2147483648
    %v5128 = vxor.u32 %v4959, 2147483648
    %v5129 = vxor.u32 %v5039, 2147483648
    %v5130 = vxor.u32 %v5041, 2147483648
    %v5131 = vxor.u32 %v5120, 2147483648
    %v5132 = vmul.f32 %v5125, 1.442695
    %v5133 = vpow.pop %v5132
    %v5134 = vmul.f32 %v5126, 1.442695
    %v5135 = vpow.pop %v5134
    %v5136 = vmul.f32 %v5127, 1.442695
    %v5137 = vpow.pop %v5136
    %v5138 = vmul.f32 %v5128, 1.442695
    %v5139 = vpow.pop %v5138
    %v5140 = vmul.f32 %v5129, 1.442695
    %v5141 = vpow.pop %v5140
    %v5142 = vmul.f32 %v5130, 1.442695
    %v5143 = vpow.pop %v5142
    %v5144 = vmul.f32 %v5131, 1.442695
    %v5145 = vpow.pop %v5144
    %v5146 = vadd.f32 %v5133, 1.0
    %v5147 = vadd.f32 %v5135, 1.0
    %v5148 = vadd.f32 %v5137, 1.0
    %v5149 = vadd.f32 %v5139, 1.0
    %v5150 = vadd.f32 %v5141, 1.0
    %v5151 = vadd.f32 %v5143, 1.0
    %v5152 = vadd.f32 %v5145, 1.0
    %v5153 = vrcp.pop %v5146
    %v5154 = vmul.f32 1.0, %v5153
    %v5155 = vrcp.pop %v5147
    %v5156 = vmul.f32 1.0, %v5155
    %v5157 = vrcp.pop %v5148
    %v5158 = vmul.f32 1.0, %v5157
    %v5159 = vrcp.pop %v5149
    %v5160 = vmul.f32 1.0, %v5159
    %v5161 = vrcp.pop %v5150
    %v5162 = vmul.f32 1.0, %v5161
    %v5163 = vrcp.pop %v5151
    %v5164 = vmul.f32 1.0, %v5163
    %v5165 = vrcp.pop %v5152
    %v5166 = vmul.f32 1.0, %v5165
    %5167 = vst [vmem:[#allocation2] sm:$0xff] %v5154
    %5168 = vst [vmem:[#allocation2 + $0x8] sm:$0xff] %v5156
    %5169 = vst [vmem:[#allocation2 + $0x10] sm:$0xff] %v5158
    %5170 = vst [vmem:[#allocation2 + $0x18] sm:$0xff] %v5160
    %5171 = vst [vmem:[#allocation2 + $0x20] sm:$0xff] %v5162
    %5172 = vst [vmem:[#allocation2 + $0x28] sm:$0xff] %v5164
    %5173 = vst.msk [vmem:[#allocation2 + $0x30] sm:$0xff] %vm1270, %v5166
    // Predicated region
    $region70: #{ae_mnist_forward.1} parent=1 // pred_check
      _
    $region71: #{ae_mnist_forward.1} parent=1 // pred_check_branch
      %5175 = sbr.rel (0) target = $region73
    $region72: #{ae_mnist_forward.1} parent=1 // pred_region
      %s5177 = ssub.s32 896, 896
      %5178 = vsyncadd [#allocation3], %s5177
      %s5180 = sshll.u32 [#allocation2], 4
      %s5181 = int_to_ptr.vmem [resolvable:$true] %s5180
      %5183 = dma.vmem_to_hbm [thread:$0]  %s5181, 896, %s17, [#allocation3]
    $region73: #{ae_mnist_forward.1} parent=1 // pred_fallthru
      _
    // Predicated region
    $region74: #{ae_mnist_forward.1} parent=1 // pred_check
      _
    $region75: #{ae_mnist_forward.1} parent=1 // pred_check_branch
      %5185 = sbr.rel (0) target = $region77
    $region76: #{ae_mnist_forward.1} parent=1 // pred_region
      %5186 = dma.done [#allocation3], 896
    $region77: #{ae_mnist_forward.1} parent=1 // pred_fallthru
      _
    %5187 = vsyncpa [#allocation3], 1

</llo_original>
